<compile_context>
chip_gen: v6e
topology: v6e:2x2x1
jax: 0.10.0
libtpu: 0.0.40
codegen_flags: <defaults>
</compile_context>

<pallas_src>
import functools

import jax
import jax.numpy as jnp
from jax.experimental import pallas as pl
from jax.experimental.pallas import tpu as pltpu

EPS = 1e-5
LANE = 128
SUB = 8


def _round_up(v, m):
    return (v + m - 1) // m * m


# ------------------------------ Pallas kernel ------------------------------ #

def _bottleneck_kernel(x_ref, s1_ref, b1_ref, w1_ref, s2_ref, b2_ref,
                       w2_ref, s3_ref, b3_ref, w3_ref, o_ref, *, valid_w):
    """Fused pre-activation bottleneck on one whole (width-padded) image."""
    _, h, wp, c = o_ref.shape            # (1, H, Wp, C)
    pm = w1_ref.shape[1]                 # padded mid planes
    m = h * wp                           # MXU M dimension (all pixels)

    # bf16 activations in HBM/VMEM; upcast once for all VPU math.
    x = x_ref[0].astype(jnp.float32).reshape(m, c)

    # bn1 -> relu -> conv1 (1x1) -> bn2 -> relu      (f32 VPU, bf16 MXU ops)
    y1 = jnp.maximum(x * s1_ref[...] + b1_ref[...], 0.0)
    hid = jnp.dot(y1.astype(jnp.bfloat16), w1_ref[...],
                  preferred_element_type=jnp.float32)            # (M, Pm)
    hid = jnp.maximum(hid * s2_ref[...] + b2_ref[...], 0.0)

    # Explicit zero halo rows emulate the 3x3 conv's SAME row padding.
    h3 = hid.reshape(h, wp, pm)
    zrow = jnp.zeros((1, wp, pm), jnp.float32)
    hpad = jnp.concatenate([zrow, h3, zrow], axis=0)             # (H+2, Wp, Pm)

    # In-kernel column index (no HBM mask input): the kw=0 tap is invalid at
    # column 0 and the kw=2 tap at the last valid column; zeroing them also
    # corrects the roll wrap-around, so no other column masking is needed.
    col = jax.lax.broadcasted_iota(jnp.int32, (h, wp, pm), 1).reshape(m, pm)
    lkeep = col != 0
    rkeep = col != (valid_w - 1)

    # conv2 (3x3, pad=1): 3 accumulating deep-K (K=3*Pm) MXU matmuls, one per
    # kh.  Column taps are XLU sublane rolls -> every tap is (8,128)-aligned.
    acc = jnp.zeros((m, pm), jnp.float32)
    for dh in range(3):
        rows = hpad[dh:dh + h].reshape(m, pm)                    # aligned slice
        left = jnp.where(lkeep, pltpu.roll(rows, shift=1, axis=0), 0.0)
        right = jnp.where(rkeep, pltpu.roll(rows, shift=m - 1, axis=0), 0.0)
        patch = jnp.concatenate([left, rows, right],
                                axis=-1).astype(jnp.bfloat16)    # (M, 3*Pm)
        acc = acc + jnp.dot(patch, w2_ref[dh],
                            preferred_element_type=jnp.float32)  # (M, Pm)

    # bn3 -> relu -> conv3 (1x1) -> + residual (from the resident x tile)
    y3 = jnp.maximum(acc * s3_ref[...] + b3_ref[...], 0.0)
    out = jnp.dot(y3.astype(jnp.bfloat16), w3_ref[...],
                  preferred_element_type=jnp.float32)            # (M, C)
    o_ref[0] = (out + x).reshape(h, wp, c)


# ------------------------------ JAX wrapper -------------------------------- #

def _fold_bn(gamma, beta, mean, var, cpad):
    scale = gamma / jnp.sqrt(var + EPS)
    shift = beta - mean * scale
    scale = jnp.pad(scale, (0, cpad - scale.shape[0]))
    shift = jnp.pad(shift, (0, cpad - shift.shape[0]))
    return scale[None, :].astype(jnp.float32), shift[None, :].astype(jnp.float32)


def bottleneck_forward(x_nchw, params, stride=1):
    """Forward of Bottleneck(inplanes, planes, stride=1, downsample=None)."""
    assert stride == 1, "stride>1 needs a downsample module"
    # TODO(synk): downsample branch (arbitrary nn.Module) not implemented.
    N, Cin, H, W = x_nchw.shape
    P = params["w1"].shape[0]                    # planes
    Cout = params["w3"].shape[0]                 # planes * expansion
    assert Cout == Cin, "identity residual requires Cout == Cin"

    C = _round_up(Cin, LANE)                     # lane-dense channels
    Pm = _round_up(P, LANE)
    Wp = _round_up(W, SUB)                       # sublane-dense width, no halo

    # ---- layout glue only: NHWC, width/channel zero-pad, bf16 in HBM ----
    x_nhwc = jnp.transpose(x_nchw, (0, 2, 3, 1))
    xp = jnp.pad(x_nhwc, ((0, 0), (0, 0), (0, Wp - W), (0, C - Cin))
                 ).astype(jnp.bfloat16)                          # (N, H, Wp, C)

    # ---- folded BN + padded / packed bf16 weights ----
    s1, b1 = _fold_bn(*params["bn1"], C)
    s2, b2 = _fold_bn(*params["bn2"], Pm)
    s3, b3 = _fold_bn(*params["bn3"], Pm)
    w1 = jnp.pad(params["w1"][:, :, 0, 0],
                 ((0, Pm - P), (0, C - Cin))).T.astype(jnp.bfloat16)     # (C, Pm)
    w3 = jnp.pad(params["w3"][:, :, 0, 0],
                 ((0, C - Cout), (0, Pm - P))).T.astype(jnp.bfloat16)    # (Pm, C)
    w2 = jnp.transpose(params["w2"], (2, 3, 1, 0))                       # (kh,kw,cin,cout)
    w2 = jnp.pad(w2, ((0, 0), (0, 0), (0, Pm - P), (0, Pm - P)))
    w2p = w2.reshape(3, 3 * Pm, Pm).astype(jnp.bfloat16)   # per-kh (kw,cin)-major

    kernel = functools.partial(_bottleneck_kernel, valid_w=W)
    out = pl.pallas_call(
        kernel,
        out_shape=jax.ShapeDtypeStruct((N, H, Wp, C), jnp.float32),
        grid=(N,),
        in_specs=[
            pl.BlockSpec((1, H, Wp, C), lambda n: (n, 0, 0, 0)),
            pl.BlockSpec((1, C), lambda n: (0, 0)),
            pl.BlockSpec((1, C), lambda n: (0, 0)),
            pl.BlockSpec((C, Pm), lambda n: (0, 0)),
            pl.BlockSpec((1, Pm), lambda n: (0, 0)),
            pl.BlockSpec((1, Pm), lambda n: (0, 0)),
            pl.BlockSpec((3, 3 * Pm, Pm), lambda n: (0, 0, 0)),
            pl.BlockSpec((1, Pm), lambda n: (0, 0)),
            pl.BlockSpec((1, Pm), lambda n: (0, 0)),
            pl.BlockSpec((Pm, C), lambda n: (0, 0)),
        ],
        out_specs=pl.BlockSpec((1, H, Wp, C), lambda n: (n, 0, 0, 0)),
        compiler_params=pltpu.CompilerParams(
            dimension_semantics=("parallel",),
            vmem_limit_bytes=48 * 1024 * 1024,   # fits v7x's 64 MiB physical VMEM
        ),
    )(xp, s1, b1, w1, s2, b2, w2p, s3, b3, w3)

    out = out[:, :, :W, :Cin]                    # drop width / channel padding
    return jnp.transpose(out, (0, 3, 1, 2))      # back to NCHW


# ------------------------- pure-JAX reference ------------------------------ #

def bottleneck_reference(x_nchw, params):
    def bn(v, g, b, m, var):
        return (v - m) / jnp.sqrt(var + EPS) * g + b

    x = jnp.transpose(x_nchw, (0, 2, 3, 1)).astype(jnp.float32)   # NHWC
    y = jax.nn.relu(bn(x, *params["bn1"]))
    y = jnp.einsum("nhwc,cp->nhwp", y, jnp.transpose(params["w1"][:, :, 0, 0], (1, 0)))
    y = jax.nn.relu(bn(y, *params["bn2"]))
    w2_hwio = jnp.transpose(params["w2"], (2, 3, 1, 0))           # (3,3,in,out)
    y = jax.lax.conv_general_dilated(
        y, w2_hwio, window_strides=(1, 1), padding="SAME",
        dimension_numbers=("NHWC", "HWIO", "NHWC"))
    y = jax.nn.relu(bn(y, *params["bn3"]))
    y = jnp.einsum("nhwp,pc->nhwc", y, jnp.transpose(params["w3"][:, :, 0, 0], (1, 0)))
    out = y + x
    return jnp.transpose(out, (0, 3, 1, 2))


# ---------------------------- param init ----------------------------------- #

def init_params(key, inplanes, planes, expansion=4):
    ks = jax.random.split(key, 15)

    def bn_params(kg, kb, km, kv, c):
        gamma = jax.random.uniform(kg, (c,), jnp.float32, 0.5, 1.5)
        beta = 0.1 * jax.random.normal(kb, (c,), jnp.float32)
        mean = 0.1 * jax.random.normal(km, (c,), jnp.float32)
        var = jax.random.uniform(kv, (c,), jnp.float32, 0.5, 1.5)
        return (gamma, beta, mean, var)

    cout = planes * expansion
    w1 = jax.random.normal(ks[12], (planes, inplanes, 1, 1), jnp.float32) * (2.0 / inplanes) ** 0.5
    w2 = jax.random.normal(ks[13], (planes, planes, 3, 3), jnp.float32) * (2.0 / (planes * 9)) ** 0.5
    w3 = jax.random.normal(ks[14], (cout, planes, 1, 1), jnp.float32) * (2.0 / planes) ** 0.5

    return {
        "bn1": bn_params(ks[0], ks[1], ks[2], ks[3], inplanes),
        "bn2": bn_params(ks[4], ks[5], ks[6], ks[7], planes),
        "bn3": bn_params(ks[8], ks[9], ks[10], ks[11], planes),
        "w1": w1, "w2": w2, "w3": w3,
    }


# --------------------------------- main ------------------------------------ #

if __name__ == "__main__":
    key = jax.random.PRNGKey(0)
    k_x, k_p = jax.random.split(key)

    inplanes, planes, expansion = 16, 4, 4     # Cout = planes*4 = inplanes
    N, H, W = 2, 16, 16

    x = jax.random.normal(k_x, (N, inplanes, H, W), jnp.float32)   # NCHW
    params = init_params(k_p, inplanes, planes, expansion)

    out = jax.block_until_ready(bottleneck_forward(x, params))
    ref = jax.block_until_ready(bottleneck_reference(x, params))

    assert out.shape == (N, inplanes, H, W), out.shape
    # bf16 HBM activations + bf16 MXU operands (f32 accum) vs f32 reference.
    max_err = float(jnp.max(jnp.abs(out - ref)))
    assert jnp.allclose(out, ref, rtol=5e-2, atol=5e-2), max_err
    print("KERNEL_OK")
</pallas_src>

<mosaic_0001>
module attributes {stable_mosaic.version = 11 : i64} {
  func.func @_bottleneck_kernel(%arg0: i32, %arg1: memref<1x16x16x128xbf16, #tpu.memory_space<vmem>>, %arg2: memref<1x128xf32, #tpu.memory_space<vmem>>, %arg3: memref<1x128xf32, #tpu.memory_space<vmem>>, %arg4: memref<128x128xbf16, #tpu.memory_space<vmem>>, %arg5: memref<1x128xf32, #tpu.memory_space<vmem>>, %arg6: memref<1x128xf32, #tpu.memory_space<vmem>>, %arg7: memref<3x384x128xbf16, #tpu.memory_space<vmem>>, %arg8: memref<1x128xf32, #tpu.memory_space<vmem>>, %arg9: memref<1x128xf32, #tpu.memory_space<vmem>>, %arg10: memref<128x128xbf16, #tpu.memory_space<vmem>>, %arg11: memref<1x16x16x128xf32, #tpu.memory_space<vmem>>) attributes {dimension_semantics = [#tpu.dimension_semantics<parallel>], iteration_bounds = array<i64: 2>, scalar_prefetch = 0 : i64, scratch_operands = 0 : i64, tpu.core_type = #tpu.core_type<tc>, window_params = [{transform_indices = @transform_0, window_bounds = array<i64: 1, 16, 16, 128>}, {pipeline_mode = #tpu.pipeline_mode<synchronous>, transform_indices = @transform_1, window_bounds = array<i64: 1, 128>}, {pipeline_mode = #tpu.pipeline_mode<synchronous>, transform_indices = @transform_2, window_bounds = array<i64: 1, 128>}, {pipeline_mode = #tpu.pipeline_mode<synchronous>, transform_indices = @transform_3, window_bounds = array<i64: 128, 128>}, {pipeline_mode = #tpu.pipeline_mode<synchronous>, transform_indices = @transform_4, window_bounds = array<i64: 1, 128>}, {pipeline_mode = #tpu.pipeline_mode<synchronous>, transform_indices = @transform_5, window_bounds = array<i64: 1, 128>}, {pipeline_mode = #tpu.pipeline_mode<synchronous>, transform_indices = @transform_6, window_bounds = array<i64: 3, 384, 128>}, {pipeline_mode = #tpu.pipeline_mode<synchronous>, transform_indices = @transform_7, window_bounds = array<i64: 1, 128>}, {pipeline_mode = #tpu.pipeline_mode<synchronous>, transform_indices = @transform_8, window_bounds = array<i64: 1, 128>}, {pipeline_mode = #tpu.pipeline_mode<synchronous>, transform_indices = @transform_9, window_bounds = array<i64: 128, 128>}, {transform_indices = @transform_10, window_bounds = array<i64: 1, 16, 16, 128>}]} {
    %c0 = arith.constant 0 : index
    %c0_0 = arith.constant 0 : index
    %c0_1 = arith.constant 0 : index
    %c0_2 = arith.constant 0 : index
    %0 = vector.load %arg1[%c0, %c0_0, %c0_1, %c0_2] : memref<1x16x16x128xbf16, #tpu.memory_space<vmem>>, vector<1x16x16x128xbf16>
    %1 = vector.shape_cast %0 : vector<1x16x16x128xbf16> to vector<16x16x128xbf16>
    %2 = arith.extf %1 : vector<16x16x128xbf16> to vector<16x16x128xf32>
    %3 = vector.shape_cast %2 : vector<16x16x128xf32> to vector<256x128xf32>
    %c0_3 = arith.constant 0 : index
    %c0_4 = arith.constant 0 : index
    %4 = vector.load %arg2[%c0_3, %c0_4] : memref<1x128xf32, #tpu.memory_space<vmem>>, vector<1x128xf32>
    %5 = vector.broadcast %4 : vector<1x128xf32> to vector<256x128xf32>
    %6 = arith.mulf %3, %5 : vector<256x128xf32>
    %c0_5 = arith.constant 0 : index
    %c0_6 = arith.constant 0 : index
    %7 = vector.load %arg3[%c0_5, %c0_6] : memref<1x128xf32, #tpu.memory_space<vmem>>, vector<1x128xf32>
    %8 = vector.broadcast %7 : vector<1x128xf32> to vector<256x128xf32>
    %9 = arith.addf %6, %8 : vector<256x128xf32>
    %cst = arith.constant 0.000000e+00 : f32
    %10 = vector.broadcast %cst : f32 to vector<256x128xf32>
    %11 = arith.maximumf %9, %10 : vector<256x128xf32>
    %12 = arith.truncf %11 : vector<256x128xf32> to vector<256x128xbf16>
    %c0_7 = arith.constant 0 : index
    %c0_8 = arith.constant 0 : index
    %13 = vector.load %arg4[%c0_7, %c0_8] : memref<128x128xbf16, #tpu.memory_space<vmem>>, vector<128x128xbf16>
    %cst_9 = arith.constant dense<0.000000e+00> : vector<256x128xf32>
    %14 = tpu.matmul %12, %13, %cst_9 {dimension_numbers = #tpu.dot_dimension_numbers<[1], [0], [0], [1], [0, 0, 1, 1], [], []>} : vector<256x128xbf16>, vector<128x128xbf16>, vector<256x128xf32> -> vector<256x128xf32>
    %c0_10 = arith.constant 0 : index
    %c0_11 = arith.constant 0 : index
    %15 = vector.load %arg5[%c0_10, %c0_11] : memref<1x128xf32, #tpu.memory_space<vmem>>, vector<1x128xf32>
    %16 = vector.broadcast %15 : vector<1x128xf32> to vector<256x128xf32>
    %17 = arith.mulf %14, %16 : vector<256x128xf32>
    %c0_12 = arith.constant 0 : index
    %c0_13 = arith.constant 0 : index
    %18 = vector.load %arg6[%c0_12, %c0_13] : memref<1x128xf32, #tpu.memory_space<vmem>>, vector<1x128xf32>
    %19 = vector.broadcast %18 : vector<1x128xf32> to vector<256x128xf32>
    %20 = arith.addf %17, %19 : vector<256x128xf32>
    %cst_14 = arith.constant 0.000000e+00 : f32
    %21 = vector.broadcast %cst_14 : f32 to vector<256x128xf32>
    %22 = arith.maximumf %20, %21 : vector<256x128xf32>
    %23 = vector.shape_cast %22 : vector<256x128xf32> to vector<16x16x128xf32>
    %cst_15 = arith.constant 0.000000e+00 : f32
    %24 = vector.broadcast %cst_15 : f32 to vector<1x16x128xf32>
    %25 = tpu.concatenate %24, %23, %24 in 0 : vector<1x16x128xf32>, vector<16x16x128xf32>, vector<1x16x128xf32> -> vector<18x16x128xf32>
    %26 = tpu.iota {dimensions = array<i32: 1>} : vector<16x16x128xi32>
    %27 = vector.shape_cast %26 : vector<16x16x128xi32> to vector<256x128xi32>
    %c0_i32 = arith.constant 0 : i32
    %28 = vector.broadcast %c0_i32 : i32 to vector<256x128xi32>
    %29 = arith.cmpi ne, %27, %28 : vector<256x128xi32>
    %c15_i32 = arith.constant 15 : i32
    %30 = vector.broadcast %c15_i32 : i32 to vector<256x128xi32>
    %31 = arith.cmpi ne, %27, %30 : vector<256x128xi32>
    %cst_16 = arith.constant 0.000000e+00 : f32
    %32 = vector.broadcast %cst_16 : f32 to vector<256x128xf32>
    %33 = vector.extract_strided_slice %25 {offsets = [0, 0, 0], sizes = [16, 16, 128], strides = [1, 1, 1]} : vector<18x16x128xf32> to vector<16x16x128xf32>
    %34 = vector.shape_cast %33 : vector<16x16x128xf32> to vector<256x128xf32>
    %c1_i32 = arith.constant 1 : i32
    %35 = tpu.dynamic_rotate %34 by %c1_i32 dim 0 : vector<256x128xf32>, i32 -> vector<256x128xf32>
    %cst_17 = arith.constant 0.000000e+00 : f32
    %36 = vector.broadcast %cst_17 : f32 to vector<256x128xf32>
    %37 = arith.select %29, %35, %36 : vector<256x128xi1>, vector<256x128xf32>
    %c255_i32 = arith.constant 255 : i32
    %38 = tpu.dynamic_rotate %34 by %c255_i32 dim 0 : vector<256x128xf32>, i32 -> vector<256x128xf32>
    %cst_18 = arith.constant 0.000000e+00 : f32
    %39 = vector.broadcast %cst_18 : f32 to vector<256x128xf32>
    %40 = arith.select %31, %38, %39 : vector<256x128xi1>, vector<256x128xf32>
    %41 = tpu.concatenate %37, %34, %40 in 1 : vector<256x128xf32>, vector<256x128xf32>, vector<256x128xf32> -> vector<256x384xf32>
    %42 = arith.truncf %41 : vector<256x384xf32> to vector<256x384xbf16>
    %c0_19 = arith.constant 0 : index
    %c0_20 = arith.constant 0 : index
    %c0_21 = arith.constant 0 : index
    %43 = vector.load %arg7[%c0_19, %c0_20, %c0_21] : memref<3x384x128xbf16, #tpu.memory_space<vmem>>, vector<1x384x128xbf16>
    %44 = vector.shape_cast %43 : vector<1x384x128xbf16> to vector<384x128xbf16>
    %cst_22 = arith.constant dense<0.000000e+00> : vector<256x128xf32>
    %45 = tpu.matmul %42, %44, %cst_22 {dimension_numbers = #tpu.dot_dimension_numbers<[1], [0], [0], [1], [0, 0, 1, 1], [], []>} : vector<256x384xbf16>, vector<384x128xbf16>, vector<256x128xf32> -> vector<256x128xf32>
    %46 = arith.addf %32, %45 : vector<256x128xf32>
    %47 = vector.extract_strided_slice %25 {offsets = [1, 0, 0], sizes = [16, 16, 128], strides = [1, 1, 1]} : vector<18x16x128xf32> to vector<16x16x128xf32>
    %48 = vector.shape_cast %47 : vector<16x16x128xf32> to vector<256x128xf32>
    %c1_i32_23 = arith.constant 1 : i32
    %49 = tpu.dynamic_rotate %48 by %c1_i32_23 dim 0 : vector<256x128xf32>, i32 -> vector<256x128xf32>
    %cst_24 = arith.constant 0.000000e+00 : f32
    %50 = vector.broadcast %cst_24 : f32 to vector<256x128xf32>
    %51 = arith.select %29, %49, %50 : vector<256x128xi1>, vector<256x128xf32>
    %c255_i32_25 = arith.constant 255 : i32
    %52 = tpu.dynamic_rotate %48 by %c255_i32_25 dim 0 : vector<256x128xf32>, i32 -> vector<256x128xf32>
    %cst_26 = arith.constant 0.000000e+00 : f32
    %53 = vector.broadcast %cst_26 : f32 to vector<256x128xf32>
    %54 = arith.select %31, %52, %53 : vector<256x128xi1>, vector<256x128xf32>
    %55 = tpu.concatenate %51, %48, %54 in 1 : vector<256x128xf32>, vector<256x128xf32>, vector<256x128xf32> -> vector<256x384xf32>
    %56 = arith.truncf %55 : vector<256x384xf32> to vector<256x384xbf16>
    %c1 = arith.constant 1 : index
    %c0_27 = arith.constant 0 : index
    %c0_28 = arith.constant 0 : index
    %57 = vector.load %arg7[%c1, %c0_27, %c0_28] : memref<3x384x128xbf16, #tpu.memory_space<vmem>>, vector<1x384x128xbf16>
    %58 = vector.shape_cast %57 : vector<1x384x128xbf16> to vector<384x128xbf16>
    %cst_29 = arith.constant dense<0.000000e+00> : vector<256x128xf32>
    %59 = tpu.matmul %56, %58, %cst_29 {dimension_numbers = #tpu.dot_dimension_numbers<[1], [0], [0], [1], [0, 0, 1, 1], [], []>} : vector<256x384xbf16>, vector<384x128xbf16>, vector<256x128xf32> -> vector<256x128xf32>
    %60 = arith.addf %46, %59 : vector<256x128xf32>
    %61 = vector.extract_strided_slice %25 {offsets = [2, 0, 0], sizes = [16, 16, 128], strides = [1, 1, 1]} : vector<18x16x128xf32> to vector<16x16x128xf32>
    %62 = vector.shape_cast %61 : vector<16x16x128xf32> to vector<256x128xf32>
    %c1_i32_30 = arith.constant 1 : i32
    %63 = tpu.dynamic_rotate %62 by %c1_i32_30 dim 0 : vector<256x128xf32>, i32 -> vector<256x128xf32>
    %cst_31 = arith.constant 0.000000e+00 : f32
    %64 = vector.broadcast %cst_31 : f32 to vector<256x128xf32>
    %65 = arith.select %29, %63, %64 : vector<256x128xi1>, vector<256x128xf32>
    %c255_i32_32 = arith.constant 255 : i32
    %66 = tpu.dynamic_rotate %62 by %c255_i32_32 dim 0 : vector<256x128xf32>, i32 -> vector<256x128xf32>
    %cst_33 = arith.constant 0.000000e+00 : f32
    %67 = vector.broadcast %cst_33 : f32 to vector<256x128xf32>
    %68 = arith.select %31, %66, %67 : vector<256x128xi1>, vector<256x128xf32>
    %69 = tpu.concatenate %65, %62, %68 in 1 : vector<256x128xf32>, vector<256x128xf32>, vector<256x128xf32> -> vector<256x384xf32>
    %70 = arith.truncf %69 : vector<256x384xf32> to vector<256x384xbf16>
    %c2 = arith.constant 2 : index
    %c0_34 = arith.constant 0 : index
    %c0_35 = arith.constant 0 : index
    %71 = vector.load %arg7[%c2, %c0_34, %c0_35] : memref<3x384x128xbf16, #tpu.memory_space<vmem>>, vector<1x384x128xbf16>
    %72 = vector.shape_cast %71 : vector<1x384x128xbf16> to vector<384x128xbf16>
    %cst_36 = arith.constant dense<0.000000e+00> : vector<256x128xf32>
    %73 = tpu.matmul %70, %72, %cst_36 {dimension_numbers = #tpu.dot_dimension_numbers<[1], [0], [0], [1], [0, 0, 1, 1], [], []>} : vector<256x384xbf16>, vector<384x128xbf16>, vector<256x128xf32> -> vector<256x128xf32>
    %74 = arith.addf %60, %73 : vector<256x128xf32>
    %c0_37 = arith.constant 0 : index
    %c0_38 = arith.constant 0 : index
    %75 = vector.load %arg8[%c0_37, %c0_38] : memref<1x128xf32, #tpu.memory_space<vmem>>, vector<1x128xf32>
    %76 = vector.broadcast %75 : vector<1x128xf32> to vector<256x128xf32>
    %77 = arith.mulf %74, %76 : vector<256x128xf32>
    %c0_39 = arith.constant 0 : index
    %c0_40 = arith.constant 0 : index
    %78 = vector.load %arg9[%c0_39, %c0_40] : memref<1x128xf32, #tpu.memory_space<vmem>>, vector<1x128xf32>
    %79 = vector.broadcast %78 : vector<1x128xf32> to vector<256x128xf32>
    %80 = arith.addf %77, %79 : vector<256x128xf32>
    %cst_41 = arith.constant 0.000000e+00 : f32
    %81 = vector.broadcast %cst_41 : f32 to vector<256x128xf32>
    %82 = arith.maximumf %80, %81 : vector<256x128xf32>
    %83 = arith.truncf %82 : vector<256x128xf32> to vector<256x128xbf16>
    %c0_42 = arith.constant 0 : index
    %c0_43 = arith.constant 0 : index
    %84 = vector.load %arg10[%c0_42, %c0_43] : memref<128x128xbf16, #tpu.memory_space<vmem>>, vector<128x128xbf16>
    %cst_44 = arith.constant dense<0.000000e+00> : vector<256x128xf32>
    %85 = tpu.matmul %83, %84, %cst_44 {dimension_numbers = #tpu.dot_dimension_numbers<[1], [0], [0], [1], [0, 0, 1, 1], [], []>} : vector<256x128xbf16>, vector<128x128xbf16>, vector<256x128xf32> -> vector<256x128xf32>
    %86 = arith.addf %85, %3 : vector<256x128xf32>
    %87 = vector.shape_cast %86 : vector<256x128xf32> to vector<16x16x128xf32>
    %c0_45 = arith.constant 0 : index
    %c0_46 = arith.constant 0 : index
    %c0_47 = arith.constant 0 : index
    %c0_48 = arith.constant 0 : index
    %88 = vector.load %arg11[%c0_45, %c0_46, %c0_47, %c0_48] : memref<1x16x16x128xf32, #tpu.memory_space<vmem>>, vector<1x16x16x128xf32>
    %89 = vector.shape_cast %88 : vector<1x16x16x128xf32> to vector<16x16x128xf32>
    %90 = vector.shape_cast %87 : vector<16x16x128xf32> to vector<1x16x16x128xf32>
    tpu.vector_store %arg11[%c0_45, %c0_46, %c0_47, %c0_48], %90 {strides = array<i32>} : memref<1x16x16x128xf32, #tpu.memory_space<vmem>>, vector<1x16x16x128xf32>,
    return
  }
  func.func @transform_0(%arg0: i32) -> (i32, i32, i32, i32) {
    %c0_i32 = arith.constant 0 : i32
    %c0_i32_0 = arith.constant 0 : i32
    %c0_i32_1 = arith.constant 0 : i32
    %c0_i32_2 = arith.constant 0 : i32
    return %arg0, %c0_i32, %c0_i32_0, %c0_i32_1 : i32, i32, i32, i32
  }
  func.func @transform_1(%arg0: i32) -> (i32, i32) {
    %c0_i32 = arith.constant 0 : i32
    %c0_i32_0 = arith.constant 0 : i32
    %c0_i32_1 = arith.constant 0 : i32
    return %c0_i32, %c0_i32_0 : i32, i32
  }
  func.func @transform_2(%arg0: i32) -> (i32, i32) {
    %c0_i32 = arith.constant 0 : i32
    %c0_i32_0 = arith.constant 0 : i32
    %c0_i32_1 = arith.constant 0 : i32
    return %c0_i32, %c0_i32_0 : i32, i32
  }
  func.func @transform_3(%arg0: i32) -> (i32, i32) {
    %c0_i32 = arith.constant 0 : i32
    %c0_i32_0 = arith.constant 0 : i32
    %c0_i32_1 = arith.constant 0 : i32
    return %c0_i32, %c0_i32_0 : i32, i32
  }
  func.func @transform_4(%arg0: i32) -> (i32, i32) {
    %c0_i32 = arith.constant 0 : i32
    %c0_i32_0 = arith.constant 0 : i32
    %c0_i32_1 = arith.constant 0 : i32
    return %c0_i32, %c0_i32_0 : i32, i32
  }
  func.func @transform_5(%arg0: i32) -> (i32, i32) {
    %c0_i32 = arith.constant 0 : i32
    %c0_i32_0 = arith.constant 0 : i32
    %c0_i32_1 = arith.constant 0 : i32
    return %c0_i32, %c0_i32_0 : i32, i32
  }
  func.func @transform_6(%arg0: i32) -> (i32, i32, i32) {
    %c0_i32 = arith.constant 0 : i32
    %c0_i32_0 = arith.constant 0 : i32
    %c0_i32_1 = arith.constant 0 : i32
    %c0_i32_2 = arith.constant 0 : i32
    return %c0_i32, %c0_i32_0, %c0_i32_1 : i32, i32, i32
  }
  func.func @transform_7(%arg0: i32) -> (i32, i32) {
    %c0_i32 = arith.constant 0 : i32
    %c0_i32_0 = arith.constant 0 : i32
    %c0_i32_1 = arith.constant 0 : i32
    return %c0_i32, %c0_i32_0 : i32, i32
  }
  func.func @transform_8(%arg0: i32) -> (i32, i32) {
    %c0_i32 = arith.constant 0 : i32
    %c0_i32_0 = arith.constant 0 : i32
    %c0_i32_1 = arith.constant 0 : i32
    return %c0_i32, %c0_i32_0 : i32, i32
  }
  func.func @transform_9(%arg0: i32) -> (i32, i32) {
    %c0_i32 = arith.constant 0 : i32
    %c0_i32_0 = arith.constant 0 : i32
    %c0_i32_1 = arith.constant 0 : i32
    return %c0_i32, %c0_i32_0 : i32, i32
  }
  func.func @transform_10(%arg0: i32) -> (i32, i32, i32, i32) {
    %c0_i32 = arith.constant 0 : i32
    %c0_i32_0 = arith.constant 0 : i32
    %c0_i32_1 = arith.constant 0 : i32
    %c0_i32_2 = arith.constant 0 : i32
    return %arg0, %c0_i32, %c0_i32_0, %c0_i32_1 : i32, i32, i32, i32
  }
}

</mosaic_0001>

<llo_original>
// kernel: tpu_custom_call.1
$region0: #{tpu_custom_call.1}
  #allocation0 [shape = 'u32[]', space=smem, size = 0x4, offset = 0x4, fixed_abs, tag = 'smem constant byte address 0x4 - core index']
  #allocation1 [shape = 'u32[144,128]{1,0:T(1,128)}', space=vmem, size = 0x12000, scoped, tag = 'internal scratch']
  %s0 = inlined_call_operand.hbm [shape: bf16[2,16,16,128], index: 0, kind: input, shape index: {}]
  %s1 = inlined_call_operand.vmem [shape: f32[1,128], index: 1, kind: input, shape index: {}]
  %s2 = inlined_call_operand.vmem [shape: f32[1,128], index: 2, kind: input, shape index: {}]
  %s3 = inlined_call_operand.hbm [shape: bf16[128,128], index: 3, kind: input, shape index: {}]
  %s4 = inlined_call_operand.vmem [shape: f32[1,128], index: 4, kind: input, shape index: {}]
  %s5 = inlined_call_operand.vmem [shape: f32[1,128], index: 5, kind: input, shape index: {}]
  %s6 = inlined_call_operand.hbm [shape: bf16[3,384,128], index: 6, kind: input, shape index: {}]
  %s7 = inlined_call_operand.vmem [shape: f32[1,128], index: 7, kind: input, shape index: {}]
  %s8 = inlined_call_operand.vmem [shape: f32[1,128], index: 8, kind: input, shape index: {}]
  %s9 = inlined_call_operand.hbm [shape: bf16[128,128], index: 9, kind: input, shape index: {}]
  %s10 = inlined_call_operand.hbm [shape: f32[2,16,16,128], index: 10, kind: output, shape index: {}]
  %s11 = sld [smem:[#allocation0]]
  $region89: #{tpu_custom_call.1} parent=0
    _
  %s13 = ssub.s32 1, %s11
  %s14 = scalar_select 0, %s13, %s11
  $region1: #{tpu_custom_call.1} parent=0
    #allocation2 [shape = 'u8[131072]{0}', space=vmem, size = 0x20000, scoped, tag = 'input window, operand 0']
    #allocation3 [shape = 's32[2]{0}', space=sflag, size = 0x8, scoped, tag = 'scoped memory for tpu_custom_call.1']
    #allocation4 [shape = 's32[2]{0}', space=sflag, size = 0x8, scoped, tag = 'scoped memory for tpu_custom_call.1']
    #allocation5 [shape = 'u8[32768]{0}', space=vmem, size = 0x8000, scoped, tag = 'input window, operand 3, single buffered']
    #allocation6 [shape = 's32[1]{0}', space=sflag, size = 0x4, scoped, tag = 'scoped memory for tpu_custom_call.1']
    #allocation7 [shape = 'u8[294912]{0}', space=vmem, size = 0x48000, scoped, tag = 'input window, operand 6, single buffered']
    #allocation8 [shape = 'u8[32768]{0}', space=vmem, size = 0x8000, scoped, tag = 'input window, operand 9, single buffered']
    #allocation9 [shape = 's32[1]{0}', space=sflag, size = 0x4, scoped, tag = 'scoped memory for tpu_custom_call.1']
    #allocation10 [shape = 'u8[262144]{0}', space=vmem, size = 0x40000, scoped, tag = 'output window, operand 0']
    %15 = vsyncpa [#allocation3], 0
    %s16 = scalar_lea.sflag [#allocation3], 1
    %17 = vsyncpa %s16, 0
    %18 = vsyncpa [#allocation6], 0
    %19 = vsyncpa [#allocation9], 0
    %20 = vsyncpa [#allocation4], 0
    %s21 = scalar_lea.sflag [#allocation4], 1
    %22 = vsyncpa %s21, 0
    loop: start=0, step=1, limit=4
    $region2: #{tpu_custom_call.1} parent=1 // loop_pre_header
      _
    $region3: #{tpu_custom_call.1} parent=1 // loop_header
      %s24 = sphi 0, %s28
      %p25 = scmp.ge.s32.totalorder %s24, 4
      %s34 = sphi 0, %s36
      %s37 = sphi 0, %s34
      %s38 = sphi 0, %s37
      %s54 = sphi 0, %s38
      %s58 = sphi 0, %s58
      %s60 = sphi 0, %s58
      %s61 = sphi 0, %s60
      %s75 = sphi 0, %s61
      %s79 = sphi 0, %s79
      %s81 = sphi 0, %s79
      %s82 = sphi 0, %s81
      %s96 = sphi 0, %s82
      %s100 = sphi 0, %s100
      %s102 = sphi 0, %s100
      %s103 = sphi 0, %s102
      %s117 = sphi 0, %s103
      %s121 = sphi 0, %s121
      %s123 = sphi 0, %s121
      %s124 = sphi 0, %s123
      %s138 = sphi 0, %s124
      %s142 = sphi 0, %s142
      %s144 = sphi 0, %s142
      %s145 = sphi 0, %s144
      %s159 = sphi 0, %s145
      %s163 = sphi 0, %s163
      %s165 = sphi 0, %s163
      %s166 = sphi 0, %s165
      %s180 = sphi 0, %s166
      %s184 = sphi 0, %s184
      %s186 = sphi 0, %s184
      %s187 = sphi 0, %s186
      %s201 = sphi 0, %s187
      %s205 = sphi 0, %s205
      %s207 = sphi 0, %s205
      %s208 = sphi 0, %s207
      %s222 = sphi 0, %s208
      %s226 = sphi 0, %s226
      %s228 = sphi 0, %s226
      %s229 = sphi 0, %s228
      %s243 = sphi 0, %s229
      %s249 = sphi 0, %s251
      %s252 = sphi 0, %s249
      %s253 = sphi 0, %s252
      %s269 = sphi 0, %s253
    $region4: #{tpu_custom_call.1} parent=1 // loop_header_branch
      %27 = sbr.rel (%p25) target = $region8
    $region5: #{tpu_custom_call.1} parent=1 // loop_body
      %s29 = ssub.s32 %s24, 1
      %s30 = ssub.s32 %s24, 2
      %s31 = sadd.s32 %s24, 1
      %s32 = ssub.s32 %s24, %s31
      %p33 = scmp.eq.s32.totalorder %s32, 0
      %s35 = sadd.s32 %s34, 1
      %s36 = scalar_select %p33, %s34, %s35
      %p39 = pneg %p33
      %p40 = scmp.eq.s32.totalorder %s24, 1
      %p41 = por %p39, %p40
      %p42 = scmp.ne.s32.totalorder %s34, %s37
      %p43 = scmp.eq.s32.totalorder %s24, 0
      %p44 = por %p42, %p43
      %p45 = scmp.ne.s32.totalorder %s34, %s37
      %p46 = scmp.eq.s32.totalorder %s29, 1
      %p47 = por %p45, %p46
      %p48 = scmp.ne.s32.totalorder %s37, %s38
      %p49 = scmp.eq.s32.totalorder %s29, 0
      %p50 = por %p48, %p49
      %p51 = scmp.ne.s32.totalorder %s37, %s38
      %p52 = scmp.eq.s32.totalorder %s30, 1
      %p53 = por %p51, %p52
      %p55 = scmp.ne.s32.totalorder %s38, %s54
      %p56 = scmp.eq.s32.totalorder %s30, 0
      %p57 = por %p55, %p56
      %s59 = sadd.s32 %s58, 1
      %p62 = scmp.eq.s32.totalorder %s24, 1
      %p63 = scmp.ne.s32.totalorder %s58, %s60
      %p64 = scmp.eq.s32.totalorder %s24, 0
      %p65 = por %p63, %p64
      %p66 = scmp.ne.s32.totalorder %s58, %s60
      %p67 = scmp.eq.s32.totalorder %s29, 1
      %p68 = por %p66, %p67
      %p69 = scmp.ne.s32.totalorder %s60, %s61
      %p70 = scmp.eq.s32.totalorder %s29, 0
      %p71 = por %p69, %p70
      %p72 = scmp.ne.s32.totalorder %s60, %s61
      %p73 = scmp.eq.s32.totalorder %s30, 1
      %p74 = por %p72, %p73
      %p76 = scmp.ne.s32.totalorder %s61, %s75
      %p77 = scmp.eq.s32.totalorder %s30, 0
      %p78 = por %p76, %p77
      %s80 = sadd.s32 %s79, 1
      %p83 = scmp.eq.s32.totalorder %s24, 1
      %p84 = scmp.ne.s32.totalorder %s79, %s81
      %p85 = scmp.eq.s32.totalorder %s24, 0
      %p86 = por %p84, %p85
      %p87 = scmp.ne.s32.totalorder %s79, %s81
      %p88 = scmp.eq.s32.totalorder %s29, 1
      %p89 = por %p87, %p88
      %p90 = scmp.ne.s32.totalorder %s81, %s82
      %p91 = scmp.eq.s32.totalorder %s29, 0
      %p92 = por %p90, %p91
      %p93 = scmp.ne.s32.totalorder %s81, %s82
      %p94 = scmp.eq.s32.totalorder %s30, 1
      %p95 = por %p93, %p94
      %p97 = scmp.ne.s32.totalorder %s82, %s96
      %p98 = scmp.eq.s32.totalorder %s30, 0
      %p99 = por %p97, %p98
      %s101 = sadd.s32 %s100, 1
      %p104 = scmp.eq.s32.totalorder %s24, 1
      %p105 = scmp.ne.s32.totalorder %s100, %s102
      %p106 = scmp.eq.s32.totalorder %s24, 0
      %p107 = por %p105, %p106
      %p108 = scmp.ne.s32.totalorder %s100, %s102
      %p109 = scmp.eq.s32.totalorder %s29, 1
      %p110 = por %p108, %p109
      %p111 = scmp.ne.s32.totalorder %s102, %s103
      %p112 = scmp.eq.s32.totalorder %s29, 0
      %p113 = por %p111, %p112
      %p114 = scmp.ne.s32.totalorder %s102, %s103
      %p115 = scmp.eq.s32.totalorder %s30, 1
      %p116 = por %p114, %p115
      %p118 = scmp.ne.s32.totalorder %s103, %s117
      %p119 = scmp.eq.s32.totalorder %s30, 0
      %p120 = por %p118, %p119
      %s122 = sadd.s32 %s121, 1
      %p125 = scmp.eq.s32.totalorder %s24, 1
      %p126 = scmp.ne.s32.totalorder %s121, %s123
      %p127 = scmp.eq.s32.totalorder %s24, 0
      %p128 = por %p126, %p127
      %p129 = scmp.ne.s32.totalorder %s121, %s123
      %p130 = scmp.eq.s32.totalorder %s29, 1
      %p131 = por %p129, %p130
      %p132 = scmp.ne.s32.totalorder %s123, %s124
      %p133 = scmp.eq.s32.totalorder %s29, 0
      %p134 = por %p132, %p133
      %p135 = scmp.ne.s32.totalorder %s123, %s124
      %p136 = scmp.eq.s32.totalorder %s30, 1
      %p137 = por %p135, %p136
      %p139 = scmp.ne.s32.totalorder %s124, %s138
      %p140 = scmp.eq.s32.totalorder %s30, 0
      %p141 = por %p139, %p140
      %s143 = sadd.s32 %s142, 1
      %p146 = scmp.eq.s32.totalorder %s24, 1
      %p147 = scmp.ne.s32.totalorder %s142, %s144
      %p148 = scmp.eq.s32.totalorder %s24, 0
      %p149 = por %p147, %p148
      %p150 = scmp.ne.s32.totalorder %s142, %s144
      %p151 = scmp.eq.s32.totalorder %s29, 1
      %p152 = por %p150, %p151
      %p153 = scmp.ne.s32.totalorder %s144, %s145
      %p154 = scmp.eq.s32.totalorder %s29, 0
      %p155 = por %p153, %p154
      %p156 = scmp.ne.s32.totalorder %s144, %s145
      %p157 = scmp.eq.s32.totalorder %s30, 1
      %p158 = por %p156, %p157
      %p160 = scmp.ne.s32.totalorder %s145, %s159
      %p161 = scmp.eq.s32.totalorder %s30, 0
      %p162 = por %p160, %p161
      %s164 = sadd.s32 %s163, 1
      %p167 = scmp.eq.s32.totalorder %s24, 1
      %p168 = scmp.ne.s32.totalorder %s163, %s165
      %p169 = scmp.eq.s32.totalorder %s24, 0
      %p170 = por %p168, %p169
      %p171 = scmp.ne.s32.totalorder %s163, %s165
      %p172 = scmp.eq.s32.totalorder %s29, 1
      %p173 = por %p171, %p172
      %p174 = scmp.ne.s32.totalorder %s165, %s166
      %p175 = scmp.eq.s32.totalorder %s29, 0
      %p176 = por %p174, %p175
      %p177 = scmp.ne.s32.totalorder %s165, %s166
      %p178 = scmp.eq.s32.totalorder %s30, 1
      %p179 = por %p177, %p178
      %p181 = scmp.ne.s32.totalorder %s166, %s180
      %p182 = scmp.eq.s32.totalorder %s30, 0
      %p183 = por %p181, %p182
      %s185 = sadd.s32 %s184, 1
      %p188 = scmp.eq.s32.totalorder %s24, 1
      %p189 = scmp.ne.s32.totalorder %s184, %s186
      %p190 = scmp.eq.s32.totalorder %s24, 0
      %p191 = por %p189, %p190
      %p192 = scmp.ne.s32.totalorder %s184, %s186
      %p193 = scmp.eq.s32.totalorder %s29, 1
      %p194 = por %p192, %p193
      %p195 = scmp.ne.s32.totalorder %s186, %s187
      %p196 = scmp.eq.s32.totalorder %s29, 0
      %p197 = por %p195, %p196
      %p198 = scmp.ne.s32.totalorder %s186, %s187
      %p199 = scmp.eq.s32.totalorder %s30, 1
      %p200 = por %p198, %p199
      %p202 = scmp.ne.s32.totalorder %s187, %s201
      %p203 = scmp.eq.s32.totalorder %s30, 0
      %p204 = por %p202, %p203
      %s206 = sadd.s32 %s205, 1
      %p209 = scmp.eq.s32.totalorder %s24, 1
      %p210 = scmp.ne.s32.totalorder %s205, %s207
      %p211 = scmp.eq.s32.totalorder %s24, 0
      %p212 = por %p210, %p211
      %p213 = scmp.ne.s32.totalorder %s205, %s207
      %p214 = scmp.eq.s32.totalorder %s29, 1
      %p215 = por %p213, %p214
      %p216 = scmp.ne.s32.totalorder %s207, %s208
      %p217 = scmp.eq.s32.totalorder %s29, 0
      %p218 = por %p216, %p217
      %p219 = scmp.ne.s32.totalorder %s207, %s208
      %p220 = scmp.eq.s32.totalorder %s30, 1
      %p221 = por %p219, %p220
      %p223 = scmp.ne.s32.totalorder %s208, %s222
      %p224 = scmp.eq.s32.totalorder %s30, 0
      %p225 = por %p223, %p224
      %s227 = sadd.s32 %s226, 1
      %p230 = scmp.eq.s32.totalorder %s24, 1
      %p231 = scmp.ne.s32.totalorder %s226, %s228
      %p232 = scmp.eq.s32.totalorder %s24, 0
      %p233 = por %p231, %p232
      %p234 = scmp.ne.s32.totalorder %s226, %s228
      %p235 = scmp.eq.s32.totalorder %s29, 1
      %p236 = por %p234, %p235
      %p237 = scmp.ne.s32.totalorder %s228, %s229
      %p238 = scmp.eq.s32.totalorder %s29, 0
      %p239 = por %p237, %p238
      %p240 = scmp.ne.s32.totalorder %s228, %s229
      %p241 = scmp.eq.s32.totalorder %s30, 1
      %p242 = por %p240, %p241
      %p244 = scmp.ne.s32.totalorder %s229, %s243
      %p245 = scmp.eq.s32.totalorder %s30, 0
      %p246 = por %p244, %p245
      %s247 = ssub.s32 %s24, %s31
      %p248 = scmp.eq.s32.totalorder %s247, 0
      %s250 = sadd.s32 %s249, 1
      %s251 = scalar_select %p248, %s249, %s250
      %p254 = pneg %p248
      %p255 = scmp.eq.s32.totalorder %s24, 1
      %p256 = por %p254, %p255
      %p257 = scmp.ne.s32.totalorder %s249, %s252
      %p258 = scmp.eq.s32.totalorder %s24, 0
      %p259 = por %p257, %p258
      %p260 = scmp.ne.s32.totalorder %s249, %s252
      %p261 = scmp.eq.s32.totalorder %s29, 1
      %p262 = por %p260, %p261
      %p263 = scmp.ne.s32.totalorder %s252, %s253
      %p264 = scmp.eq.s32.totalorder %s29, 0
      %p265 = por %p263, %p264
      %p266 = scmp.ne.s32.totalorder %s252, %s253
      %p267 = scmp.eq.s32.totalorder %s30, 1
      %p268 = por %p266, %p267
      %p270 = scmp.ne.s32.totalorder %s253, %s269
      %p271 = scmp.eq.s32.totalorder %s30, 0
      %p272 = por %p270, %p271
      %p273 = scmp.le.s32.totalorder 1, %s24
      %p274 = scmp.lt.s32.totalorder %s24, 3
      %p275 = pnand %p273, %p274
      %p276 = pneg %p275
      // Predicated region
      $region9: #{tpu_custom_call.1} parent=5 // pred_check
        _
      $region10: #{tpu_custom_call.1} parent=5 // pred_check_branch
        %278 = sbr.rel (%p275) target = $region12
      $region11: #{tpu_custom_call.1} parent=5 // pred_region
        %s279 = ssub.s32 %s24, 1
        // Predicated region
        $region13: #{tpu_custom_call.1} parent=11 // pred_check
          %p280 = pneg %p71
        $region14: #{tpu_custom_call.1} parent=11 // pred_check_branch
          %282 = sbr.rel (%p280) target = $region16
        $region15: #{tpu_custom_call.1} parent=11 // pred_region
          _
        $region16: #{tpu_custom_call.1} parent=11 // pred_fallthru
          _
        // Predicated region
        $region17: #{tpu_custom_call.1} parent=11 // pred_check
          %p283 = pneg %p92
        $region18: #{tpu_custom_call.1} parent=11 // pred_check_branch
          %285 = sbr.rel (%p283) target = $region20
        $region19: #{tpu_custom_call.1} parent=11 // pred_region
          _
        $region20: #{tpu_custom_call.1} parent=11 // pred_fallthru
          _
        // Predicated region
        $region21: #{tpu_custom_call.1} parent=11 // pred_check
          %p286 = pneg %p113
        $region22: #{tpu_custom_call.1} parent=11 // pred_check_branch
          %288 = sbr.rel (%p286) target = $region24
        $region23: #{tpu_custom_call.1} parent=11 // pred_region
          %s290 = ssub.s32 1024, 1024
          %291 = vsyncadd [#allocation6], %s290
          %s292 = sshll.u32 [#allocation5], 4
          %s293 = int_to_ptr.vmem [resolvable:$true] %s292
          %298 = dma.hbm_to_vmem [thread:$0]  %s3, 1024, %s293, [#allocation6], 64, 64, 4
        $region24: #{tpu_custom_call.1} parent=11 // pred_fallthru
          _
        // Predicated region
        $region25: #{tpu_custom_call.1} parent=11 // pred_check
          %p299 = pneg %p134
        $region26: #{tpu_custom_call.1} parent=11 // pred_check_branch
          %301 = sbr.rel (%p299) target = $region28
        $region27: #{tpu_custom_call.1} parent=11 // pred_region
          _
        $region28: #{tpu_custom_call.1} parent=11 // pred_fallthru
          _
        // Predicated region
        $region29: #{tpu_custom_call.1} parent=11 // pred_check
          %p302 = pneg %p155
        $region30: #{tpu_custom_call.1} parent=11 // pred_check_branch
          %304 = sbr.rel (%p302) target = $region32
        $region31: #{tpu_custom_call.1} parent=11 // pred_region
          _
        $region32: #{tpu_custom_call.1} parent=11 // pred_fallthru
          _
        // Predicated region
        $region33: #{tpu_custom_call.1} parent=11 // pred_check
          %p305 = pneg %p176
        $region34: #{tpu_custom_call.1} parent=11 // pred_check_branch
          %307 = sbr.rel (%p305) target = $region36
        $region35: #{tpu_custom_call.1} parent=11 // pred_region
          %s309 = ssub.s32 9216, 9216
          %310 = vsyncadd [#allocation6], %s309
          %s311 = sshll.u32 [#allocation7], 4
          %s312 = int_to_ptr.vmem [resolvable:$true] %s311
          %317 = dma.hbm_to_vmem [thread:$0]  %s6, 9216, %s312, [#allocation6], 64, 64, 4
        $region36: #{tpu_custom_call.1} parent=11 // pred_fallthru
          _
        // Predicated region
        $region37: #{tpu_custom_call.1} parent=11 // pred_check
          %p318 = pneg %p197
        $region38: #{tpu_custom_call.1} parent=11 // pred_check_branch
          %320 = sbr.rel (%p318) target = $region40
        $region39: #{tpu_custom_call.1} parent=11 // pred_region
          _
        $region40: #{tpu_custom_call.1} parent=11 // pred_fallthru
          _
        // Predicated region
        $region41: #{tpu_custom_call.1} parent=11 // pred_check
          %p321 = pneg %p218
        $region42: #{tpu_custom_call.1} parent=11 // pred_check_branch
          %323 = sbr.rel (%p321) target = $region44
        $region43: #{tpu_custom_call.1} parent=11 // pred_region
          _
        $region44: #{tpu_custom_call.1} parent=11 // pred_fallthru
          _
        // Predicated region
        $region45: #{tpu_custom_call.1} parent=11 // pred_check
          %p324 = pneg %p239
        $region46: #{tpu_custom_call.1} parent=11 // pred_check_branch
          %326 = sbr.rel (%p324) target = $region48
        $region47: #{tpu_custom_call.1} parent=11 // pred_region
          %s328 = ssub.s32 1024, 1024
          %329 = vsyncadd [#allocation9], %s328
          %s330 = sshll.u32 [#allocation8], 4
          %s331 = int_to_ptr.vmem [resolvable:$true] %s330
          %336 = dma.hbm_to_vmem [thread:$0]  %s9, 1024, %s331, [#allocation9], 64, 64, 4
        $region48: #{tpu_custom_call.1} parent=11 // pred_fallthru
          _
      $region12: #{tpu_custom_call.1} parent=5 // pred_fallthru
        _
      %p337 = scmp.lt.s32.totalorder %s24, 2
      // Predicated region
      $region49: #{tpu_custom_call.1} parent=5 // pred_check
        %p338 = pneg %p337
      $region50: #{tpu_custom_call.1} parent=5 // pred_check_branch
        %340 = sbr.rel (%p338) target = $region52
      $region51: #{tpu_custom_call.1} parent=5 // pred_region
        // Predicated region
        $region53: #{tpu_custom_call.1} parent=51 // pred_check
          %p341 = pneg %p44
        $region54: #{tpu_custom_call.1} parent=51 // pred_check_branch
          %343 = sbr.rel (%p341) target = $region56
        $region55: #{tpu_custom_call.1} parent=51 // pred_region
          %s344 = sand.u32 %s34, 1
          %s345 = scalar_lea.sflag [#allocation3], %s344
          %s346 = sand.u32 %s34, 1
          %s347 = smul.addr %s346, 128
          %s348 = scalar_lea.vmem [#allocation2], %s347
          %s350 = ssub.s32 2048, 2048
          %351 = vsyncadd %s345, %s350
          %s352 = smul.addr %s24, 32
          %s353 = smul.addr %s352, 64
          %s354 = scalar_lea.hbm %s0, %s353
          %s355 = sshll.u32 %s348, 4
          %s356 = int_to_ptr.vmem [resolvable:$true] %s355
          %361 = dma.hbm_to_vmem [thread:$0]  %s354, 2048, %s356, %s345, 64, 64, 4
        $region56: #{tpu_custom_call.1} parent=51 // pred_fallthru
          _
      $region52: #{tpu_custom_call.1} parent=5 // pred_fallthru
        _
      %p362 = scmp.le.s32.totalorder 1, %s24
      %p363 = scmp.lt.s32.totalorder %s24, 3
      %p364 = pnand %p362, %p363
      %p365 = pneg %p364
      // Predicated region
      $region57: #{tpu_custom_call.1} parent=5 // pred_check
        _
      $region58: #{tpu_custom_call.1} parent=5 // pred_check_branch
        %367 = sbr.rel (%p364) target = $region60
      $region59: #{tpu_custom_call.1} parent=5 // pred_region
        %s368 = ssub.s32 %s24, 1
        %s369 = sand.u32 %s37, 1
        %s370 = scalar_lea.sflag [#allocation3], %s369
        %s371 = sand.u32 %s37, 1
        %s372 = smul.addr %s371, 128
        %s373 = scalar_lea.vmem [#allocation2], %s372
        // Predicated region
        $region61: #{tpu_custom_call.1} parent=59 // pred_check
          %p374 = pneg %p50
        $region62: #{tpu_custom_call.1} parent=59 // pred_check_branch
          %376 = sbr.rel (%p374) target = $region64
        $region63: #{tpu_custom_call.1} parent=59 // pred_region
          %377 = dma.done %s370, 2048
        $region64: #{tpu_custom_call.1} parent=59 // pred_fallthru
          _
        // Predicated region
        $region65: #{tpu_custom_call.1} parent=59 // pred_check
          %p378 = pneg %p113
        $region66: #{tpu_custom_call.1} parent=59 // pred_check_branch
          %380 = sbr.rel (%p378) target = $region68
        $region67: #{tpu_custom_call.1} parent=59 // pred_region
          %381 = dma.done [#allocation6], 1024
        $region68: #{tpu_custom_call.1} parent=59 // pred_fallthru
          _
        // Predicated region
        $region69: #{tpu_custom_call.1} parent=59 // pred_check
          %p382 = pneg %p176
        $region70: #{tpu_custom_call.1} parent=59 // pred_check_branch
          %384 = sbr.rel (%p382) target = $region72
        $region71: #{tpu_custom_call.1} parent=59 // pred_region
          %385 = dma.done [#allocation6], 9216
        $region72: #{tpu_custom_call.1} parent=59 // pred_fallthru
          _
        // Predicated region
        $region73: #{tpu_custom_call.1} parent=59 // pred_check
          %p386 = pneg %p239
        $region74: #{tpu_custom_call.1} parent=59 // pred_check_branch
          %388 = sbr.rel (%p386) target = $region76
        $region75: #{tpu_custom_call.1} parent=59 // pred_region
          %389 = dma.done [#allocation9], 1024
        $region76: #{tpu_custom_call.1} parent=59 // pred_fallthru
          _
        %s390 = sand.u32 %s37, 1
        %s391 = scalar_lea.sflag [#allocation3], %s390
        %s392 = sand.u32 %s37, 1
        %s393 = smul.addr %s392, 128
        %s394 = scalar_lea.vmem [#allocation2], %s393
        %p395 = pneg %p50
        %p396 = pneg %p47
        %p397 = pneg %p71
        %p398 = pneg %p68
        %p399 = pneg %p92
        %p400 = pneg %p89
        %p401 = pneg %p113
        %p402 = pneg %p110
        %p403 = pneg %p134
        %p404 = pneg %p131
        %p405 = pneg %p155
        %p406 = pneg %p152
        %p407 = pneg %p176
        %p408 = pneg %p173
        %p409 = pneg %p197
        %p410 = pneg %p194
        %p411 = pneg %p218
        %p412 = pneg %p215
        %p413 = pneg %p239
        %p414 = pneg %p236
        %p415 = pneg %p265
        %p416 = pneg %p262
        %s417 = sand.u32 %s252, 1
        %s418 = scalar_lea.sflag [#allocation4], %s417
        %s419 = sand.u32 %s252, 1
        %s420 = smul.addr %s419, 256
        %s421 = scalar_lea.vmem [#allocation10], %s420
        %v423 = vld [vmem:[%s373] sm:$0xf]
        %v424 = vld [vmem:[%s373 + $0x4] sm:$0xf]
        %v425 = vld [vmem:[%s373 + $0x8] sm:$0xf]
        %v426 = vld [vmem:[%s373 + $0xc] sm:$0xf]
        %v427 = vld [vmem:[%s373 + $0x10] sm:$0xf]
        %v428 = vld [vmem:[%s373 + $0x14] sm:$0xf]
        %v429 = vld [vmem:[%s373 + $0x18] sm:$0xf]
        %v430 = vld [vmem:[%s373 + $0x1c] sm:$0xf]
        %v431 = vld [vmem:[%s373 + $0x20] sm:$0xf]
        %v432 = vld [vmem:[%s373 + $0x24] sm:$0xf]
        %v433 = vld [vmem:[%s373 + $0x28] sm:$0xf]
        %v434 = vld [vmem:[%s373 + $0x2c] sm:$0xf]
        %v435 = vld [vmem:[%s373 + $0x30] sm:$0xf]
        %v436 = vld [vmem:[%s373 + $0x34] sm:$0xf]
        %v437 = vld [vmem:[%s373 + $0x38] sm:$0xf]
        %v438 = vld [vmem:[%s373 + $0x3c] sm:$0xf]
        %v439 = vld [vmem:[%s373 + $0x40] sm:$0xf]
        %v440 = vld [vmem:[%s373 + $0x44] sm:$0xf]
        %v441 = vld [vmem:[%s373 + $0x48] sm:$0xf]
        %v442 = vld [vmem:[%s373 + $0x4c] sm:$0xf]
        %v443 = vld [vmem:[%s373 + $0x50] sm:$0xf]
        %v444 = vld [vmem:[%s373 + $0x54] sm:$0xf]
        %v445 = vld [vmem:[%s373 + $0x58] sm:$0xf]
        %v446 = vld [vmem:[%s373 + $0x5c] sm:$0xf]
        %v447 = vld [vmem:[%s373 + $0x60] sm:$0xf]
        %v448 = vld [vmem:[%s373 + $0x64] sm:$0xf]
        %v449 = vld [vmem:[%s373 + $0x68] sm:$0xf]
        %v450 = vld [vmem:[%s373 + $0x6c] sm:$0xf]
        %v451 = vld [vmem:[%s373 + $0x70] sm:$0xf]
        %v452 = vld [vmem:[%s373 + $0x74] sm:$0xf]
        %v453 = vld [vmem:[%s373 + $0x78] sm:$0xf]
        %v454 = vld [vmem:[%s373 + $0x7c] sm:$0xf]
        %v455 = vunpack.c.l.bf16 %v423
        %v456 = vunpack.c.l.bf16 %v424
        %v457 = vunpack.c.l.bf16 %v425
        %v458 = vunpack.c.l.bf16 %v426
        %v459 = vunpack.c.l.bf16 %v427
        %v460 = vunpack.c.l.bf16 %v428
        %v461 = vunpack.c.l.bf16 %v429
        %v462 = vunpack.c.l.bf16 %v430
        %v463 = vunpack.c.l.bf16 %v431
        %v464 = vunpack.c.l.bf16 %v432
        %v465 = vunpack.c.l.bf16 %v433
        %v466 = vunpack.c.l.bf16 %v434
        %v467 = vunpack.c.l.bf16 %v435
        %v468 = vunpack.c.l.bf16 %v436
        %v469 = vunpack.c.l.bf16 %v437
        %v470 = vunpack.c.l.bf16 %v438
        %v471 = vunpack.c.l.bf16 %v439
        %v472 = vunpack.c.l.bf16 %v440
        %v473 = vunpack.c.l.bf16 %v441
        %v474 = vunpack.c.l.bf16 %v442
        %v475 = vunpack.c.l.bf16 %v443
        %v476 = vunpack.c.l.bf16 %v444
        %v477 = vunpack.c.l.bf16 %v445
        %v478 = vunpack.c.l.bf16 %v446
        %v479 = vunpack.c.l.bf16 %v447
        %v480 = vunpack.c.l.bf16 %v448
        %v481 = vunpack.c.l.bf16 %v449
        %v482 = vunpack.c.l.bf16 %v450
        %v483 = vunpack.c.l.bf16 %v451
        %v484 = vunpack.c.l.bf16 %v452
        %v485 = vunpack.c.l.bf16 %v453
        %v486 = vunpack.c.l.bf16 %v454
        %v487 = vld [vmem:[%s1] sm:$0x1]
        %v489 = vlaneseq
        %v490 = vshrl.u32 %v489, 7
        %v491 = vsub.s32 0, %v490
        %v492 = vrot.slane %v487, %v491
        %v494 = vmul.f32 %v455, %v492
        %v495 = vmul.f32 %v456, %v492
        %v496 = vmul.f32 %v457, %v492
        %v497 = vmul.f32 %v458, %v492
        %v498 = vmul.f32 %v459, %v492
        %v499 = vmul.f32 %v460, %v492
        %v500 = vmul.f32 %v461, %v492
        %v501 = vmul.f32 %v462, %v492
        %v502 = vmul.f32 %v463, %v492
        %v503 = vmul.f32 %v464, %v492
        %v504 = vmul.f32 %v465, %v492
        %v505 = vmul.f32 %v466, %v492
        %v506 = vmul.f32 %v467, %v492
        %v507 = vmul.f32 %v468, %v492
        %v508 = vmul.f32 %v469, %v492
        %v509 = vmul.f32 %v470, %v492
        %v510 = vmul.f32 %v471, %v492
        %v511 = vmul.f32 %v472, %v492
        %v512 = vmul.f32 %v473, %v492
        %v513 = vmul.f32 %v474, %v492
        %v514 = vmul.f32 %v475, %v492
        %v515 = vmul.f32 %v476, %v492
        %v516 = vmul.f32 %v477, %v492
        %v517 = vmul.f32 %v478, %v492
        %v518 = vmul.f32 %v479, %v492
        %v519 = vmul.f32 %v480, %v492
        %v520 = vmul.f32 %v481, %v492
        %v521 = vmul.f32 %v482, %v492
        %v522 = vmul.f32 %v483, %v492
        %v523 = vmul.f32 %v484, %v492
        %v524 = vmul.f32 %v485, %v492
        %v525 = vmul.f32 %v486, %v492
        %v526 = vld [vmem:[%s2] sm:$0x1]
        %v528 = vlaneseq
        %v529 = vshrl.u32 %v528, 7
        %v530 = vsub.s32 0, %v529
        %v531 = vrot.slane %v526, %v530
        %v533 = vadd.f32 %v494, %v531
        %v534 = vadd.f32 %v495, %v531
        %v535 = vadd.f32 %v496, %v531
        %v536 = vadd.f32 %v497, %v531
        %v537 = vadd.f32 %v498, %v531
        %v538 = vadd.f32 %v499, %v531
        %v539 = vadd.f32 %v500, %v531
        %v540 = vadd.f32 %v501, %v531
        %v541 = vadd.f32 %v502, %v531
        %v542 = vadd.f32 %v503, %v531
        %v543 = vadd.f32 %v504, %v531
        %v544 = vadd.f32 %v505, %v531
        %v545 = vadd.f32 %v506, %v531
        %v546 = vadd.f32 %v507, %v531
        %v547 = vadd.f32 %v508, %v531
        %v548 = vadd.f32 %v509, %v531
        %v549 = vadd.f32 %v510, %v531
        %v550 = vadd.f32 %v511, %v531
        %v551 = vadd.f32 %v512, %v531
        %v552 = vadd.f32 %v513, %v531
        %v553 = vadd.f32 %v514, %v531
        %v554 = vadd.f32 %v515, %v531
        %v555 = vadd.f32 %v516, %v531
        %v556 = vadd.f32 %v517, %v531
        %v557 = vadd.f32 %v518, %v531
        %v558 = vadd.f32 %v519, %v531
        %v559 = vadd.f32 %v520, %v531
        %v560 = vadd.f32 %v521, %v531
        %v561 = vadd.f32 %v522, %v531
        %v562 = vadd.f32 %v523, %v531
        %v563 = vadd.f32 %v524, %v531
        %v564 = vadd.f32 %v525, %v531
        %v565 = vmax.f32 %v533, 0.0
        %v566 = vmax.f32 %v534, 0.0
        %v567 = vmax.f32 %v535, 0.0
        %v568 = vmax.f32 %v536, 0.0
        %v569 = vmax.f32 %v537, 0.0
        %v570 = vmax.f32 %v538, 0.0
        %v571 = vmax.f32 %v539, 0.0
        %v572 = vmax.f32 %v540, 0.0
        %v573 = vmax.f32 %v541, 0.0
        %v574 = vmax.f32 %v542, 0.0
        %v575 = vmax.f32 %v543, 0.0
        %v576 = vmax.f32 %v544, 0.0
        %v577 = vmax.f32 %v545, 0.0
        %v578 = vmax.f32 %v546, 0.0
        %v579 = vmax.f32 %v547, 0.0
        %v580 = vmax.f32 %v548, 0.0
        %v581 = vmax.f32 %v549, 0.0
        %v582 = vmax.f32 %v550, 0.0
        %v583 = vmax.f32 %v551, 0.0
        %v584 = vmax.f32 %v552, 0.0
        %v585 = vmax.f32 %v553, 0.0
        %v586 = vmax.f32 %v554, 0.0
        %v587 = vmax.f32 %v555, 0.0
        %v588 = vmax.f32 %v556, 0.0
        %v589 = vmax.f32 %v557, 0.0
        %v590 = vmax.f32 %v558, 0.0
        %v591 = vmax.f32 %v559, 0.0
        %v592 = vmax.f32 %v560, 0.0
        %v593 = vmax.f32 %v561, 0.0
        %v594 = vmax.f32 %v562, 0.0
        %v595 = vmax.f32 %v563, 0.0
        %v596 = vmax.f32 %v564, 0.0
        %v597 = vpack.c.bf16 %v566, %v565
        %v598 = vpack.c.bf16 %v568, %v567
        %v599 = vpack.c.bf16 %v570, %v569
        %v600 = vpack.c.bf16 %v572, %v571
        %v601 = vpack.c.bf16 %v574, %v573
        %v602 = vpack.c.bf16 %v576, %v575
        %v603 = vpack.c.bf16 %v578, %v577
        %v604 = vpack.c.bf16 %v580, %v579
        %v605 = vpack.c.bf16 %v582, %v581
        %v606 = vpack.c.bf16 %v584, %v583
        %v607 = vpack.c.bf16 %v586, %v585
        %v608 = vpack.c.bf16 %v588, %v587
        %v609 = vpack.c.bf16 %v590, %v589
        %v610 = vpack.c.bf16 %v592, %v591
        %v611 = vpack.c.bf16 %v594, %v593
        %v612 = vpack.c.bf16 %v596, %v595
        %v613 = vld [vmem:[#allocation5] sm:$0xf]
        %v614 = vld [vmem:[#allocation5 + $0x4] sm:$0xf]
        %v615 = vld [vmem:[#allocation5 + $0x8] sm:$0xf]
        %v616 = vld [vmem:[#allocation5 + $0xc] sm:$0xf]
        %v617 = vld [vmem:[#allocation5 + $0x10] sm:$0xf]
        %v618 = vld [vmem:[#allocation5 + $0x14] sm:$0xf]
        %v619 = vld [vmem:[#allocation5 + $0x18] sm:$0xf]
        %v620 = vld [vmem:[#allocation5 + $0x1c] sm:$0xf]
        %v621 = vld [vmem:[#allocation5 + $0x20] sm:$0xf]
        %v622 = vld [vmem:[#allocation5 + $0x24] sm:$0xf]
        %v623 = vld [vmem:[#allocation5 + $0x28] sm:$0xf]
        %v624 = vld [vmem:[#allocation5 + $0x2c] sm:$0xf]
        %v625 = vld [vmem:[#allocation5 + $0x30] sm:$0xf]
        %v626 = vld [vmem:[#allocation5 + $0x34] sm:$0xf]
        %v627 = vld [vmem:[#allocation5 + $0x38] sm:$0xf]
        %v628 = vld [vmem:[#allocation5 + $0x3c] sm:$0xf]
        %v645 = vunpack.c.l.b16 %v613
        %v646 = vunpack.c.l.b16 %v614
        %v647 = vunpack.c.l.b16 %v615
        %v648 = vunpack.c.l.b16 %v616
        %v649 = vunpack.c.l.b16 %v617
        %v650 = vunpack.c.l.b16 %v618
        %v651 = vunpack.c.l.b16 %v619
        %v652 = vunpack.c.l.b16 %v620
        %v653 = vunpack.c.l.b16 %v621
        %v654 = vunpack.c.l.b16 %v622
        %v655 = vunpack.c.l.b16 %v623
        %v656 = vunpack.c.l.b16 %v624
        %v657 = vunpack.c.l.b16 %v625
        %v658 = vunpack.c.l.b16 %v626
        %v659 = vunpack.c.l.b16 %v627
        %v660 = vunpack.c.l.b16 %v628
        %v661 = vpack.c.b16 %v646, %v645
        %v662 = vpack.c.b16 %v648, %v647
        %v663 = vpack.c.b16 %v650, %v649
        %v664 = vpack.c.b16 %v652, %v651
        %v665 = vpack.c.b16 %v654, %v653
        %v666 = vpack.c.b16 %v656, %v655
        %v667 = vpack.c.b16 %v658, %v657
        %v668 = vpack.c.b16 %v660, %v659
        %677 = vmatprep.subr.bf16.mxu0 0
        %678 = vmatpush1.bf16.msra.mxu0 %v668
        %679 = vmatprep.subr.bf16.mxu0 0
        %680 = vmatpush1.bf16.msra.mxu0 %v667
        %681 = vmatprep.subr.bf16.mxu0 0
        %682 = vmatpush1.bf16.msra.mxu0 %v666
        %683 = vmatprep.subr.bf16.mxu0 0
        %684 = vmatpush1.bf16.msra.mxu0 %v665
        %685 = vmatprep.subr.bf16.mxu0 0
        %686 = vmatpush1.bf16.msra.mxu0 %v664
        %687 = vmatprep.subr.bf16.mxu0 0
        %688 = vmatpush1.bf16.msra.mxu0 %v663
        %689 = vmatprep.subr.bf16.mxu0 0
        %690 = vmatpush1.bf16.msra.mxu0 %v662
        %691 = vmatprep.subr.bf16.mxu0 0
        %692 = vmatpush1.bf16.msra.mxu0 %v661
        %693 = vmatprep.subr.bf16.mxu0 0
        %694 = vmatpush2.bf16.msra.mxu0 0
        %695 = vmatprep.subr.bf16.mxu0 0
        %696 = vmatpush2.bf16.msra.mxu0 0
        %697 = vmatprep.subr.bf16.mxu0 0
        %698 = vmatpush2.bf16.msra.mxu0 0
        %699 = vmatprep.subr.bf16.mxu0 0
        %700 = vmatpush2.bf16.msra.mxu0 0
        %701 = vmatprep.subr.bf16.mxu0 0
        %702 = vmatpush2.bf16.msra.mxu0 0
        %703 = vmatprep.subr.bf16.mxu0 0
        %704 = vmatpush2.bf16.msra.mxu0 0
        %705 = vmatprep.subr.bf16.mxu0 0
        %706 = vmatpush2.bf16.msra.mxu0 0
        %707 = vmatprep.subr.bf16.mxu0 0
        %708 = vmatpush2.bf16.msra.mxu0 0
        %709 = vmatprep.mubr.bf16.mxu0 0
        %710 = vmatmul.mubr.bf16.gmra.mxu0 %v597
        %v711 = vpop.f32.mrf.mxu0
        %v712 = vadd.f32 0.0, %v711
        %v713 = vpop.f32.mrf.mxu0
        %v714 = vpop.f32.mrf.mxu0
        %v715 = vadd.f32 0.0, %v714
        %v716 = vpop.f32.mrf.mxu0
        %717 = vmatprep.mubr.bf16.mxu0 0
        %718 = vmatmul.mubr.bf16.gmra.mxu0 %v598
        %v719 = vpop.f32.mrf.mxu0
        %v720 = vadd.f32 0.0, %v719
        %v721 = vpop.f32.mrf.mxu0
        %v722 = vpop.f32.mrf.mxu0
        %v723 = vadd.f32 0.0, %v722
        %v724 = vpop.f32.mrf.mxu0
        %725 = vmatprep.mubr.bf16.mxu0 0
        %726 = vmatmul.mubr.bf16.gmra.mxu0 %v599
        %v727 = vpop.f32.mrf.mxu0
        %v728 = vadd.f32 0.0, %v727
        %v729 = vpop.f32.mrf.mxu0
        %v730 = vpop.f32.mrf.mxu0
        %v731 = vadd.f32 0.0, %v730
        %v732 = vpop.f32.mrf.mxu0
        %733 = vmatprep.mubr.bf16.mxu0 0
        %734 = vmatmul.mubr.bf16.gmra.mxu0 %v600
        %v735 = vpop.f32.mrf.mxu0
        %v736 = vadd.f32 0.0, %v735
        %v737 = vpop.f32.mrf.mxu0
        %v738 = vpop.f32.mrf.mxu0
        %v739 = vadd.f32 0.0, %v738
        %v740 = vpop.f32.mrf.mxu0
        %741 = vmatprep.mubr.bf16.mxu0 0
        %742 = vmatmul.mubr.bf16.gmra.mxu0 %v601
        %v743 = vpop.f32.mrf.mxu0
        %v744 = vadd.f32 0.0, %v743
        %v745 = vpop.f32.mrf.mxu0
        %v746 = vpop.f32.mrf.mxu0
        %v747 = vadd.f32 0.0, %v746
        %v748 = vpop.f32.mrf.mxu0
        %749 = vmatprep.mubr.bf16.mxu0 0
        %750 = vmatmul.mubr.bf16.gmra.mxu0 %v602
        %v751 = vpop.f32.mrf.mxu0
        %v752 = vadd.f32 0.0, %v751
        %v753 = vpop.f32.mrf.mxu0
        %v754 = vpop.f32.mrf.mxu0
        %v755 = vadd.f32 0.0, %v754
        %v756 = vpop.f32.mrf.mxu0
        %757 = vmatprep.mubr.bf16.mxu0 0
        %758 = vmatmul.mubr.bf16.gmra.mxu0 %v603
        %v759 = vpop.f32.mrf.mxu0
        %v760 = vadd.f32 0.0, %v759
        %v761 = vpop.f32.mrf.mxu0
        %v762 = vpop.f32.mrf.mxu0
        %v763 = vadd.f32 0.0, %v762
        %v764 = vpop.f32.mrf.mxu0
        %765 = vmatprep.mubr.bf16.mxu0 0
        %766 = vmatmul.mubr.bf16.gmra.mxu0 %v604
        %v767 = vpop.f32.mrf.mxu0
        %v768 = vadd.f32 0.0, %v767
        %v769 = vpop.f32.mrf.mxu0
        %v770 = vpop.f32.mrf.mxu0
        %v771 = vadd.f32 0.0, %v770
        %v772 = vpop.f32.mrf.mxu0
        %773 = vmatprep.mubr.bf16.mxu0 0
        %774 = vmatmul.mubr.bf16.gmra.mxu0 %v605
        %v775 = vpop.f32.mrf.mxu0
        %v776 = vadd.f32 0.0, %v775
        %v777 = vpop.f32.mrf.mxu0
        %v778 = vpop.f32.mrf.mxu0
        %v779 = vadd.f32 0.0, %v778
        %v780 = vpop.f32.mrf.mxu0
        %781 = vmatprep.mubr.bf16.mxu0 0
        %782 = vmatmul.mubr.bf16.gmra.mxu0 %v606
        %v783 = vpop.f32.mrf.mxu0
        %v784 = vadd.f32 0.0, %v783
        %v785 = vpop.f32.mrf.mxu0
        %v786 = vpop.f32.mrf.mxu0
        %v787 = vadd.f32 0.0, %v786
        %v788 = vpop.f32.mrf.mxu0
        %789 = vmatprep.mubr.bf16.mxu0 0
        %790 = vmatmul.mubr.bf16.gmra.mxu0 %v607
        %v791 = vpop.f32.mrf.mxu0
        %v792 = vadd.f32 0.0, %v791
        %v793 = vpop.f32.mrf.mxu0
        %v794 = vpop.f32.mrf.mxu0
        %v795 = vadd.f32 0.0, %v794
        %v796 = vpop.f32.mrf.mxu0
        %797 = vmatprep.mubr.bf16.mxu0 0
        %798 = vmatmul.mubr.bf16.gmra.mxu0 %v608
        %v799 = vpop.f32.mrf.mxu0
        %v800 = vadd.f32 0.0, %v799
        %v801 = vpop.f32.mrf.mxu0
        %v802 = vpop.f32.mrf.mxu0
        %v803 = vadd.f32 0.0, %v802
        %v804 = vpop.f32.mrf.mxu0
        %805 = vmatprep.mubr.bf16.mxu0 0
        %806 = vmatmul.mubr.bf16.gmra.mxu0 %v609
        %v807 = vpop.f32.mrf.mxu0
        %v808 = vadd.f32 0.0, %v807
        %v809 = vpop.f32.mrf.mxu0
        %v810 = vpop.f32.mrf.mxu0
        %v811 = vadd.f32 0.0, %v810
        %v812 = vpop.f32.mrf.mxu0
        %813 = vmatprep.mubr.bf16.mxu0 0
        %814 = vmatmul.mubr.bf16.gmra.mxu0 %v610
        %v815 = vpop.f32.mrf.mxu0
        %v816 = vadd.f32 0.0, %v815
        %v817 = vpop.f32.mrf.mxu0
        %v818 = vpop.f32.mrf.mxu0
        %v819 = vadd.f32 0.0, %v818
        %v820 = vpop.f32.mrf.mxu0
        %821 = vmatprep.mubr.bf16.mxu0 0
        %822 = vmatmul.mubr.bf16.gmra.mxu0 %v611
        %v823 = vpop.f32.mrf.mxu0
        %v824 = vadd.f32 0.0, %v823
        %v825 = vpop.f32.mrf.mxu0
        %v826 = vpop.f32.mrf.mxu0
        %v827 = vadd.f32 0.0, %v826
        %v828 = vpop.f32.mrf.mxu0
        %829 = vmatprep.mubr.bf16.mxu0 0
        %830 = vmatmul.mubr.bf16.gmra.mxu0 %v612
        %v831 = vpop.f32.mrf.mxu0
        %v832 = vadd.f32 0.0, %v831
        %v833 = vpop.f32.mrf.mxu0
        %v834 = vpop.f32.mrf.mxu0
        %v835 = vadd.f32 0.0, %v834
        %v836 = vpop.f32.mrf.mxu0
        %837 = vdwg.mxu0
        %v838 = vld [vmem:[%s4] sm:$0x1]
        %v840 = vlaneseq
        %v841 = vshrl.u32 %v840, 7
        %v842 = vsub.s32 0, %v841
        %v843 = vrot.slane %v838, %v842
        %v845 = vmul.f32 %v712, %v843
        %v846 = vmul.f32 %v715, %v843
        %v847 = vmul.f32 %v720, %v843
        %v848 = vmul.f32 %v723, %v843
        %v849 = vmul.f32 %v728, %v843
        %v850 = vmul.f32 %v731, %v843
        %v851 = vmul.f32 %v736, %v843
        %v852 = vmul.f32 %v739, %v843
        %v853 = vmul.f32 %v744, %v843
        %v854 = vmul.f32 %v747, %v843
        %v855 = vmul.f32 %v752, %v843
        %v856 = vmul.f32 %v755, %v843
        %v857 = vmul.f32 %v760, %v843
        %v858 = vmul.f32 %v763, %v843
        %v859 = vmul.f32 %v768, %v843
        %v860 = vmul.f32 %v771, %v843
        %v861 = vmul.f32 %v776, %v843
        %v862 = vmul.f32 %v779, %v843
        %v863 = vmul.f32 %v784, %v843
        %v864 = vmul.f32 %v787, %v843
        %v865 = vmul.f32 %v792, %v843
        %v866 = vmul.f32 %v795, %v843
        %v867 = vmul.f32 %v800, %v843
        %v868 = vmul.f32 %v803, %v843
        %v869 = vmul.f32 %v808, %v843
        %v870 = vmul.f32 %v811, %v843
        %v871 = vmul.f32 %v816, %v843
        %v872 = vmul.f32 %v819, %v843
        %v873 = vmul.f32 %v824, %v843
        %v874 = vmul.f32 %v827, %v843
        %v875 = vmul.f32 %v832, %v843
        %v876 = vmul.f32 %v835, %v843
        %v877 = vld [vmem:[%s5] sm:$0x1]
        %v879 = vlaneseq
        %v880 = vshrl.u32 %v879, 7
        %v881 = vsub.s32 0, %v880
        %v882 = vrot.slane %v877, %v881
        %v884 = vadd.f32 %v845, %v882
        %v885 = vadd.f32 %v846, %v882
        %v886 = vadd.f32 %v847, %v882
        %v887 = vadd.f32 %v848, %v882
        %v888 = vadd.f32 %v849, %v882
        %v889 = vadd.f32 %v850, %v882
        %v890 = vadd.f32 %v851, %v882
        %v891 = vadd.f32 %v852, %v882
        %v892 = vadd.f32 %v853, %v882
        %v893 = vadd.f32 %v854, %v882
        %v894 = vadd.f32 %v855, %v882
        %v895 = vadd.f32 %v856, %v882
        %v896 = vadd.f32 %v857, %v882
        %v897 = vadd.f32 %v858, %v882
        %v898 = vadd.f32 %v859, %v882
        %v899 = vadd.f32 %v860, %v882
        %v900 = vadd.f32 %v861, %v882
        %v901 = vadd.f32 %v862, %v882
        %v902 = vadd.f32 %v863, %v882
        %v903 = vadd.f32 %v864, %v882
        %v904 = vadd.f32 %v865, %v882
        %v905 = vadd.f32 %v866, %v882
        %v906 = vadd.f32 %v867, %v882
        %v907 = vadd.f32 %v868, %v882
        %v908 = vadd.f32 %v869, %v882
        %v909 = vadd.f32 %v870, %v882
        %v910 = vadd.f32 %v871, %v882
        %v911 = vadd.f32 %v872, %v882
        %v912 = vadd.f32 %v873, %v882
        %v913 = vadd.f32 %v874, %v882
        %v914 = vadd.f32 %v875, %v882
        %v915 = vadd.f32 %v876, %v882
        %v916 = vmax.f32 %v884, 0.0
        %v917 = vmax.f32 %v885, 0.0
        %v918 = vmax.f32 %v886, 0.0
        %v919 = vmax.f32 %v887, 0.0
        %v920 = vmax.f32 %v888, 0.0
        %v921 = vmax.f32 %v889, 0.0
        %v922 = vmax.f32 %v890, 0.0
        %v923 = vmax.f32 %v891, 0.0
        %v924 = vmax.f32 %v892, 0.0
        %v925 = vmax.f32 %v893, 0.0
        %v926 = vmax.f32 %v894, 0.0
        %v927 = vmax.f32 %v895, 0.0
        %v928 = vmax.f32 %v896, 0.0
        %v929 = vmax.f32 %v897, 0.0
        %v930 = vmax.f32 %v898, 0.0
        %v931 = vmax.f32 %v899, 0.0
        %v932 = vmax.f32 %v900, 0.0
        %v933 = vmax.f32 %v901, 0.0
        %v934 = vmax.f32 %v902, 0.0
        %v935 = vmax.f32 %v903, 0.0
        %v936 = vmax.f32 %v904, 0.0
        %v937 = vmax.f32 %v905, 0.0
        %v938 = vmax.f32 %v906, 0.0
        %v939 = vmax.f32 %v907, 0.0
        %v940 = vmax.f32 %v908, 0.0
        %v941 = vmax.f32 %v909, 0.0
        %v942 = vmax.f32 %v910, 0.0
        %v943 = vmax.f32 %v911, 0.0
        %v944 = vmax.f32 %v912, 0.0
        %v945 = vmax.f32 %v913, 0.0
        %v946 = vmax.f32 %v914, 0.0
        %v947 = vmax.f32 %v915, 0.0
        %v948 = vlaneseq
        %v949 = vshrl.u32 %v948, 7
        %v950 = vadd.s32 %v949, 8
        %vm951 = vcmp.ne.s32.totalorder %v949, 0
        %vm952 = vcmp.ne.s32.totalorder %v950, 0
        %vm953 = vcmp.ne.s32.totalorder %v949, 15
        %vm954 = vcmp.ne.s32.totalorder %v950, 15
        %v955 = vrot.slane %v916, 7
        %v956 = vrot.slane %v917, 7
        %v957 = vrot.slane %v918, 7
        %v958 = vrot.slane %v919, 7
        %v959 = vrot.slane %v920, 7
        %v960 = vrot.slane %v921, 7
        %v961 = vrot.slane %v922, 7
        %v962 = vrot.slane %v923, 7
        %v963 = vrot.slane %v924, 7
        %v964 = vrot.slane %v925, 7
        %v965 = vrot.slane %v926, 7
        %v966 = vrot.slane %v927, 7
        %v967 = vrot.slane %v928, 7
        %v968 = vrot.slane %v929, 7
        %v969 = vrot.slane %v930, 7
        %v970 = vrot.slane %v931, 7
        %v971 = vrot.slane %v932, 7
        %v972 = vrot.slane %v933, 7
        %v973 = vrot.slane %v934, 7
        %v974 = vrot.slane %v935, 7
        %v975 = vrot.slane %v936, 7
        %v976 = vrot.slane %v937, 7
        %v977 = vrot.slane %v938, 7
        %v978 = vrot.slane %v939, 7
        %v979 = vrot.slane %v940, 7
        %v980 = vrot.slane %v941, 7
        %v981 = vrot.slane %v942, 7
        %v982 = vrot.slane %v943, 7
        %v983 = vrot.slane %v944, 7
        %v984 = vrot.slane %v945, 7
        %vm985 = vcmp.lt.s32.totalorder %v949, 1
        %v986 = vsel %vm985, %v983, %v984
        %v987 = vsel %vm985, %v982, %v983
        %v988 = vsel %vm985, %v981, %v982
        %v989 = vsel %vm985, %v980, %v981
        %v990 = vsel %vm985, %v979, %v980
        %v991 = vsel %vm985, %v978, %v979
        %v992 = vsel %vm985, %v977, %v978
        %v993 = vsel %vm985, %v976, %v977
        %v994 = vsel %vm985, %v975, %v976
        %v995 = vsel %vm985, %v974, %v975
        %v996 = vsel %vm985, %v973, %v974
        %v997 = vsel %vm985, %v972, %v973
        %v998 = vsel %vm985, %v971, %v972
        %v999 = vsel %vm985, %v970, %v971
        %v1000 = vsel %vm985, %v969, %v970
        %v1001 = vsel %vm985, %v968, %v969
        %v1002 = vsel %vm985, %v967, %v968
        %v1003 = vsel %vm985, %v966, %v967
        %v1004 = vsel %vm985, %v965, %v966
        %v1005 = vsel %vm985, %v964, %v965
        %v1006 = vsel %vm985, %v963, %v964
        %v1007 = vsel %vm985, %v962, %v963
        %v1008 = vsel %vm985, %v961, %v962
        %v1009 = vsel %vm985, %v960, %v961
        %v1010 = vsel %vm985, %v959, %v960
        %v1011 = vsel %vm985, %v958, %v959
        %v1012 = vsel %vm985, %v957, %v958
        %v1013 = vsel %vm985, %v956, %v957
        %v1014 = vsel %vm985, %v955, %v956
        %v1015 = vsel %vm985, 0.0, %v955
        %v1016 = vsel %vm985, %v984, 0.0
        %v1017 = vsel %vm951, %v1016, 0.0
        %v1018 = vsel %vm952, 0.0, 0.0
        %v1019 = vsel %vm951, %v1015, 0.0
        %v1020 = vsel %vm952, %v1014, 0.0
        %v1021 = vsel %vm951, %v1013, 0.0
        %v1022 = vsel %vm952, %v1012, 0.0
        %v1023 = vsel %vm951, %v1011, 0.0
        %v1024 = vsel %vm952, %v1010, 0.0
        %v1025 = vsel %vm951, %v1009, 0.0
        %v1026 = vsel %vm952, %v1008, 0.0
        %v1027 = vsel %vm951, %v1007, 0.0
        %v1028 = vsel %vm952, %v1006, 0.0
        %v1029 = vsel %vm951, %v1005, 0.0
        %v1030 = vsel %vm952, %v1004, 0.0
        %v1031 = vsel %vm951, %v1003, 0.0
        %v1032 = vsel %vm952, %v1002, 0.0
        %v1033 = vsel %vm951, %v1001, 0.0
        %v1034 = vsel %vm952, %v1000, 0.0
        %v1035 = vsel %vm951, %v999, 0.0
        %v1036 = vsel %vm952, %v998, 0.0
        %v1037 = vsel %vm951, %v997, 0.0
        %v1038 = vsel %vm952, %v996, 0.0
        %v1039 = vsel %vm951, %v995, 0.0
        %v1040 = vsel %vm952, %v994, 0.0
        %v1041 = vsel %vm951, %v993, 0.0
        %v1042 = vsel %vm952, %v992, 0.0
        %v1043 = vsel %vm951, %v991, 0.0
        %v1044 = vsel %vm952, %v990, 0.0
        %v1045 = vsel %vm951, %v989, 0.0
        %v1046 = vsel %vm952, %v988, 0.0
        %v1047 = vsel %vm951, %v987, 0.0
        %v1048 = vsel %vm952, %v986, 0.0
        %v1049 = vrot.slane %v916, 1
        %v1050 = vrot.slane %v917, 1
        %v1051 = vrot.slane %v918, 1
        %v1052 = vrot.slane %v919, 1
        %v1053 = vrot.slane %v920, 1
        %v1054 = vrot.slane %v921, 1
        %v1055 = vrot.slane %v922, 1
        %v1056 = vrot.slane %v923, 1
        %v1057 = vrot.slane %v924, 1
        %v1058 = vrot.slane %v925, 1
        %v1059 = vrot.slane %v926, 1
        %v1060 = vrot.slane %v927, 1
        %v1061 = vrot.slane %v928, 1
        %v1062 = vrot.slane %v929, 1
        %v1063 = vrot.slane %v930, 1
        %v1064 = vrot.slane %v931, 1
        %v1065 = vrot.slane %v932, 1
        %v1066 = vrot.slane %v933, 1
        %v1067 = vrot.slane %v934, 1
        %v1068 = vrot.slane %v935, 1
        %v1069 = vrot.slane %v936, 1
        %v1070 = vrot.slane %v937, 1
        %v1071 = vrot.slane %v938, 1
        %v1072 = vrot.slane %v939, 1
        %v1073 = vrot.slane %v940, 1
        %v1074 = vrot.slane %v941, 1
        %v1075 = vrot.slane %v942, 1
        %v1076 = vrot.slane %v943, 1
        %v1077 = vrot.slane %v944, 1
        %v1078 = vrot.slane %v945, 1
        %vm1079 = vcmp.lt.s32.totalorder %v949, 7
        %v1080 = vsel %vm1079, %v1077, %v1078
        %v1081 = vsel %vm1079, %v1076, %v1077
        %v1082 = vsel %vm1079, %v1075, %v1076
        %v1083 = vsel %vm1079, %v1074, %v1075
        %v1084 = vsel %vm1079, %v1073, %v1074
        %v1085 = vsel %vm1079, %v1072, %v1073
        %v1086 = vsel %vm1079, %v1071, %v1072
        %v1087 = vsel %vm1079, %v1070, %v1071
        %v1088 = vsel %vm1079, %v1069, %v1070
        %v1089 = vsel %vm1079, %v1068, %v1069
        %v1090 = vsel %vm1079, %v1067, %v1068
        %v1091 = vsel %vm1079, %v1066, %v1067
        %v1092 = vsel %vm1079, %v1065, %v1066
        %v1093 = vsel %vm1079, %v1064, %v1065
        %v1094 = vsel %vm1079, %v1063, %v1064
        %v1095 = vsel %vm1079, %v1062, %v1063
        %v1096 = vsel %vm1079, %v1061, %v1062
        %v1097 = vsel %vm1079, %v1060, %v1061
        %v1098 = vsel %vm1079, %v1059, %v1060
        %v1099 = vsel %vm1079, %v1058, %v1059
        %v1100 = vsel %vm1079, %v1057, %v1058
        %v1101 = vsel %vm1079, %v1056, %v1057
        %v1102 = vsel %vm1079, %v1055, %v1056
        %v1103 = vsel %vm1079, %v1054, %v1055
        %v1104 = vsel %vm1079, %v1053, %v1054
        %v1105 = vsel %vm1079, %v1052, %v1053
        %v1106 = vsel %vm1079, %v1051, %v1052
        %v1107 = vsel %vm1079, %v1050, %v1051
        %v1108 = vsel %vm1079, %v1049, %v1050
        %v1109 = vsel %vm1079, 0.0, %v1049
        %v1110 = vsel %vm1079, %v1078, 0.0
        %v1111 = vsel %vm953, 0.0, 0.0
        %v1112 = vsel %vm954, %v1109, 0.0
        %v1113 = vsel %vm953, %v1108, 0.0
        %v1114 = vsel %vm954, %v1107, 0.0
        %v1115 = vsel %vm953, %v1106, 0.0
        %v1116 = vsel %vm954, %v1105, 0.0
        %v1117 = vsel %vm953, %v1104, 0.0
        %v1118 = vsel %vm954, %v1103, 0.0
        %v1119 = vsel %vm953, %v1102, 0.0
        %v1120 = vsel %vm954, %v1101, 0.0
        %v1121 = vsel %vm953, %v1100, 0.0
        %v1122 = vsel %vm954, %v1099, 0.0
        %v1123 = vsel %vm953, %v1098, 0.0
        %v1124 = vsel %vm954, %v1097, 0.0
        %v1125 = vsel %vm953, %v1096, 0.0
        %v1126 = vsel %vm954, %v1095, 0.0
        %v1127 = vsel %vm953, %v1094, 0.0
        %v1128 = vsel %vm954, %v1093, 0.0
        %v1129 = vsel %vm953, %v1092, 0.0
        %v1130 = vsel %vm954, %v1091, 0.0
        %v1131 = vsel %vm953, %v1090, 0.0
        %v1132 = vsel %vm954, %v1089, 0.0
        %v1133 = vsel %vm953, %v1088, 0.0
        %v1134 = vsel %vm954, %v1087, 0.0
        %v1135 = vsel %vm953, %v1086, 0.0
        %v1136 = vsel %vm954, %v1085, 0.0
        %v1137 = vsel %vm953, %v1084, 0.0
        %v1138 = vsel %vm954, %v1083, 0.0
        %v1139 = vsel %vm953, %v1082, 0.0
        %v1140 = vsel %vm954, %v1081, 0.0
        %v1141 = vsel %vm953, %v1080, 0.0
        %v1142 = vsel %vm954, %v1110, 0.0
        %v1143 = vpack.c.bf16 %v1018, %v1017
        %v1144 = vpack.c.bf16 0.0, 0.0
        %v1145 = vpack.c.bf16 %v1112, %v1111
        %v1146 = vpack.c.bf16 %v1020, %v1019
        %v1147 = vpack.c.bf16 %v917, %v916
        %v1148 = vpack.c.bf16 %v1114, %v1113
        %v1149 = vpack.c.bf16 %v1022, %v1021
        %v1150 = vpack.c.bf16 %v919, %v918
        %v1151 = vpack.c.bf16 %v1116, %v1115
        %v1152 = vpack.c.bf16 %v1024, %v1023
        %v1153 = vpack.c.bf16 %v921, %v920
        %v1154 = vpack.c.bf16 %v1118, %v1117
        %v1155 = vpack.c.bf16 %v1026, %v1025
        %v1156 = vpack.c.bf16 %v923, %v922
        %v1157 = vpack.c.bf16 %v1120, %v1119
        %v1158 = vpack.c.bf16 %v1028, %v1027
        %v1159 = vpack.c.bf16 %v925, %v924
        %v1160 = vpack.c.bf16 %v1122, %v1121
        %v1161 = vpack.c.bf16 %v1030, %v1029
        %v1162 = vpack.c.bf16 %v927, %v926
        %v1163 = vpack.c.bf16 %v1124, %v1123
        %v1164 = vpack.c.bf16 %v1032, %v1031
        %v1165 = vpack.c.bf16 %v929, %v928
        %v1166 = vpack.c.bf16 %v1126, %v1125
        %v1167 = vpack.c.bf16 %v1034, %v1033
        %v1168 = vpack.c.bf16 %v931, %v930
        %v1169 = vpack.c.bf16 %v1128, %v1127
        %v1170 = vpack.c.bf16 %v1036, %v1035
        %v1171 = vpack.c.bf16 %v933, %v932
        %v1172 = vpack.c.bf16 %v1130, %v1129
        %v1173 = vpack.c.bf16 %v1038, %v1037
        %v1174 = vpack.c.bf16 %v935, %v934
        %v1175 = vpack.c.bf16 %v1132, %v1131
        %v1176 = vpack.c.bf16 %v1040, %v1039
        %v1177 = vpack.c.bf16 %v937, %v936
        %v1178 = vpack.c.bf16 %v1134, %v1133
        %v1179 = vpack.c.bf16 %v1042, %v1041
        %v1180 = vpack.c.bf16 %v939, %v938
        %v1181 = vpack.c.bf16 %v1136, %v1135
        %v1182 = vpack.c.bf16 %v1044, %v1043
        %v1183 = vpack.c.bf16 %v941, %v940
        %v1184 = vpack.c.bf16 %v1138, %v1137
        %v1185 = vpack.c.bf16 %v1046, %v1045
        %v1186 = vpack.c.bf16 %v943, %v942
        %v1187 = vpack.c.bf16 %v1140, %v1139
        %v1188 = vpack.c.bf16 %v1048, %v1047
        %v1189 = vpack.c.bf16 %v945, %v944
        %v1190 = vpack.c.bf16 %v1142, %v1141
        %v1191 = vld [vmem:[#allocation7] sm:$0xf]
        %v1192 = vld [vmem:[#allocation7 + $0x4] sm:$0xf]
        %v1193 = vld [vmem:[#allocation7 + $0x8] sm:$0xf]
        %v1194 = vld [vmem:[#allocation7 + $0xc] sm:$0xf]
        %v1195 = vld [vmem:[#allocation7 + $0x10] sm:$0xf]
        %v1196 = vld [vmem:[#allocation7 + $0x14] sm:$0xf]
        %v1197 = vld [vmem:[#allocation7 + $0x18] sm:$0xf]
        %v1198 = vld [vmem:[#allocation7 + $0x1c] sm:$0xf]
        %v1199 = vld [vmem:[#allocation7 + $0x20] sm:$0xf]
        %v1200 = vld [vmem:[#allocation7 + $0x24] sm:$0xf]
        %v1201 = vld [vmem:[#allocation7 + $0x28] sm:$0xf]
        %v1202 = vld [vmem:[#allocation7 + $0x2c] sm:$0xf]
        %v1203 = vld [vmem:[#allocation7 + $0x30] sm:$0xf]
        %v1204 = vld [vmem:[#allocation7 + $0x34] sm:$0xf]
        %v1205 = vld [vmem:[#allocation7 + $0x38] sm:$0xf]
        %v1206 = vld [vmem:[#allocation7 + $0x3c] sm:$0xf]
        %v1207 = vld [vmem:[#allocation7 + $0x40] sm:$0xf]
        %v1208 = vld [vmem:[#allocation7 + $0x44] sm:$0xf]
        %v1209 = vld [vmem:[#allocation7 + $0x48] sm:$0xf]
        %v1210 = vld [vmem:[#allocation7 + $0x4c] sm:$0xf]
        %v1211 = vld [vmem:[#allocation7 + $0x50] sm:$0xf]
        %v1212 = vld [vmem:[#allocation7 + $0x54] sm:$0xf]
        %v1213 = vld [vmem:[#allocation7 + $0x58] sm:$0xf]
        %v1214 = vld [vmem:[#allocation7 + $0x5c] sm:$0xf]
        %v1215 = vld [vmem:[#allocation7 + $0x60] sm:$0xf]
        %v1216 = vld [vmem:[#allocation7 + $0x64] sm:$0xf]
        %v1217 = vld [vmem:[#allocation7 + $0x68] sm:$0xf]
        %v1218 = vld [vmem:[#allocation7 + $0x6c] sm:$0xf]
        %v1219 = vld [vmem:[#allocation7 + $0x70] sm:$0xf]
        %v1220 = vld [vmem:[#allocation7 + $0x74] sm:$0xf]
        %v1221 = vld [vmem:[#allocation7 + $0x78] sm:$0xf]
        %v1222 = vld [vmem:[#allocation7 + $0x7c] sm:$0xf]
        %v1223 = vld [vmem:[#allocation7 + $0x80] sm:$0xf]
        %v1224 = vld [vmem:[#allocation7 + $0x84] sm:$0xf]
        %v1225 = vld [vmem:[#allocation7 + $0x88] sm:$0xf]
        %v1226 = vld [vmem:[#allocation7 + $0x8c] sm:$0xf]
        %v1227 = vld [vmem:[#allocation7 + $0x90] sm:$0xf]
        %v1228 = vld [vmem:[#allocation7 + $0x94] sm:$0xf]
        %v1229 = vld [vmem:[#allocation7 + $0x98] sm:$0xf]
        %v1230 = vld [vmem:[#allocation7 + $0x9c] sm:$0xf]
        %v1231 = vld [vmem:[#allocation7 + $0xa0] sm:$0xf]
        %v1232 = vld [vmem:[#allocation7 + $0xa4] sm:$0xf]
        %v1233 = vld [vmem:[#allocation7 + $0xa8] sm:$0xf]
        %v1234 = vld [vmem:[#allocation7 + $0xac] sm:$0xf]
        %v1235 = vld [vmem:[#allocation7 + $0xb0] sm:$0xf]
        %v1236 = vld [vmem:[#allocation7 + $0xb4] sm:$0xf]
        %v1237 = vld [vmem:[#allocation7 + $0xb8] sm:$0xf]
        %v1238 = vld [vmem:[#allocation7 + $0xbc] sm:$0xf]
        %v1239 = vrot.slane %v946, 7
        %v1240 = vrot.slane %v947, 7
        %v1241 = vsel %vm985, %v1239, %v1240
        %v1242 = vsel %vm985, %v984, %v1239
        %v1243 = vsel %vm985, %v1240, %v955
        %v1244 = vsel %vm951, %v1243, 0.0
        %v1245 = vsel %vm951, %v1242, 0.0
        %v1246 = vsel %vm952, %v1241, 0.0
        %v1247 = vrot.slane %v946, 1
        %v1248 = vrot.slane %v947, 1
        %v1249 = vsel %vm1079, %v1247, %v1248
        %v1250 = vsel %vm1079, %v1078, %v1247
        %v1251 = vsel %vm1079, %v1248, %v1049
        %v1252 = vsel %vm954, %v1250, 0.0
        %v1253 = vsel %vm953, %v1249, 0.0
        %v1254 = vsel %vm954, %v1251, 0.0
        %v1255 = vpack.c.bf16 %v1020, %v1244
        %v1256 = vpack.c.bf16 %v1252, %v1141
        %v1257 = vpack.c.bf16 %v1246, %v1245
        %v1258 = vpack.c.bf16 %v947, %v946
        %v1259 = vpack.c.bf16 %v1254, %v1253
        %s1260 = scalar_lea.vmem [#allocation7], 192
        %v1261 = vld [vmem:[%s1260] sm:$0xf]
        %v1262 = vld [vmem:[%s1260 + $0x4] sm:$0xf]
        %v1263 = vld [vmem:[%s1260 + $0x8] sm:$0xf]
        %v1264 = vld [vmem:[%s1260 + $0xc] sm:$0xf]
        %v1265 = vld [vmem:[%s1260 + $0x10] sm:$0xf]
        %v1266 = vld [vmem:[%s1260 + $0x14] sm:$0xf]
        %v1267 = vld [vmem:[%s1260 + $0x18] sm:$0xf]
        %v1268 = vld [vmem:[%s1260 + $0x1c] sm:$0xf]
        %v1269 = vld [vmem:[%s1260 + $0x20] sm:$0xf]
        %v1270 = vld [vmem:[%s1260 + $0x24] sm:$0xf]
        %v1271 = vld [vmem:[%s1260 + $0x28] sm:$0xf]
        %v1272 = vld [vmem:[%s1260 + $0x2c] sm:$0xf]
        %v1273 = vld [vmem:[%s1260 + $0x30] sm:$0xf]
        %v1274 = vld [vmem:[%s1260 + $0x34] sm:$0xf]
        %v1275 = vld [vmem:[%s1260 + $0x38] sm:$0xf]
        %v1276 = vld [vmem:[%s1260 + $0x3c] sm:$0xf]
        %v1277 = vld [vmem:[%s1260 + $0x40] sm:$0xf]
        %v1278 = vld [vmem:[%s1260 + $0x44] sm:$0xf]
        %v1279 = vld [vmem:[%s1260 + $0x48] sm:$0xf]
        %v1280 = vld [vmem:[%s1260 + $0x4c] sm:$0xf]
        %v1281 = vld [vmem:[%s1260 + $0x50] sm:$0xf]
        %v1282 = vld [vmem:[%s1260 + $0x54] sm:$0xf]
        %v1283 = vld [vmem:[%s1260 + $0x58] sm:$0xf]
        %v1284 = vld [vmem:[%s1260 + $0x5c] sm:$0xf]
        %v1285 = vld [vmem:[%s1260 + $0x60] sm:$0xf]
        %v1286 = vld [vmem:[%s1260 + $0x64] sm:$0xf]
        %v1287 = vld [vmem:[%s1260 + $0x68] sm:$0xf]
        %v1288 = vld [vmem:[%s1260 + $0x6c] sm:$0xf]
        %v1289 = vld [vmem:[%s1260 + $0x70] sm:$0xf]
        %v1290 = vld [vmem:[%s1260 + $0x74] sm:$0xf]
        %v1291 = vld [vmem:[%s1260 + $0x78] sm:$0xf]
        %v1292 = vld [vmem:[%s1260 + $0x7c] sm:$0xf]
        %v1293 = vld [vmem:[%s1260 + $0x80] sm:$0xf]
        %v1294 = vld [vmem:[%s1260 + $0x84] sm:$0xf]
        %v1295 = vld [vmem:[%s1260 + $0x88] sm:$0xf]
        %v1296 = vld [vmem:[%s1260 + $0x8c] sm:$0xf]
        %v1297 = vld [vmem:[%s1260 + $0x90] sm:$0xf]
        %v1298 = vld [vmem:[%s1260 + $0x94] sm:$0xf]
        %v1299 = vld [vmem:[%s1260 + $0x98] sm:$0xf]
        %v1300 = vld [vmem:[%s1260 + $0x9c] sm:$0xf]
        %v1301 = vld [vmem:[%s1260 + $0xa0] sm:$0xf]
        %v1302 = vld [vmem:[%s1260 + $0xa4] sm:$0xf]
        %v1303 = vld [vmem:[%s1260 + $0xa8] sm:$0xf]
        %v1304 = vld [vmem:[%s1260 + $0xac] sm:$0xf]
        %v1305 = vld [vmem:[%s1260 + $0xb0] sm:$0xf]
        %v1306 = vld [vmem:[%s1260 + $0xb4] sm:$0xf]
        %v1307 = vld [vmem:[%s1260 + $0xb8] sm:$0xf]
        %v1308 = vld [vmem:[%s1260 + $0xbc] sm:$0xf]
        %v1357 = vunpack.c.l.b16 %v1261
        %v1358 = vunpack.c.l.b16 %v1262
        %v1359 = vunpack.c.l.b16 %v1263
        %v1360 = vunpack.c.l.b16 %v1264
        %v1361 = vunpack.c.l.b16 %v1265
        %v1362 = vunpack.c.l.b16 %v1266
        %v1363 = vunpack.c.l.b16 %v1267
        %v1364 = vunpack.c.l.b16 %v1268
        %v1365 = vunpack.c.l.b16 %v1269
        %v1366 = vunpack.c.l.b16 %v1270
        %v1367 = vunpack.c.l.b16 %v1271
        %v1368 = vunpack.c.l.b16 %v1272
        %v1369 = vunpack.c.l.b16 %v1273
        %v1370 = vunpack.c.l.b16 %v1274
        %v1371 = vunpack.c.l.b16 %v1275
        %v1372 = vunpack.c.l.b16 %v1276
        %v1373 = vunpack.c.l.b16 %v1277
        %v1374 = vunpack.c.l.b16 %v1278
        %v1375 = vunpack.c.l.b16 %v1279
        %v1376 = vunpack.c.l.b16 %v1280
        %v1377 = vunpack.c.l.b16 %v1281
        %v1378 = vunpack.c.l.b16 %v1282
        %v1379 = vunpack.c.l.b16 %v1283
        %v1380 = vunpack.c.l.b16 %v1284
        %v1381 = vunpack.c.l.b16 %v1285
        %v1382 = vunpack.c.l.b16 %v1286
        %v1383 = vunpack.c.l.b16 %v1287
        %v1384 = vunpack.c.l.b16 %v1288
        %v1385 = vunpack.c.l.b16 %v1289
        %v1386 = vunpack.c.l.b16 %v1290
        %v1387 = vunpack.c.l.b16 %v1291
        %v1388 = vunpack.c.l.b16 %v1292
        %v1389 = vunpack.c.l.b16 %v1293
        %v1390 = vunpack.c.l.b16 %v1294
        %v1391 = vunpack.c.l.b16 %v1295
        %v1392 = vunpack.c.l.b16 %v1296
        %v1393 = vunpack.c.l.b16 %v1297
        %v1394 = vunpack.c.l.b16 %v1298
        %v1395 = vunpack.c.l.b16 %v1299
        %v1396 = vunpack.c.l.b16 %v1300
        %v1397 = vunpack.c.l.b16 %v1301
        %v1398 = vunpack.c.l.b16 %v1302
        %v1399 = vunpack.c.l.b16 %v1303
        %v1400 = vunpack.c.l.b16 %v1304
        %v1401 = vunpack.c.l.b16 %v1305
        %v1402 = vunpack.c.l.b16 %v1306
        %v1403 = vunpack.c.l.b16 %v1307
        %v1404 = vunpack.c.l.b16 %v1308
        %v1405 = vpack.c.b16 %v1358, %v1357
        %v1406 = vpack.c.b16 %v1360, %v1359
        %v1407 = vpack.c.b16 %v1362, %v1361
        %v1408 = vpack.c.b16 %v1364, %v1363
        %v1409 = vpack.c.b16 %v1366, %v1365
        %v1410 = vpack.c.b16 %v1368, %v1367
        %v1411 = vpack.c.b16 %v1370, %v1369
        %v1412 = vpack.c.b16 %v1372, %v1371
        %v1413 = vpack.c.b16 %v1374, %v1373
        %v1414 = vpack.c.b16 %v1376, %v1375
        %v1415 = vpack.c.b16 %v1378, %v1377
        %v1416 = vpack.c.b16 %v1380, %v1379
        %v1417 = vpack.c.b16 %v1382, %v1381
        %v1418 = vpack.c.b16 %v1384, %v1383
        %v1419 = vpack.c.b16 %v1386, %v1385
        %v1420 = vpack.c.b16 %v1388, %v1387
        %v1421 = vpack.c.b16 %v1390, %v1389
        %v1422 = vpack.c.b16 %v1392, %v1391
        %v1423 = vpack.c.b16 %v1394, %v1393
        %v1424 = vpack.c.b16 %v1396, %v1395
        %v1425 = vpack.c.b16 %v1398, %v1397
        %v1426 = vpack.c.b16 %v1400, %v1399
        %v1427 = vpack.c.b16 %v1402, %v1401
        %v1428 = vpack.c.b16 %v1404, %v1403
        %1453 = vmatprep.subr.bf16.mxu0 0
        %1454 = vmatpush1.bf16.msra.mxu0 %v1412
        %1455 = vmatprep.subr.bf16.mxu0 0
        %1456 = vmatpush1.bf16.msra.mxu0 %v1411
        %1457 = vmatprep.subr.bf16.mxu0 0
        %1458 = vmatpush1.bf16.msra.mxu0 %v1410
        %1459 = vmatprep.subr.bf16.mxu0 0
        %1460 = vmatpush1.bf16.msra.mxu0 %v1409
        %1461 = vmatprep.subr.bf16.mxu0 0
        %1462 = vmatpush1.bf16.msra.mxu0 %v1408
        %1463 = vmatprep.subr.bf16.mxu0 0
        %1464 = vmatpush1.bf16.msra.mxu0 %v1407
        %1465 = vmatprep.subr.bf16.mxu0 0
        %1466 = vmatpush1.bf16.msra.mxu0 %v1406
        %1467 = vmatprep.subr.bf16.mxu0 0
        %1468 = vmatpush1.bf16.msra.mxu0 %v1405
        %1469 = vmatprep.subr.bf16.mxu0 0
        %1470 = vmatpush2.bf16.msra.mxu0 %v1420
        %1471 = vmatprep.subr.bf16.mxu0 0
        %1472 = vmatpush2.bf16.msra.mxu0 %v1419
        %1473 = vmatprep.subr.bf16.mxu0 0
        %1474 = vmatpush2.bf16.msra.mxu0 %v1418
        %1475 = vmatprep.subr.bf16.mxu0 0
        %1476 = vmatpush2.bf16.msra.mxu0 %v1417
        %1477 = vmatprep.subr.bf16.mxu0 0
        %1478 = vmatpush2.bf16.msra.mxu0 %v1416
        %1479 = vmatprep.subr.bf16.mxu0 0
        %1480 = vmatpush2.bf16.msra.mxu0 %v1415
        %1481 = vmatprep.subr.bf16.mxu0 0
        %1482 = vmatpush2.bf16.msra.mxu0 %v1414
        %1483 = vmatprep.subr.bf16.mxu0 0
        %1484 = vmatpush2.bf16.msra.mxu0 %v1413
        %1485 = vmatprep.mubr.bf16.mxu0 %v1147
        %1486 = vmatmul.mubr.bf16.gmra.mxu0 %v1255
        %v1487 = vpop.f32.mrf.mxu0
        %v1488 = vadd.f32 0.0, %v1487
        %v1489 = vpop.f32.mrf.mxu0
        %v1490 = vpop.f32.mrf.mxu0
        %v1491 = vadd.f32 0.0, %v1490
        %v1492 = vpop.f32.mrf.mxu0
        %1493 = vmatprep.mubr.bf16.mxu0 %v1150
        %1494 = vmatmul.mubr.bf16.gmra.mxu0 %v1149
        %v1495 = vpop.f32.mrf.mxu0
        %v1496 = vadd.f32 0.0, %v1495
        %v1497 = vpop.f32.mrf.mxu0
        %v1498 = vpop.f32.mrf.mxu0
        %v1499 = vadd.f32 0.0, %v1498
        %v1500 = vpop.f32.mrf.mxu0
        %1501 = vmatprep.mubr.bf16.mxu0 %v1153
        %1502 = vmatmul.mubr.bf16.gmra.mxu0 %v1152
        %v1503 = vpop.f32.mrf.mxu0
        %v1504 = vadd.f32 0.0, %v1503
        %v1505 = vpop.f32.mrf.mxu0
        %v1506 = vpop.f32.mrf.mxu0
        %v1507 = vadd.f32 0.0, %v1506
        %v1508 = vpop.f32.mrf.mxu0
        %1509 = vmatprep.mubr.bf16.mxu0 %v1156
        %1510 = vmatmul.mubr.bf16.gmra.mxu0 %v1155
        %v1511 = vpop.f32.mrf.mxu0
        %v1512 = vadd.f32 0.0, %v1511
        %v1513 = vpop.f32.mrf.mxu0
        %v1514 = vpop.f32.mrf.mxu0
        %v1515 = vadd.f32 0.0, %v1514
        %v1516 = vpop.f32.mrf.mxu0
        %1517 = vmatprep.mubr.bf16.mxu0 %v1159
        %1518 = vmatmul.mubr.bf16.gmra.mxu0 %v1158
        %v1519 = vpop.f32.mrf.mxu0
        %v1520 = vadd.f32 0.0, %v1519
        %v1521 = vpop.f32.mrf.mxu0
        %v1522 = vpop.f32.mrf.mxu0
        %v1523 = vadd.f32 0.0, %v1522
        %v1524 = vpop.f32.mrf.mxu0
        %1525 = vmatprep.mubr.bf16.mxu0 %v1162
        %1526 = vmatmul.mubr.bf16.gmra.mxu0 %v1161
        %v1527 = vpop.f32.mrf.mxu0
        %v1528 = vadd.f32 0.0, %v1527
        %v1529 = vpop.f32.mrf.mxu0
        %v1530 = vpop.f32.mrf.mxu0
        %v1531 = vadd.f32 0.0, %v1530
        %v1532 = vpop.f32.mrf.mxu0
        %1533 = vmatprep.mubr.bf16.mxu0 %v1165
        %1534 = vmatmul.mubr.bf16.gmra.mxu0 %v1164
        %v1535 = vpop.f32.mrf.mxu0
        %v1536 = vadd.f32 0.0, %v1535
        %v1537 = vpop.f32.mrf.mxu0
        %v1538 = vpop.f32.mrf.mxu0
        %v1539 = vadd.f32 0.0, %v1538
        %v1540 = vpop.f32.mrf.mxu0
        %1541 = vmatprep.mubr.bf16.mxu0 %v1168
        %1542 = vmatmul.mubr.bf16.gmra.mxu0 %v1167
        %v1543 = vpop.f32.mrf.mxu0
        %v1544 = vadd.f32 0.0, %v1543
        %v1545 = vpop.f32.mrf.mxu0
        %v1546 = vpop.f32.mrf.mxu0
        %v1547 = vadd.f32 0.0, %v1546
        %v1548 = vpop.f32.mrf.mxu0
        %1549 = vmatprep.mubr.bf16.mxu0 %v1171
        %1550 = vmatmul.mubr.bf16.gmra.mxu0 %v1170
        %v1551 = vpop.f32.mrf.mxu0
        %v1552 = vadd.f32 0.0, %v1551
        %v1553 = vpop.f32.mrf.mxu0
        %v1554 = vpop.f32.mrf.mxu0
        %v1555 = vadd.f32 0.0, %v1554
        %v1556 = vpop.f32.mrf.mxu0
        %1557 = vmatprep.mubr.bf16.mxu0 %v1174
        %1558 = vmatmul.mubr.bf16.gmra.mxu0 %v1173
        %v1559 = vpop.f32.mrf.mxu0
        %v1560 = vadd.f32 0.0, %v1559
        %v1561 = vpop.f32.mrf.mxu0
        %v1562 = vpop.f32.mrf.mxu0
        %v1563 = vadd.f32 0.0, %v1562
        %v1564 = vpop.f32.mrf.mxu0
        %1565 = vmatprep.mubr.bf16.mxu0 %v1177
        %1566 = vmatmul.mubr.bf16.gmra.mxu0 %v1176
        %v1567 = vpop.f32.mrf.mxu0
        %v1568 = vadd.f32 0.0, %v1567
        %v1569 = vpop.f32.mrf.mxu0
        %v1570 = vpop.f32.mrf.mxu0
        %v1571 = vadd.f32 0.0, %v1570
        %v1572 = vpop.f32.mrf.mxu0
        %1573 = vmatprep.mubr.bf16.mxu0 %v1180
        %1574 = vmatmul.mubr.bf16.gmra.mxu0 %v1179
        %v1575 = vpop.f32.mrf.mxu0
        %v1576 = vadd.f32 0.0, %v1575
        %v1577 = vpop.f32.mrf.mxu0
        %v1578 = vpop.f32.mrf.mxu0
        %v1579 = vadd.f32 0.0, %v1578
        %v1580 = vpop.f32.mrf.mxu0
        %1581 = vmatprep.mubr.bf16.mxu0 %v1183
        %1582 = vmatmul.mubr.bf16.gmra.mxu0 %v1182
        %v1583 = vpop.f32.mrf.mxu0
        %v1584 = vadd.f32 0.0, %v1583
        %v1585 = vpop.f32.mrf.mxu0
        %v1586 = vpop.f32.mrf.mxu0
        %v1587 = vadd.f32 0.0, %v1586
        %v1588 = vpop.f32.mrf.mxu0
        %1589 = vmatprep.mubr.bf16.mxu0 %v1186
        %1590 = vmatmul.mubr.bf16.gmra.mxu0 %v1185
        %v1591 = vpop.f32.mrf.mxu0
        %v1592 = vadd.f32 0.0, %v1591
        %v1593 = vpop.f32.mrf.mxu0
        %v1594 = vpop.f32.mrf.mxu0
        %v1595 = vadd.f32 0.0, %v1594
        %v1596 = vpop.f32.mrf.mxu0
        %1597 = vmatprep.mubr.bf16.mxu0 %v1189
        %1598 = vmatmul.mubr.bf16.gmra.mxu0 %v1188
        %v1599 = vpop.f32.mrf.mxu0
        %v1600 = vadd.f32 0.0, %v1599
        %v1601 = vpop.f32.mrf.mxu0
        %v1602 = vpop.f32.mrf.mxu0
        %v1603 = vadd.f32 0.0, %v1602
        %v1604 = vpop.f32.mrf.mxu0
        %1605 = vmatprep.mubr.bf16.mxu0 %v1258
        %1606 = vmatmul.mubr.bf16.gmra.mxu0 %v1257
        %v1607 = vpop.f32.mrf.mxu0
        %v1608 = vadd.f32 0.0, %v1607
        %v1609 = vpop.f32.mrf.mxu0
        %v1610 = vpop.f32.mrf.mxu0
        %v1611 = vadd.f32 0.0, %v1610
        %v1612 = vpop.f32.mrf.mxu0
        %1613 = vdwg.mxu0
        %1614 = vmatprep.subr.bf16.mxu0 0
        %1615 = vmatpush1.bf16.msra.mxu0 %v1428
        %1616 = vmatprep.subr.bf16.mxu0 0
        %1617 = vmatpush1.bf16.msra.mxu0 %v1427
        %1618 = vmatprep.subr.bf16.mxu0 0
        %1619 = vmatpush1.bf16.msra.mxu0 %v1426
        %1620 = vmatprep.subr.bf16.mxu0 0
        %1621 = vmatpush1.bf16.msra.mxu0 %v1425
        %1622 = vmatprep.subr.bf16.mxu0 0
        %1623 = vmatpush1.bf16.msra.mxu0 %v1424
        %1624 = vmatprep.subr.bf16.mxu0 0
        %1625 = vmatpush1.bf16.msra.mxu0 %v1423
        %1626 = vmatprep.subr.bf16.mxu0 0
        %1627 = vmatpush1.bf16.msra.mxu0 %v1422
        %1628 = vmatprep.subr.bf16.mxu0 0
        %1629 = vmatpush1.bf16.msra.mxu0 %v1421
        %1630 = vmatprep.subr.bf16.mxu0 0
        %1631 = vmatpush2.bf16.msra.mxu0 0
        %1632 = vmatprep.subr.bf16.mxu0 0
        %1633 = vmatpush2.bf16.msra.mxu0 0
        %1634 = vmatprep.subr.bf16.mxu0 0
        %1635 = vmatpush2.bf16.msra.mxu0 0
        %1636 = vmatprep.subr.bf16.mxu0 0
        %1637 = vmatpush2.bf16.msra.mxu0 0
        %1638 = vmatprep.subr.bf16.mxu0 0
        %1639 = vmatpush2.bf16.msra.mxu0 0
        %1640 = vmatprep.subr.bf16.mxu0 0
        %1641 = vmatpush2.bf16.msra.mxu0 0
        %1642 = vmatprep.subr.bf16.mxu0 0
        %1643 = vmatpush2.bf16.msra.mxu0 0
        %1644 = vmatprep.subr.bf16.mxu0 0
        %1645 = vmatpush2.bf16.msra.mxu0 0
        %1646 = vmatprep.mubr.bf16.mxu0 0
        %1647 = vmatmul.mubr.bf16.gmra.mxu0 %v1148
        %v1648 = vpop.f32.mrf.mxu0
        %v1649 = vadd.f32 %v1488, %v1648
        %v1650 = vpop.f32.mrf.mxu0
        %v1651 = vpop.f32.mrf.mxu0
        %v1652 = vadd.f32 %v1491, %v1651
        %v1653 = vpop.f32.mrf.mxu0
        %1654 = vmatprep.mubr.bf16.mxu0 0
        %1655 = vmatmul.mubr.bf16.gmra.mxu0 %v1151
        %v1656 = vpop.f32.mrf.mxu0
        %v1657 = vadd.f32 %v1496, %v1656
        %v1658 = vpop.f32.mrf.mxu0
        %v1659 = vpop.f32.mrf.mxu0
        %v1660 = vadd.f32 %v1499, %v1659
        %v1661 = vpop.f32.mrf.mxu0
        %1662 = vmatprep.mubr.bf16.mxu0 0
        %1663 = vmatmul.mubr.bf16.gmra.mxu0 %v1154
        %v1664 = vpop.f32.mrf.mxu0
        %v1665 = vadd.f32 %v1504, %v1664
        %v1666 = vpop.f32.mrf.mxu0
        %v1667 = vpop.f32.mrf.mxu0
        %v1668 = vadd.f32 %v1507, %v1667
        %v1669 = vpop.f32.mrf.mxu0
        %1670 = vmatprep.mubr.bf16.mxu0 0
        %1671 = vmatmul.mubr.bf16.gmra.mxu0 %v1157
        %v1672 = vpop.f32.mrf.mxu0
        %v1673 = vadd.f32 %v1512, %v1672
        %v1674 = vpop.f32.mrf.mxu0
        %v1675 = vpop.f32.mrf.mxu0
        %v1676 = vadd.f32 %v1515, %v1675
        %v1677 = vpop.f32.mrf.mxu0
        %1678 = vmatprep.mubr.bf16.mxu0 0
        %1679 = vmatmul.mubr.bf16.gmra.mxu0 %v1160
        %v1680 = vpop.f32.mrf.mxu0
        %v1681 = vadd.f32 %v1520, %v1680
        %v1682 = vpop.f32.mrf.mxu0
        %v1683 = vpop.f32.mrf.mxu0
        %v1684 = vadd.f32 %v1523, %v1683
        %v1685 = vpop.f32.mrf.mxu0
        %1686 = vmatprep.mubr.bf16.mxu0 0
        %1687 = vmatmul.mubr.bf16.gmra.mxu0 %v1163
        %v1688 = vpop.f32.mrf.mxu0
        %v1689 = vadd.f32 %v1528, %v1688
        %v1690 = vpop.f32.mrf.mxu0
        %v1691 = vpop.f32.mrf.mxu0
        %v1692 = vadd.f32 %v1531, %v1691
        %v1693 = vpop.f32.mrf.mxu0
        %1694 = vmatprep.mubr.bf16.mxu0 0
        %1695 = vmatmul.mubr.bf16.gmra.mxu0 %v1166
        %v1696 = vpop.f32.mrf.mxu0
        %v1697 = vadd.f32 %v1536, %v1696
        %v1698 = vpop.f32.mrf.mxu0
        %v1699 = vpop.f32.mrf.mxu0
        %v1700 = vadd.f32 %v1539, %v1699
        %v1701 = vpop.f32.mrf.mxu0
        %1702 = vmatprep.mubr.bf16.mxu0 0
        %1703 = vmatmul.mubr.bf16.gmra.mxu0 %v1169
        %v1704 = vpop.f32.mrf.mxu0
        %v1705 = vadd.f32 %v1544, %v1704
        %v1706 = vpop.f32.mrf.mxu0
        %v1707 = vpop.f32.mrf.mxu0
        %v1708 = vadd.f32 %v1547, %v1707
        %v1709 = vpop.f32.mrf.mxu0
        %1710 = vmatprep.mubr.bf16.mxu0 0
        %1711 = vmatmul.mubr.bf16.gmra.mxu0 %v1172
        %v1712 = vpop.f32.mrf.mxu0
        %v1713 = vadd.f32 %v1552, %v1712
        %v1714 = vpop.f32.mrf.mxu0
        %v1715 = vpop.f32.mrf.mxu0
        %v1716 = vadd.f32 %v1555, %v1715
        %v1717 = vpop.f32.mrf.mxu0
        %1718 = vmatprep.mubr.bf16.mxu0 0
        %1719 = vmatmul.mubr.bf16.gmra.mxu0 %v1175
        %v1720 = vpop.f32.mrf.mxu0
        %v1721 = vadd.f32 %v1560, %v1720
        %v1722 = vpop.f32.mrf.mxu0
        %v1723 = vpop.f32.mrf.mxu0
        %v1724 = vadd.f32 %v1563, %v1723
        %v1725 = vpop.f32.mrf.mxu0
        %1726 = vmatprep.mubr.bf16.mxu0 0
        %1727 = vmatmul.mubr.bf16.gmra.mxu0 %v1178
        %v1728 = vpop.f32.mrf.mxu0
        %v1729 = vadd.f32 %v1568, %v1728
        %v1730 = vpop.f32.mrf.mxu0
        %v1731 = vpop.f32.mrf.mxu0
        %v1732 = vadd.f32 %v1571, %v1731
        %v1733 = vpop.f32.mrf.mxu0
        %1734 = vmatprep.mubr.bf16.mxu0 0
        %1735 = vmatmul.mubr.bf16.gmra.mxu0 %v1181
        %v1736 = vpop.f32.mrf.mxu0
        %v1737 = vadd.f32 %v1576, %v1736
        %v1738 = vpop.f32.mrf.mxu0
        %v1739 = vpop.f32.mrf.mxu0
        %v1740 = vadd.f32 %v1579, %v1739
        %v1741 = vpop.f32.mrf.mxu0
        %1742 = vmatprep.mubr.bf16.mxu0 0
        %1743 = vmatmul.mubr.bf16.gmra.mxu0 %v1184
        %v1744 = vpop.f32.mrf.mxu0
        %v1745 = vadd.f32 %v1584, %v1744
        %v1746 = vpop.f32.mrf.mxu0
        %v1747 = vpop.f32.mrf.mxu0
        %v1748 = vadd.f32 %v1587, %v1747
        %v1749 = vpop.f32.mrf.mxu0
        %1750 = vmatprep.mubr.bf16.mxu0 0
        %1751 = vmatmul.mubr.bf16.gmra.mxu0 %v1187
        %v1752 = vpop.f32.mrf.mxu0
        %v1753 = vadd.f32 %v1592, %v1752
        %v1754 = vpop.f32.mrf.mxu0
        %v1755 = vpop.f32.mrf.mxu0
        %v1756 = vadd.f32 %v1595, %v1755
        %v1757 = vpop.f32.mrf.mxu0
        %1758 = vmatprep.mubr.bf16.mxu0 0
        %1759 = vmatmul.mubr.bf16.gmra.mxu0 %v1256
        %v1760 = vpop.f32.mrf.mxu0
        %v1761 = vadd.f32 %v1600, %v1760
        %v1762 = vpop.f32.mrf.mxu0
        %v1763 = vpop.f32.mrf.mxu0
        %v1764 = vadd.f32 %v1603, %v1763
        %v1765 = vpop.f32.mrf.mxu0
        %1766 = vmatprep.mubr.bf16.mxu0 0
        %1767 = vmatmul.mubr.bf16.gmra.mxu0 %v1259
        %v1768 = vpop.f32.mrf.mxu0
        %v1769 = vadd.f32 %v1608, %v1768
        %v1770 = vpop.f32.mrf.mxu0
        %v1771 = vpop.f32.mrf.mxu0
        %v1772 = vadd.f32 %v1611, %v1771
        %v1773 = vpop.f32.mrf.mxu0
        %1774 = vdwg.mxu0
        %v1823 = vunpack.c.l.b16 %v1191
        %v1824 = vunpack.c.l.b16 %v1192
        %v1825 = vunpack.c.l.b16 %v1193
        %v1826 = vunpack.c.l.b16 %v1194
        %v1827 = vunpack.c.l.b16 %v1195
        %v1828 = vunpack.c.l.b16 %v1196
        %v1829 = vunpack.c.l.b16 %v1197
        %v1830 = vunpack.c.l.b16 %v1198
        %v1831 = vunpack.c.l.b16 %v1199
        %v1832 = vunpack.c.l.b16 %v1200
        %v1833 = vunpack.c.l.b16 %v1201
        %v1834 = vunpack.c.l.b16 %v1202
        %v1835 = vunpack.c.l.b16 %v1203
        %v1836 = vunpack.c.l.b16 %v1204
        %v1837 = vunpack.c.l.b16 %v1205
        %v1838 = vunpack.c.l.b16 %v1206
        %v1839 = vunpack.c.l.b16 %v1207
        %v1840 = vunpack.c.l.b16 %v1208
        %v1841 = vunpack.c.l.b16 %v1209
        %v1842 = vunpack.c.l.b16 %v1210
        %v1843 = vunpack.c.l.b16 %v1211
        %v1844 = vunpack.c.l.b16 %v1212
        %v1845 = vunpack.c.l.b16 %v1213
        %v1846 = vunpack.c.l.b16 %v1214
        %v1847 = vunpack.c.l.b16 %v1215
        %v1848 = vunpack.c.l.b16 %v1216
        %v1849 = vunpack.c.l.b16 %v1217
        %v1850 = vunpack.c.l.b16 %v1218
        %v1851 = vunpack.c.l.b16 %v1219
        %v1852 = vunpack.c.l.b16 %v1220
        %v1853 = vunpack.c.l.b16 %v1221
        %v1854 = vunpack.c.l.b16 %v1222
        %v1855 = vunpack.c.l.b16 %v1223
        %v1856 = vunpack.c.l.b16 %v1224
        %v1857 = vunpack.c.l.b16 %v1225
        %v1858 = vunpack.c.l.b16 %v1226
        %v1859 = vunpack.c.l.b16 %v1227
        %v1860 = vunpack.c.l.b16 %v1228
        %v1861 = vunpack.c.l.b16 %v1229
        %v1862 = vunpack.c.l.b16 %v1230
        %v1863 = vunpack.c.l.b16 %v1231
        %v1864 = vunpack.c.l.b16 %v1232
        %v1865 = vunpack.c.l.b16 %v1233
        %v1866 = vunpack.c.l.b16 %v1234
        %v1867 = vunpack.c.l.b16 %v1235
        %v1868 = vunpack.c.l.b16 %v1236
        %v1869 = vunpack.c.l.b16 %v1237
        %v1870 = vunpack.c.l.b16 %v1238
        %v1871 = vpack.c.b16 %v1824, %v1823
        %v1872 = vpack.c.b16 %v1826, %v1825
        %v1873 = vpack.c.b16 %v1828, %v1827
        %v1874 = vpack.c.b16 %v1830, %v1829
        %v1875 = vpack.c.b16 %v1832, %v1831
        %v1876 = vpack.c.b16 %v1834, %v1833
        %v1877 = vpack.c.b16 %v1836, %v1835
        %v1878 = vpack.c.b16 %v1838, %v1837
        %v1879 = vpack.c.b16 %v1840, %v1839
        %v1880 = vpack.c.b16 %v1842, %v1841
        %v1881 = vpack.c.b16 %v1844, %v1843
        %v1882 = vpack.c.b16 %v1846, %v1845
        %v1883 = vpack.c.b16 %v1848, %v1847
        %v1884 = vpack.c.b16 %v1850, %v1849
        %v1885 = vpack.c.b16 %v1852, %v1851
        %v1886 = vpack.c.b16 %v1854, %v1853
        %v1887 = vpack.c.b16 %v1856, %v1855
        %v1888 = vpack.c.b16 %v1858, %v1857
        %v1889 = vpack.c.b16 %v1860, %v1859
        %v1890 = vpack.c.b16 %v1862, %v1861
        %v1891 = vpack.c.b16 %v1864, %v1863
        %v1892 = vpack.c.b16 %v1866, %v1865
        %v1893 = vpack.c.b16 %v1868, %v1867
        %v1894 = vpack.c.b16 %v1870, %v1869
        %1919 = vmatprep.subr.bf16.mxu0 0
        %1920 = vmatpush1.bf16.msra.mxu0 %v1878
        %1921 = vmatprep.subr.bf16.mxu0 0
        %1922 = vmatpush1.bf16.msra.mxu0 %v1877
        %1923 = vmatprep.subr.bf16.mxu0 0
        %1924 = vmatpush1.bf16.msra.mxu0 %v1876
        %1925 = vmatprep.subr.bf16.mxu0 0
        %1926 = vmatpush1.bf16.msra.mxu0 %v1875
        %1927 = vmatprep.subr.bf16.mxu0 0
        %1928 = vmatpush1.bf16.msra.mxu0 %v1874
        %1929 = vmatprep.subr.bf16.mxu0 0
        %1930 = vmatpush1.bf16.msra.mxu0 %v1873
        %1931 = vmatprep.subr.bf16.mxu0 0
        %1932 = vmatpush1.bf16.msra.mxu0 %v1872
        %1933 = vmatprep.subr.bf16.mxu0 0
        %1934 = vmatpush1.bf16.msra.mxu0 %v1871
        %1935 = vmatprep.subr.bf16.mxu0 0
        %1936 = vmatpush2.bf16.msra.mxu0 %v1886
        %1937 = vmatprep.subr.bf16.mxu0 0
        %1938 = vmatpush2.bf16.msra.mxu0 %v1885
        %1939 = vmatprep.subr.bf16.mxu0 0
        %1940 = vmatpush2.bf16.msra.mxu0 %v1884
        %1941 = vmatprep.subr.bf16.mxu0 0
        %1942 = vmatpush2.bf16.msra.mxu0 %v1883
        %1943 = vmatprep.subr.bf16.mxu0 0
        %1944 = vmatpush2.bf16.msra.mxu0 %v1882
        %1945 = vmatprep.subr.bf16.mxu0 0
        %1946 = vmatpush2.bf16.msra.mxu0 %v1881
        %1947 = vmatprep.subr.bf16.mxu0 0
        %1948 = vmatpush2.bf16.msra.mxu0 %v1880
        %1949 = vmatprep.subr.bf16.mxu0 0
        %1950 = vmatpush2.bf16.msra.mxu0 %v1879
        %1951 = vmatprep.mubr.bf16.mxu0 %v1144
        %1952 = vmatmul.mubr.bf16.gmra.mxu0 %v1143
        %v1953 = vpop.f32.mrf.mxu0
        %v1954 = vadd.f32 %v1649, %v1953
        %v1955 = vpop.f32.mrf.mxu0
        %v1956 = vpop.f32.mrf.mxu0
        %v1957 = vadd.f32 %v1652, %v1956
        %v1958 = vpop.f32.mrf.mxu0
        %1959 = vmatprep.mubr.bf16.mxu0 %v1147
        %1960 = vmatmul.mubr.bf16.gmra.mxu0 %v1146
        %v1961 = vpop.f32.mrf.mxu0
        %v1962 = vadd.f32 %v1657, %v1961
        %v1963 = vpop.f32.mrf.mxu0
        %v1964 = vpop.f32.mrf.mxu0
        %v1965 = vadd.f32 %v1660, %v1964
        %v1966 = vpop.f32.mrf.mxu0
        %1967 = vmatprep.mubr.bf16.mxu0 %v1150
        %1968 = vmatmul.mubr.bf16.gmra.mxu0 %v1149
        %v1969 = vpop.f32.mrf.mxu0
        %v1970 = vadd.f32 %v1665, %v1969
        %v1971 = vpop.f32.mrf.mxu0
        %v1972 = vpop.f32.mrf.mxu0
        %v1973 = vadd.f32 %v1668, %v1972
        %v1974 = vpop.f32.mrf.mxu0
        %1975 = vmatprep.mubr.bf16.mxu0 %v1153
        %1976 = vmatmul.mubr.bf16.gmra.mxu0 %v1152
        %v1977 = vpop.f32.mrf.mxu0
        %v1978 = vadd.f32 %v1673, %v1977
        %v1979 = vpop.f32.mrf.mxu0
        %v1980 = vpop.f32.mrf.mxu0
        %v1981 = vadd.f32 %v1676, %v1980
        %v1982 = vpop.f32.mrf.mxu0
        %1983 = vmatprep.mubr.bf16.mxu0 %v1156
        %1984 = vmatmul.mubr.bf16.gmra.mxu0 %v1155
        %v1985 = vpop.f32.mrf.mxu0
        %v1986 = vadd.f32 %v1681, %v1985
        %v1987 = vpop.f32.mrf.mxu0
        %v1988 = vpop.f32.mrf.mxu0
        %v1989 = vadd.f32 %v1684, %v1988
        %v1990 = vpop.f32.mrf.mxu0
        %1991 = vmatprep.mubr.bf16.mxu0 %v1159
        %1992 = vmatmul.mubr.bf16.gmra.mxu0 %v1158
        %v1993 = vpop.f32.mrf.mxu0
        %v1994 = vadd.f32 %v1689, %v1993
        %v1995 = vpop.f32.mrf.mxu0
        %v1996 = vpop.f32.mrf.mxu0
        %v1997 = vadd.f32 %v1692, %v1996
        %v1998 = vpop.f32.mrf.mxu0
        %1999 = vmatprep.mubr.bf16.mxu0 %v1162
        %2000 = vmatmul.mubr.bf16.gmra.mxu0 %v1161
        %v2001 = vpop.f32.mrf.mxu0
        %v2002 = vadd.f32 %v1697, %v2001
        %v2003 = vpop.f32.mrf.mxu0
        %v2004 = vpop.f32.mrf.mxu0
        %v2005 = vadd.f32 %v1700, %v2004
        %v2006 = vpop.f32.mrf.mxu0
        %2007 = vmatprep.mubr.bf16.mxu0 %v1165
        %2008 = vmatmul.mubr.bf16.gmra.mxu0 %v1164
        %v2009 = vpop.f32.mrf.mxu0
        %v2010 = vadd.f32 %v1705, %v2009
        %v2011 = vpop.f32.mrf.mxu0
        %v2012 = vpop.f32.mrf.mxu0
        %v2013 = vadd.f32 %v1708, %v2012
        %v2014 = vpop.f32.mrf.mxu0
        %2015 = vmatprep.mubr.bf16.mxu0 %v1168
        %2016 = vmatmul.mubr.bf16.gmra.mxu0 %v1167
        %v2017 = vpop.f32.mrf.mxu0
        %v2018 = vadd.f32 %v1713, %v2017
        %v2019 = vpop.f32.mrf.mxu0
        %v2020 = vpop.f32.mrf.mxu0
        %v2021 = vadd.f32 %v1716, %v2020
        %v2022 = vpop.f32.mrf.mxu0
        %2023 = vmatprep.mubr.bf16.mxu0 %v1171
        %2024 = vmatmul.mubr.bf16.gmra.mxu0 %v1170
        %v2025 = vpop.f32.mrf.mxu0
        %v2026 = vadd.f32 %v1721, %v2025
        %v2027 = vpop.f32.mrf.mxu0
        %v2028 = vpop.f32.mrf.mxu0
        %v2029 = vadd.f32 %v1724, %v2028
        %v2030 = vpop.f32.mrf.mxu0
        %2031 = vmatprep.mubr.bf16.mxu0 %v1174
        %2032 = vmatmul.mubr.bf16.gmra.mxu0 %v1173
        %v2033 = vpop.f32.mrf.mxu0
        %v2034 = vadd.f32 %v1729, %v2033
        %v2035 = vpop.f32.mrf.mxu0
        %v2036 = vpop.f32.mrf.mxu0
        %v2037 = vadd.f32 %v1732, %v2036
        %v2038 = vpop.f32.mrf.mxu0
        %2039 = vmatprep.mubr.bf16.mxu0 %v1177
        %2040 = vmatmul.mubr.bf16.gmra.mxu0 %v1176
        %v2041 = vpop.f32.mrf.mxu0
        %v2042 = vadd.f32 %v1737, %v2041
        %v2043 = vpop.f32.mrf.mxu0
        %v2044 = vpop.f32.mrf.mxu0
        %v2045 = vadd.f32 %v1740, %v2044
        %v2046 = vpop.f32.mrf.mxu0
        %2047 = vmatprep.mubr.bf16.mxu0 %v1180
        %2048 = vmatmul.mubr.bf16.gmra.mxu0 %v1179
        %v2049 = vpop.f32.mrf.mxu0
        %v2050 = vadd.f32 %v1745, %v2049
        %v2051 = vpop.f32.mrf.mxu0
        %v2052 = vpop.f32.mrf.mxu0
        %v2053 = vadd.f32 %v1748, %v2052
        %v2054 = vpop.f32.mrf.mxu0
        %2055 = vmatprep.mubr.bf16.mxu0 %v1183
        %2056 = vmatmul.mubr.bf16.gmra.mxu0 %v1182
        %v2057 = vpop.f32.mrf.mxu0
        %v2058 = vadd.f32 %v1753, %v2057
        %v2059 = vpop.f32.mrf.mxu0
        %v2060 = vpop.f32.mrf.mxu0
        %v2061 = vadd.f32 %v1756, %v2060
        %v2062 = vpop.f32.mrf.mxu0
        %2063 = vmatprep.mubr.bf16.mxu0 %v1186
        %2064 = vmatmul.mubr.bf16.gmra.mxu0 %v1185
        %v2065 = vpop.f32.mrf.mxu0
        %v2066 = vadd.f32 %v1761, %v2065
        %v2067 = vpop.f32.mrf.mxu0
        %v2068 = vpop.f32.mrf.mxu0
        %v2069 = vadd.f32 %v1764, %v2068
        %v2070 = vpop.f32.mrf.mxu0
        %2071 = vmatprep.mubr.bf16.mxu0 %v1189
        %2072 = vmatmul.mubr.bf16.gmra.mxu0 %v1188
        %v2073 = vpop.f32.mrf.mxu0
        %v2074 = vadd.f32 %v1769, %v2073
        %v2075 = vpop.f32.mrf.mxu0
        %v2076 = vpop.f32.mrf.mxu0
        %v2077 = vadd.f32 %v1772, %v2076
        %v2078 = vpop.f32.mrf.mxu0
        %2079 = vdwg.mxu0
        %2080 = vmatprep.subr.bf16.mxu0 0
        %2081 = vmatpush1.bf16.msra.mxu0 %v1894
        %2082 = vmatprep.subr.bf16.mxu0 0
        %2083 = vmatpush1.bf16.msra.mxu0 %v1893
        %2084 = vmatprep.subr.bf16.mxu0 0
        %2085 = vmatpush1.bf16.msra.mxu0 %v1892
        %2086 = vmatprep.subr.bf16.mxu0 0
        %2087 = vmatpush1.bf16.msra.mxu0 %v1891
        %2088 = vmatprep.subr.bf16.mxu0 0
        %2089 = vmatpush1.bf16.msra.mxu0 %v1890
        %2090 = vmatprep.subr.bf16.mxu0 0
        %2091 = vmatpush1.bf16.msra.mxu0 %v1889
        %2092 = vmatprep.subr.bf16.mxu0 0
        %2093 = vmatpush1.bf16.msra.mxu0 %v1888
        %2094 = vmatprep.subr.bf16.mxu0 0
        %2095 = vmatpush1.bf16.msra.mxu0 %v1887
        %2096 = vmatprep.subr.bf16.mxu0 0
        %2097 = vmatpush2.bf16.msra.mxu0 0
        %2098 = vmatprep.subr.bf16.mxu0 0
        %2099 = vmatpush2.bf16.msra.mxu0 0
        %2100 = vmatprep.subr.bf16.mxu0 0
        %2101 = vmatpush2.bf16.msra.mxu0 0
        %2102 = vmatprep.subr.bf16.mxu0 0
        %2103 = vmatpush2.bf16.msra.mxu0 0
        %2104 = vmatprep.subr.bf16.mxu0 0
        %2105 = vmatpush2.bf16.msra.mxu0 0
        %2106 = vmatprep.subr.bf16.mxu0 0
        %2107 = vmatpush2.bf16.msra.mxu0 0
        %2108 = vmatprep.subr.bf16.mxu0 0
        %2109 = vmatpush2.bf16.msra.mxu0 0
        %2110 = vmatprep.subr.bf16.mxu0 0
        %2111 = vmatpush2.bf16.msra.mxu0 0
        %2112 = vmatprep.mubr.bf16.mxu0 0
        %2113 = vmatmul.mubr.bf16.gmra.mxu0 %v1145
        %v2114 = vpop.f32.mrf.mxu0
        %v2115 = vadd.f32 %v1954, %v2114
        %v2116 = vpop.f32.mrf.mxu0
        %v2117 = vpop.f32.mrf.mxu0
        %v2118 = vadd.f32 %v1957, %v2117
        %v2119 = vpop.f32.mrf.mxu0
        %2120 = vmatprep.mubr.bf16.mxu0 0
        %2121 = vmatmul.mubr.bf16.gmra.mxu0 %v1148
        %v2122 = vpop.f32.mrf.mxu0
        %v2123 = vadd.f32 %v1962, %v2122
        %v2124 = vpop.f32.mrf.mxu0
        %v2125 = vpop.f32.mrf.mxu0
        %v2126 = vadd.f32 %v1965, %v2125
        %v2127 = vpop.f32.mrf.mxu0
        %2128 = vmatprep.mubr.bf16.mxu0 0
        %2129 = vmatmul.mubr.bf16.gmra.mxu0 %v1151
        %v2130 = vpop.f32.mrf.mxu0
        %v2131 = vadd.f32 %v1970, %v2130
        %v2132 = vpop.f32.mrf.mxu0
        %v2133 = vpop.f32.mrf.mxu0
        %v2134 = vadd.f32 %v1973, %v2133
        %v2135 = vpop.f32.mrf.mxu0
        %2136 = vmatprep.mubr.bf16.mxu0 0
        %2137 = vmatmul.mubr.bf16.gmra.mxu0 %v1154
        %v2138 = vpop.f32.mrf.mxu0
        %v2139 = vadd.f32 %v1978, %v2138
        %v2140 = vpop.f32.mrf.mxu0
        %v2141 = vpop.f32.mrf.mxu0
        %v2142 = vadd.f32 %v1981, %v2141
        %v2143 = vpop.f32.mrf.mxu0
        %2144 = vmatprep.mubr.bf16.mxu0 0
        %2145 = vmatmul.mubr.bf16.gmra.mxu0 %v1157
        %v2146 = vpop.f32.mrf.mxu0
        %v2147 = vadd.f32 %v1986, %v2146
        %v2148 = vpop.f32.mrf.mxu0
        %v2149 = vpop.f32.mrf.mxu0
        %v2150 = vadd.f32 %v1989, %v2149
        %v2151 = vpop.f32.mrf.mxu0
        %2152 = vmatprep.mubr.bf16.mxu0 0
        %2153 = vmatmul.mubr.bf16.gmra.mxu0 %v1160
        %v2154 = vpop.f32.mrf.mxu0
        %v2155 = vadd.f32 %v1994, %v2154
        %v2156 = vpop.f32.mrf.mxu0
        %v2157 = vpop.f32.mrf.mxu0
        %v2158 = vadd.f32 %v1997, %v2157
        %v2159 = vpop.f32.mrf.mxu0
        %2160 = vmatprep.mubr.bf16.mxu0 0
        %2161 = vmatmul.mubr.bf16.gmra.mxu0 %v1163
        %v2162 = vpop.f32.mrf.mxu0
        %v2163 = vadd.f32 %v2002, %v2162
        %v2164 = vpop.f32.mrf.mxu0
        %v2165 = vpop.f32.mrf.mxu0
        %v2166 = vadd.f32 %v2005, %v2165
        %v2167 = vpop.f32.mrf.mxu0
        %2168 = vmatprep.mubr.bf16.mxu0 0
        %2169 = vmatmul.mubr.bf16.gmra.mxu0 %v1166
        %v2170 = vpop.f32.mrf.mxu0
        %v2171 = vadd.f32 %v2010, %v2170
        %v2172 = vpop.f32.mrf.mxu0
        %v2173 = vpop.f32.mrf.mxu0
        %v2174 = vadd.f32 %v2013, %v2173
        %v2175 = vpop.f32.mrf.mxu0
        %2176 = vmatprep.mubr.bf16.mxu0 0
        %2177 = vmatmul.mubr.bf16.gmra.mxu0 %v1169
        %v2178 = vpop.f32.mrf.mxu0
        %v2179 = vadd.f32 %v2018, %v2178
        %v2180 = vpop.f32.mrf.mxu0
        %v2181 = vpop.f32.mrf.mxu0
        %v2182 = vadd.f32 %v2021, %v2181
        %v2183 = vpop.f32.mrf.mxu0
        %2184 = vmatprep.mubr.bf16.mxu0 0
        %2185 = vmatmul.mubr.bf16.gmra.mxu0 %v1172
        %v2186 = vpop.f32.mrf.mxu0
        %v2187 = vadd.f32 %v2026, %v2186
        %v2188 = vpop.f32.mrf.mxu0
        %v2189 = vpop.f32.mrf.mxu0
        %v2190 = vadd.f32 %v2029, %v2189
        %v2191 = vpop.f32.mrf.mxu0
        %2192 = vmatprep.mubr.bf16.mxu0 0
        %2193 = vmatmul.mubr.bf16.gmra.mxu0 %v1175
        %v2194 = vpop.f32.mrf.mxu0
        %v2195 = vadd.f32 %v2034, %v2194
        %v2196 = vpop.f32.mrf.mxu0
        %v2197 = vpop.f32.mrf.mxu0
        %v2198 = vadd.f32 %v2037, %v2197
        %v2199 = vpop.f32.mrf.mxu0
        %2200 = vmatprep.mubr.bf16.mxu0 0
        %2201 = vmatmul.mubr.bf16.gmra.mxu0 %v1178
        %v2202 = vpop.f32.mrf.mxu0
        %v2203 = vadd.f32 %v2042, %v2202
        %v2204 = vpop.f32.mrf.mxu0
        %v2205 = vpop.f32.mrf.mxu0
        %v2206 = vadd.f32 %v2045, %v2205
        %v2207 = vpop.f32.mrf.mxu0
        %2208 = vmatprep.mubr.bf16.mxu0 0
        %2209 = vmatmul.mubr.bf16.gmra.mxu0 %v1181
        %v2210 = vpop.f32.mrf.mxu0
        %v2211 = vadd.f32 %v2050, %v2210
        %v2212 = vpop.f32.mrf.mxu0
        %v2213 = vpop.f32.mrf.mxu0
        %v2214 = vadd.f32 %v2053, %v2213
        %v2215 = vpop.f32.mrf.mxu0
        %2216 = vmatprep.mubr.bf16.mxu0 0
        %2217 = vmatmul.mubr.bf16.gmra.mxu0 %v1184
        %v2218 = vpop.f32.mrf.mxu0
        %v2219 = vadd.f32 %v2058, %v2218
        %v2220 = vpop.f32.mrf.mxu0
        %v2221 = vpop.f32.mrf.mxu0
        %v2222 = vadd.f32 %v2061, %v2221
        %v2223 = vpop.f32.mrf.mxu0
        %2224 = vmatprep.mubr.bf16.mxu0 0
        %2225 = vmatmul.mubr.bf16.gmra.mxu0 %v1187
        %v2226 = vpop.f32.mrf.mxu0
        %v2227 = vadd.f32 %v2066, %v2226
        %v2228 = vpop.f32.mrf.mxu0
        %v2229 = vpop.f32.mrf.mxu0
        %v2230 = vadd.f32 %v2069, %v2229
        %v2231 = vpop.f32.mrf.mxu0
        %2232 = vmatprep.mubr.bf16.mxu0 0
        %2233 = vmatmul.mubr.bf16.gmra.mxu0 %v1190
        %v2234 = vpop.f32.mrf.mxu0
        %v2235 = vadd.f32 %v2074, %v2234
        %v2236 = vpop.f32.mrf.mxu0
        %v2237 = vpop.f32.mrf.mxu0
        %v2238 = vadd.f32 %v2077, %v2237
        %v2239 = vpop.f32.mrf.mxu0
        %2240 = vdwg.mxu0
        %v2241 = vsel %vm985, %v1240, 0.0
        %v2242 = vsel %vm985, 0.0, %v957
        %v2243 = vsel %vm951, %v2242, 0.0
        %v2244 = vsel %vm951, %v2241, 0.0
        %v2245 = vsel %vm1079, %v1248, 0.0
        %v2246 = vsel %vm1079, 0.0, %v1051
        %v2247 = vsel %vm954, %v2245, 0.0
        %v2248 = vsel %vm954, %v2246, 0.0
        %v2249 = vpack.c.bf16 %v1022, %v2243
        %v2250 = vpack.c.bf16 %v2247, %v1253
        %v2251 = vpack.c.bf16 %v1018, %v2244
        %v2252 = vpack.c.bf16 %v2248, %v1111
        %s2253 = scalar_lea.vmem [#allocation7], 384
        %v2254 = vld [vmem:[%s2253] sm:$0xf]
        %v2255 = vld [vmem:[%s2253 + $0x4] sm:$0xf]
        %v2256 = vld [vmem:[%s2253 + $0x8] sm:$0xf]
        %v2257 = vld [vmem:[%s2253 + $0xc] sm:$0xf]
        %v2258 = vld [vmem:[%s2253 + $0x10] sm:$0xf]
        %v2259 = vld [vmem:[%s2253 + $0x14] sm:$0xf]
        %v2260 = vld [vmem:[%s2253 + $0x18] sm:$0xf]
        %v2261 = vld [vmem:[%s2253 + $0x1c] sm:$0xf]
        %v2262 = vld [vmem:[%s2253 + $0x20] sm:$0xf]
        %v2263 = vld [vmem:[%s2253 + $0x24] sm:$0xf]
        %v2264 = vld [vmem:[%s2253 + $0x28] sm:$0xf]
        %v2265 = vld [vmem:[%s2253 + $0x2c] sm:$0xf]
        %v2266 = vld [vmem:[%s2253 + $0x30] sm:$0xf]
        %v2267 = vld [vmem:[%s2253 + $0x34] sm:$0xf]
        %v2268 = vld [vmem:[%s2253 + $0x38] sm:$0xf]
        %v2269 = vld [vmem:[%s2253 + $0x3c] sm:$0xf]
        %v2270 = vld [vmem:[%s2253 + $0x40] sm:$0xf]
        %v2271 = vld [vmem:[%s2253 + $0x44] sm:$0xf]
        %v2272 = vld [vmem:[%s2253 + $0x48] sm:$0xf]
        %v2273 = vld [vmem:[%s2253 + $0x4c] sm:$0xf]
        %v2274 = vld [vmem:[%s2253 + $0x50] sm:$0xf]
        %v2275 = vld [vmem:[%s2253 + $0x54] sm:$0xf]
        %v2276 = vld [vmem:[%s2253 + $0x58] sm:$0xf]
        %v2277 = vld [vmem:[%s2253 + $0x5c] sm:$0xf]
        %v2278 = vld [vmem:[%s2253 + $0x60] sm:$0xf]
        %v2279 = vld [vmem:[%s2253 + $0x64] sm:$0xf]
        %v2280 = vld [vmem:[%s2253 + $0x68] sm:$0xf]
        %v2281 = vld [vmem:[%s2253 + $0x6c] sm:$0xf]
        %v2282 = vld [vmem:[%s2253 + $0x70] sm:$0xf]
        %v2283 = vld [vmem:[%s2253 + $0x74] sm:$0xf]
        %v2284 = vld [vmem:[%s2253 + $0x78] sm:$0xf]
        %v2285 = vld [vmem:[%s2253 + $0x7c] sm:$0xf]
        %v2286 = vld [vmem:[%s2253 + $0x80] sm:$0xf]
        %v2287 = vld [vmem:[%s2253 + $0x84] sm:$0xf]
        %v2288 = vld [vmem:[%s2253 + $0x88] sm:$0xf]
        %v2289 = vld [vmem:[%s2253 + $0x8c] sm:$0xf]
        %v2290 = vld [vmem:[%s2253 + $0x90] sm:$0xf]
        %v2291 = vld [vmem:[%s2253 + $0x94] sm:$0xf]
        %v2292 = vld [vmem:[%s2253 + $0x98] sm:$0xf]
        %v2293 = vld [vmem:[%s2253 + $0x9c] sm:$0xf]
        %v2294 = vld [vmem:[%s2253 + $0xa0] sm:$0xf]
        %v2295 = vld [vmem:[%s2253 + $0xa4] sm:$0xf]
        %v2296 = vld [vmem:[%s2253 + $0xa8] sm:$0xf]
        %v2297 = vld [vmem:[%s2253 + $0xac] sm:$0xf]
        %v2298 = vld [vmem:[%s2253 + $0xb0] sm:$0xf]
        %v2299 = vld [vmem:[%s2253 + $0xb4] sm:$0xf]
        %v2300 = vld [vmem:[%s2253 + $0xb8] sm:$0xf]
        %v2301 = vld [vmem:[%s2253 + $0xbc] sm:$0xf]
        %v2350 = vunpack.c.l.b16 %v2254
        %v2351 = vunpack.c.l.b16 %v2255
        %v2352 = vunpack.c.l.b16 %v2256
        %v2353 = vunpack.c.l.b16 %v2257
        %v2354 = vunpack.c.l.b16 %v2258
        %v2355 = vunpack.c.l.b16 %v2259
        %v2356 = vunpack.c.l.b16 %v2260
        %v2357 = vunpack.c.l.b16 %v2261
        %v2358 = vunpack.c.l.b16 %v2262
        %v2359 = vunpack.c.l.b16 %v2263
        %v2360 = vunpack.c.l.b16 %v2264
        %v2361 = vunpack.c.l.b16 %v2265
        %v2362 = vunpack.c.l.b16 %v2266
        %v2363 = vunpack.c.l.b16 %v2267
        %v2364 = vunpack.c.l.b16 %v2268
        %v2365 = vunpack.c.l.b16 %v2269
        %v2366 = vunpack.c.l.b16 %v2270
        %v2367 = vunpack.c.l.b16 %v2271
        %v2368 = vunpack.c.l.b16 %v2272
        %v2369 = vunpack.c.l.b16 %v2273
        %v2370 = vunpack.c.l.b16 %v2274
        %v2371 = vunpack.c.l.b16 %v2275
        %v2372 = vunpack.c.l.b16 %v2276
        %v2373 = vunpack.c.l.b16 %v2277
        %v2374 = vunpack.c.l.b16 %v2278
        %v2375 = vunpack.c.l.b16 %v2279
        %v2376 = vunpack.c.l.b16 %v2280
        %v2377 = vunpack.c.l.b16 %v2281
        %v2378 = vunpack.c.l.b16 %v2282
        %v2379 = vunpack.c.l.b16 %v2283
        %v2380 = vunpack.c.l.b16 %v2284
        %v2381 = vunpack.c.l.b16 %v2285
        %v2382 = vunpack.c.l.b16 %v2286
        %v2383 = vunpack.c.l.b16 %v2287
        %v2384 = vunpack.c.l.b16 %v2288
        %v2385 = vunpack.c.l.b16 %v2289
        %v2386 = vunpack.c.l.b16 %v2290
        %v2387 = vunpack.c.l.b16 %v2291
        %v2388 = vunpack.c.l.b16 %v2292
        %v2389 = vunpack.c.l.b16 %v2293
        %v2390 = vunpack.c.l.b16 %v2294
        %v2391 = vunpack.c.l.b16 %v2295
        %v2392 = vunpack.c.l.b16 %v2296
        %v2393 = vunpack.c.l.b16 %v2297
        %v2394 = vunpack.c.l.b16 %v2298
        %v2395 = vunpack.c.l.b16 %v2299
        %v2396 = vunpack.c.l.b16 %v2300
        %v2397 = vunpack.c.l.b16 %v2301
        %v2398 = vpack.c.b16 %v2351, %v2350
        %v2399 = vpack.c.b16 %v2353, %v2352
        %v2400 = vpack.c.b16 %v2355, %v2354
        %v2401 = vpack.c.b16 %v2357, %v2356
        %v2402 = vpack.c.b16 %v2359, %v2358
        %v2403 = vpack.c.b16 %v2361, %v2360
        %v2404 = vpack.c.b16 %v2363, %v2362
        %v2405 = vpack.c.b16 %v2365, %v2364
        %v2406 = vpack.c.b16 %v2367, %v2366
        %v2407 = vpack.c.b16 %v2369, %v2368
        %v2408 = vpack.c.b16 %v2371, %v2370
        %v2409 = vpack.c.b16 %v2373, %v2372
        %v2410 = vpack.c.b16 %v2375, %v2374
        %v2411 = vpack.c.b16 %v2377, %v2376
        %v2412 = vpack.c.b16 %v2379, %v2378
        %v2413 = vpack.c.b16 %v2381, %v2380
        %v2414 = vpack.c.b16 %v2383, %v2382
        %v2415 = vpack.c.b16 %v2385, %v2384
        %v2416 = vpack.c.b16 %v2387, %v2386
        %v2417 = vpack.c.b16 %v2389, %v2388
        %v2418 = vpack.c.b16 %v2391, %v2390
        %v2419 = vpack.c.b16 %v2393, %v2392
        %v2420 = vpack.c.b16 %v2395, %v2394
        %v2421 = vpack.c.b16 %v2397, %v2396
        %2446 = vmatprep.subr.bf16.mxu0 0
        %2447 = vmatpush1.bf16.msra.mxu0 %v2405
        %2448 = vmatprep.subr.bf16.mxu0 0
        %2449 = vmatpush1.bf16.msra.mxu0 %v2404
        %2450 = vmatprep.subr.bf16.mxu0 0
        %2451 = vmatpush1.bf16.msra.mxu0 %v2403
        %2452 = vmatprep.subr.bf16.mxu0 0
        %2453 = vmatpush1.bf16.msra.mxu0 %v2402
        %2454 = vmatprep.subr.bf16.mxu0 0
        %2455 = vmatpush1.bf16.msra.mxu0 %v2401
        %2456 = vmatprep.subr.bf16.mxu0 0
        %2457 = vmatpush1.bf16.msra.mxu0 %v2400
        %2458 = vmatprep.subr.bf16.mxu0 0
        %2459 = vmatpush1.bf16.msra.mxu0 %v2399
        %2460 = vmatprep.subr.bf16.mxu0 0
        %2461 = vmatpush1.bf16.msra.mxu0 %v2398
        %2462 = vmatprep.subr.bf16.mxu0 0
        %2463 = vmatpush2.bf16.msra.mxu0 %v2413
        %2464 = vmatprep.subr.bf16.mxu0 0
        %2465 = vmatpush2.bf16.msra.mxu0 %v2412
        %2466 = vmatprep.subr.bf16.mxu0 0
        %2467 = vmatpush2.bf16.msra.mxu0 %v2411
        %2468 = vmatprep.subr.bf16.mxu0 0
        %2469 = vmatpush2.bf16.msra.mxu0 %v2410
        %2470 = vmatprep.subr.bf16.mxu0 0
        %2471 = vmatpush2.bf16.msra.mxu0 %v2409
        %2472 = vmatprep.subr.bf16.mxu0 0
        %2473 = vmatpush2.bf16.msra.mxu0 %v2408
        %2474 = vmatprep.subr.bf16.mxu0 0
        %2475 = vmatpush2.bf16.msra.mxu0 %v2407
        %2476 = vmatprep.subr.bf16.mxu0 0
        %2477 = vmatpush2.bf16.msra.mxu0 %v2406
        %2478 = vmatprep.mubr.bf16.mxu0 %v1150
        %2479 = vmatmul.mubr.bf16.gmra.mxu0 %v2249
        %v2480 = vpop.f32.mrf.mxu0
        %v2481 = vadd.f32 0.0, %v2480
        %v2482 = vpop.f32.mrf.mxu0
        %v2483 = vpop.f32.mrf.mxu0
        %v2484 = vadd.f32 0.0, %v2483
        %v2485 = vpop.f32.mrf.mxu0
        %2486 = vmatprep.mubr.bf16.mxu0 %v1153
        %2487 = vmatmul.mubr.bf16.gmra.mxu0 %v1152
        %v2488 = vpop.f32.mrf.mxu0
        %v2489 = vadd.f32 0.0, %v2488
        %v2490 = vpop.f32.mrf.mxu0
        %v2491 = vpop.f32.mrf.mxu0
        %v2492 = vadd.f32 0.0, %v2491
        %v2493 = vpop.f32.mrf.mxu0
        %2494 = vmatprep.mubr.bf16.mxu0 %v1156
        %2495 = vmatmul.mubr.bf16.gmra.mxu0 %v1155
        %v2496 = vpop.f32.mrf.mxu0
        %v2497 = vadd.f32 0.0, %v2496
        %v2498 = vpop.f32.mrf.mxu0
        %v2499 = vpop.f32.mrf.mxu0
        %v2500 = vadd.f32 0.0, %v2499
        %v2501 = vpop.f32.mrf.mxu0
        %2502 = vmatprep.mubr.bf16.mxu0 %v1159
        %2503 = vmatmul.mubr.bf16.gmra.mxu0 %v1158
        %v2504 = vpop.f32.mrf.mxu0
        %v2505 = vadd.f32 0.0, %v2504
        %v2506 = vpop.f32.mrf.mxu0
        %v2507 = vpop.f32.mrf.mxu0
        %v2508 = vadd.f32 0.0, %v2507
        %v2509 = vpop.f32.mrf.mxu0
        %2510 = vmatprep.mubr.bf16.mxu0 %v1162
        %2511 = vmatmul.mubr.bf16.gmra.mxu0 %v1161
        %v2512 = vpop.f32.mrf.mxu0
        %v2513 = vadd.f32 0.0, %v2512
        %v2514 = vpop.f32.mrf.mxu0
        %v2515 = vpop.f32.mrf.mxu0
        %v2516 = vadd.f32 0.0, %v2515
        %v2517 = vpop.f32.mrf.mxu0
        %2518 = vmatprep.mubr.bf16.mxu0 %v1165
        %2519 = vmatmul.mubr.bf16.gmra.mxu0 %v1164
        %v2520 = vpop.f32.mrf.mxu0
        %v2521 = vadd.f32 0.0, %v2520
        %v2522 = vpop.f32.mrf.mxu0
        %v2523 = vpop.f32.mrf.mxu0
        %v2524 = vadd.f32 0.0, %v2523
        %v2525 = vpop.f32.mrf.mxu0
        %2526 = vmatprep.mubr.bf16.mxu0 %v1168
        %2527 = vmatmul.mubr.bf16.gmra.mxu0 %v1167
        %v2528 = vpop.f32.mrf.mxu0
        %v2529 = vadd.f32 0.0, %v2528
        %v2530 = vpop.f32.mrf.mxu0
        %v2531 = vpop.f32.mrf.mxu0
        %v2532 = vadd.f32 0.0, %v2531
        %v2533 = vpop.f32.mrf.mxu0
        %2534 = vmatprep.mubr.bf16.mxu0 %v1171
        %2535 = vmatmul.mubr.bf16.gmra.mxu0 %v1170
        %v2536 = vpop.f32.mrf.mxu0
        %v2537 = vadd.f32 0.0, %v2536
        %v2538 = vpop.f32.mrf.mxu0
        %v2539 = vpop.f32.mrf.mxu0
        %v2540 = vadd.f32 0.0, %v2539
        %v2541 = vpop.f32.mrf.mxu0
        %2542 = vmatprep.mubr.bf16.mxu0 %v1174
        %2543 = vmatmul.mubr.bf16.gmra.mxu0 %v1173
        %v2544 = vpop.f32.mrf.mxu0
        %v2545 = vadd.f32 0.0, %v2544
        %v2546 = vpop.f32.mrf.mxu0
        %v2547 = vpop.f32.mrf.mxu0
        %v2548 = vadd.f32 0.0, %v2547
        %v2549 = vpop.f32.mrf.mxu0
        %2550 = vmatprep.mubr.bf16.mxu0 %v1177
        %2551 = vmatmul.mubr.bf16.gmra.mxu0 %v1176
        %v2552 = vpop.f32.mrf.mxu0
        %v2553 = vadd.f32 0.0, %v2552
        %v2554 = vpop.f32.mrf.mxu0
        %v2555 = vpop.f32.mrf.mxu0
        %v2556 = vadd.f32 0.0, %v2555
        %v2557 = vpop.f32.mrf.mxu0
        %2558 = vmatprep.mubr.bf16.mxu0 %v1180
        %2559 = vmatmul.mubr.bf16.gmra.mxu0 %v1179
        %v2560 = vpop.f32.mrf.mxu0
        %v2561 = vadd.f32 0.0, %v2560
        %v2562 = vpop.f32.mrf.mxu0
        %v2563 = vpop.f32.mrf.mxu0
        %v2564 = vadd.f32 0.0, %v2563
        %v2565 = vpop.f32.mrf.mxu0
        %2566 = vmatprep.mubr.bf16.mxu0 %v1183
        %2567 = vmatmul.mubr.bf16.gmra.mxu0 %v1182
        %v2568 = vpop.f32.mrf.mxu0
        %v2569 = vadd.f32 0.0, %v2568
        %v2570 = vpop.f32.mrf.mxu0
        %v2571 = vpop.f32.mrf.mxu0
        %v2572 = vadd.f32 0.0, %v2571
        %v2573 = vpop.f32.mrf.mxu0
        %2574 = vmatprep.mubr.bf16.mxu0 %v1186
        %2575 = vmatmul.mubr.bf16.gmra.mxu0 %v1185
        %v2576 = vpop.f32.mrf.mxu0
        %v2577 = vadd.f32 0.0, %v2576
        %v2578 = vpop.f32.mrf.mxu0
        %v2579 = vpop.f32.mrf.mxu0
        %v2580 = vadd.f32 0.0, %v2579
        %v2581 = vpop.f32.mrf.mxu0
        %2582 = vmatprep.mubr.bf16.mxu0 %v1189
        %2583 = vmatmul.mubr.bf16.gmra.mxu0 %v1188
        %v2584 = vpop.f32.mrf.mxu0
        %v2585 = vadd.f32 0.0, %v2584
        %v2586 = vpop.f32.mrf.mxu0
        %v2587 = vpop.f32.mrf.mxu0
        %v2588 = vadd.f32 0.0, %v2587
        %v2589 = vpop.f32.mrf.mxu0
        %2590 = vmatprep.mubr.bf16.mxu0 %v1258
        %2591 = vmatmul.mubr.bf16.gmra.mxu0 %v1257
        %v2592 = vpop.f32.mrf.mxu0
        %v2593 = vadd.f32 0.0, %v2592
        %v2594 = vpop.f32.mrf.mxu0
        %v2595 = vpop.f32.mrf.mxu0
        %v2596 = vadd.f32 0.0, %v2595
        %v2597 = vpop.f32.mrf.mxu0
        %2598 = vmatprep.mubr.bf16.mxu0 %v1144
        %2599 = vmatmul.mubr.bf16.gmra.mxu0 %v2251
        %v2600 = vpop.f32.mrf.mxu0
        %v2601 = vadd.f32 0.0, %v2600
        %v2602 = vpop.f32.mrf.mxu0
        %v2603 = vpop.f32.mrf.mxu0
        %v2604 = vadd.f32 0.0, %v2603
        %v2605 = vpop.f32.mrf.mxu0
        %2606 = vdwg.mxu0
        %2607 = vmatprep.subr.bf16.mxu0 0
        %2608 = vmatpush1.bf16.msra.mxu0 %v2421
        %2609 = vmatprep.subr.bf16.mxu0 0
        %2610 = vmatpush1.bf16.msra.mxu0 %v2420
        %2611 = vmatprep.subr.bf16.mxu0 0
        %2612 = vmatpush1.bf16.msra.mxu0 %v2419
        %2613 = vmatprep.subr.bf16.mxu0 0
        %2614 = vmatpush1.bf16.msra.mxu0 %v2418
        %2615 = vmatprep.subr.bf16.mxu0 0
        %2616 = vmatpush1.bf16.msra.mxu0 %v2417
        %2617 = vmatprep.subr.bf16.mxu0 0
        %2618 = vmatpush1.bf16.msra.mxu0 %v2416
        %2619 = vmatprep.subr.bf16.mxu0 0
        %2620 = vmatpush1.bf16.msra.mxu0 %v2415
        %2621 = vmatprep.subr.bf16.mxu0 0
        %2622 = vmatpush1.bf16.msra.mxu0 %v2414
        %2623 = vmatprep.subr.bf16.mxu0 0
        %2624 = vmatpush2.bf16.msra.mxu0 0
        %2625 = vmatprep.subr.bf16.mxu0 0
        %2626 = vmatpush2.bf16.msra.mxu0 0
        %2627 = vmatprep.subr.bf16.mxu0 0
        %2628 = vmatpush2.bf16.msra.mxu0 0
        %2629 = vmatprep.subr.bf16.mxu0 0
        %2630 = vmatpush2.bf16.msra.mxu0 0
        %2631 = vmatprep.subr.bf16.mxu0 0
        %2632 = vmatpush2.bf16.msra.mxu0 0
        %2633 = vmatprep.subr.bf16.mxu0 0
        %2634 = vmatpush2.bf16.msra.mxu0 0
        %2635 = vmatprep.subr.bf16.mxu0 0
        %2636 = vmatpush2.bf16.msra.mxu0 0
        %2637 = vmatprep.subr.bf16.mxu0 0
        %2638 = vmatpush2.bf16.msra.mxu0 0
        %2639 = vmatprep.mubr.bf16.mxu0 0
        %2640 = vmatmul.mubr.bf16.gmra.mxu0 %v1151
        %v2641 = vpop.f32.mrf.mxu0
        %v2642 = vadd.f32 %v2481, %v2641
        %v2643 = vpop.f32.mrf.mxu0
        %v2644 = vpop.f32.mrf.mxu0
        %v2645 = vadd.f32 %v2484, %v2644
        %v2646 = vpop.f32.mrf.mxu0
        %2647 = vmatprep.mubr.bf16.mxu0 0
        %2648 = vmatmul.mubr.bf16.gmra.mxu0 %v1154
        %v2649 = vpop.f32.mrf.mxu0
        %v2650 = vadd.f32 %v2489, %v2649
        %v2651 = vpop.f32.mrf.mxu0
        %v2652 = vpop.f32.mrf.mxu0
        %v2653 = vadd.f32 %v2492, %v2652
        %v2654 = vpop.f32.mrf.mxu0
        %2655 = vmatprep.mubr.bf16.mxu0 0
        %2656 = vmatmul.mubr.bf16.gmra.mxu0 %v1157
        %v2657 = vpop.f32.mrf.mxu0
        %v2658 = vadd.f32 %v2497, %v2657
        %v2659 = vpop.f32.mrf.mxu0
        %v2660 = vpop.f32.mrf.mxu0
        %v2661 = vadd.f32 %v2500, %v2660
        %v2662 = vpop.f32.mrf.mxu0
        %2663 = vmatprep.mubr.bf16.mxu0 0
        %2664 = vmatmul.mubr.bf16.gmra.mxu0 %v1160
        %v2665 = vpop.f32.mrf.mxu0
        %v2666 = vadd.f32 %v2505, %v2665
        %v2667 = vpop.f32.mrf.mxu0
        %v2668 = vpop.f32.mrf.mxu0
        %v2669 = vadd.f32 %v2508, %v2668
        %v2670 = vpop.f32.mrf.mxu0
        %2671 = vmatprep.mubr.bf16.mxu0 0
        %2672 = vmatmul.mubr.bf16.gmra.mxu0 %v1163
        %v2673 = vpop.f32.mrf.mxu0
        %v2674 = vadd.f32 %v2513, %v2673
        %v2675 = vpop.f32.mrf.mxu0
        %v2676 = vpop.f32.mrf.mxu0
        %v2677 = vadd.f32 %v2516, %v2676
        %v2678 = vpop.f32.mrf.mxu0
        %2679 = vmatprep.mubr.bf16.mxu0 0
        %2680 = vmatmul.mubr.bf16.gmra.mxu0 %v1166
        %v2681 = vpop.f32.mrf.mxu0
        %v2682 = vadd.f32 %v2521, %v2681
        %v2683 = vpop.f32.mrf.mxu0
        %v2684 = vpop.f32.mrf.mxu0
        %v2685 = vadd.f32 %v2524, %v2684
        %v2686 = vpop.f32.mrf.mxu0
        %2687 = vmatprep.mubr.bf16.mxu0 0
        %2688 = vmatmul.mubr.bf16.gmra.mxu0 %v1169
        %v2689 = vpop.f32.mrf.mxu0
        %v2690 = vadd.f32 %v2529, %v2689
        %v2691 = vpop.f32.mrf.mxu0
        %v2692 = vpop.f32.mrf.mxu0
        %v2693 = vadd.f32 %v2532, %v2692
        %v2694 = vpop.f32.mrf.mxu0
        %2695 = vmatprep.mubr.bf16.mxu0 0
        %2696 = vmatmul.mubr.bf16.gmra.mxu0 %v1172
        %v2697 = vpop.f32.mrf.mxu0
        %v2698 = vadd.f32 %v2537, %v2697
        %v2699 = vpop.f32.mrf.mxu0
        %v2700 = vpop.f32.mrf.mxu0
        %v2701 = vadd.f32 %v2540, %v2700
        %v2702 = vpop.f32.mrf.mxu0
        %2703 = vmatprep.mubr.bf16.mxu0 0
        %2704 = vmatmul.mubr.bf16.gmra.mxu0 %v1175
        %v2705 = vpop.f32.mrf.mxu0
        %v2706 = vadd.f32 %v2545, %v2705
        %v2707 = vpop.f32.mrf.mxu0
        %v2708 = vpop.f32.mrf.mxu0
        %v2709 = vadd.f32 %v2548, %v2708
        %v2710 = vpop.f32.mrf.mxu0
        %2711 = vmatprep.mubr.bf16.mxu0 0
        %2712 = vmatmul.mubr.bf16.gmra.mxu0 %v1178
        %v2713 = vpop.f32.mrf.mxu0
        %v2714 = vadd.f32 %v2553, %v2713
        %v2715 = vpop.f32.mrf.mxu0
        %v2716 = vpop.f32.mrf.mxu0
        %v2717 = vadd.f32 %v2556, %v2716
        %v2718 = vpop.f32.mrf.mxu0
        %2719 = vmatprep.mubr.bf16.mxu0 0
        %2720 = vmatmul.mubr.bf16.gmra.mxu0 %v1181
        %v2721 = vpop.f32.mrf.mxu0
        %v2722 = vadd.f32 %v2561, %v2721
        %v2723 = vpop.f32.mrf.mxu0
        %v2724 = vpop.f32.mrf.mxu0
        %v2725 = vadd.f32 %v2564, %v2724
        %v2726 = vpop.f32.mrf.mxu0
        %2727 = vmatprep.mubr.bf16.mxu0 0
        %2728 = vmatmul.mubr.bf16.gmra.mxu0 %v1184
        %v2729 = vpop.f32.mrf.mxu0
        %v2730 = vadd.f32 %v2569, %v2729
        %v2731 = vpop.f32.mrf.mxu0
        %v2732 = vpop.f32.mrf.mxu0
        %v2733 = vadd.f32 %v2572, %v2732
        %v2734 = vpop.f32.mrf.mxu0
        %2735 = vmatprep.mubr.bf16.mxu0 0
        %2736 = vmatmul.mubr.bf16.gmra.mxu0 %v1187
        %v2737 = vpop.f32.mrf.mxu0
        %v2738 = vadd.f32 %v2577, %v2737
        %v2739 = vpop.f32.mrf.mxu0
        %v2740 = vpop.f32.mrf.mxu0
        %v2741 = vadd.f32 %v2580, %v2740
        %v2742 = vpop.f32.mrf.mxu0
        %2743 = vmatprep.mubr.bf16.mxu0 0
        %2744 = vmatmul.mubr.bf16.gmra.mxu0 %v1256
        %v2745 = vpop.f32.mrf.mxu0
        %v2746 = vadd.f32 %v2585, %v2745
        %v2747 = vpop.f32.mrf.mxu0
        %v2748 = vpop.f32.mrf.mxu0
        %v2749 = vadd.f32 %v2588, %v2748
        %v2750 = vpop.f32.mrf.mxu0
        %2751 = vmatprep.mubr.bf16.mxu0 0
        %2752 = vmatmul.mubr.bf16.gmra.mxu0 %v2250
        %v2753 = vpop.f32.mrf.mxu0
        %v2754 = vadd.f32 %v2593, %v2753
        %v2755 = vpop.f32.mrf.mxu0
        %v2756 = vpop.f32.mrf.mxu0
        %v2757 = vadd.f32 %v2596, %v2756
        %v2758 = vpop.f32.mrf.mxu0
        %2759 = vmatprep.mubr.bf16.mxu0 0
        %2760 = vmatmul.mubr.bf16.gmra.mxu0 %v2252
        %v2761 = vpop.f32.mrf.mxu0
        %v2762 = vadd.f32 %v2601, %v2761
        %v2763 = vpop.f32.mrf.mxu0
        %v2764 = vpop.f32.mrf.mxu0
        %v2765 = vadd.f32 %v2604, %v2764
        %v2766 = vpop.f32.mrf.mxu0
        %2767 = vdwg.mxu0
        %v2768 = vadd.f32 %v2115, %v2642
        %v2769 = vadd.f32 %v2118, %v2645
        %v2770 = vadd.f32 %v2123, %v2650
        %v2771 = vadd.f32 %v2126, %v2653
        %v2772 = vadd.f32 %v2131, %v2658
        %v2773 = vadd.f32 %v2134, %v2661
        %v2774 = vadd.f32 %v2139, %v2666
        %v2775 = vadd.f32 %v2142, %v2669
        %v2776 = vadd.f32 %v2147, %v2674
        %v2777 = vadd.f32 %v2150, %v2677
        %v2778 = vadd.f32 %v2155, %v2682
        %v2779 = vadd.f32 %v2158, %v2685
        %v2780 = vadd.f32 %v2163, %v2690
        %v2781 = vadd.f32 %v2166, %v2693
        %v2782 = vadd.f32 %v2171, %v2698
        %v2783 = vadd.f32 %v2174, %v2701
        %v2784 = vadd.f32 %v2179, %v2706
        %v2785 = vadd.f32 %v2182, %v2709
        %v2786 = vadd.f32 %v2187, %v2714
        %v2787 = vadd.f32 %v2190, %v2717
        %v2788 = vadd.f32 %v2195, %v2722
        %v2789 = vadd.f32 %v2198, %v2725
        %v2790 = vadd.f32 %v2203, %v2730
        %v2791 = vadd.f32 %v2206, %v2733
        %v2792 = vadd.f32 %v2211, %v2738
        %v2793 = vadd.f32 %v2214, %v2741
        %v2794 = vadd.f32 %v2219, %v2746
        %v2795 = vadd.f32 %v2222, %v2749
        %v2796 = vadd.f32 %v2227, %v2754
        %v2797 = vadd.f32 %v2230, %v2757
        %v2798 = vadd.f32 %v2235, %v2762
        %v2799 = vadd.f32 %v2238, %v2765
        %v2800 = vld [vmem:[%s7] sm:$0x1]
        %v2802 = vlaneseq
        %v2803 = vshrl.u32 %v2802, 7
        %v2804 = vsub.s32 0, %v2803
        %v2805 = vrot.slane %v2800, %v2804
        %v2807 = vmul.f32 %v2768, %v2805
        %v2808 = vmul.f32 %v2769, %v2805
        %v2809 = vmul.f32 %v2770, %v2805
        %v2810 = vmul.f32 %v2771, %v2805
        %v2811 = vmul.f32 %v2772, %v2805
        %v2812 = vmul.f32 %v2773, %v2805
        %v2813 = vmul.f32 %v2774, %v2805
        %v2814 = vmul.f32 %v2775, %v2805
        %v2815 = vmul.f32 %v2776, %v2805
        %v2816 = vmul.f32 %v2777, %v2805
        %v2817 = vmul.f32 %v2778, %v2805
        %v2818 = vmul.f32 %v2779, %v2805
        %v2819 = vmul.f32 %v2780, %v2805
        %v2820 = vmul.f32 %v2781, %v2805
        %v2821 = vmul.f32 %v2782, %v2805
        %v2822 = vmul.f32 %v2783, %v2805
        %v2823 = vmul.f32 %v2784, %v2805
        %v2824 = vmul.f32 %v2785, %v2805
        %v2825 = vmul.f32 %v2786, %v2805
        %v2826 = vmul.f32 %v2787, %v2805
        %v2827 = vmul.f32 %v2788, %v2805
        %v2828 = vmul.f32 %v2789, %v2805
        %v2829 = vmul.f32 %v2790, %v2805
        %v2830 = vmul.f32 %v2791, %v2805
        %v2831 = vmul.f32 %v2792, %v2805
        %v2832 = vmul.f32 %v2793, %v2805
        %v2833 = vmul.f32 %v2794, %v2805
        %v2834 = vmul.f32 %v2795, %v2805
        %v2835 = vmul.f32 %v2796, %v2805
        %v2836 = vmul.f32 %v2797, %v2805
        %v2837 = vmul.f32 %v2798, %v2805
        %v2838 = vmul.f32 %v2799, %v2805
        %v2839 = vld [vmem:[%s8] sm:$0x1]
        %v2841 = vlaneseq
        %v2842 = vshrl.u32 %v2841, 7
        %v2843 = vsub.s32 0, %v2842
        %v2844 = vrot.slane %v2839, %v2843
        %v2846 = vadd.f32 %v2807, %v2844
        %v2847 = vadd.f32 %v2808, %v2844
        %v2848 = vadd.f32 %v2809, %v2844
        %v2849 = vadd.f32 %v2810, %v2844
        %v2850 = vadd.f32 %v2811, %v2844
        %v2851 = vadd.f32 %v2812, %v2844
        %v2852 = vadd.f32 %v2813, %v2844
        %v2853 = vadd.f32 %v2814, %v2844
        %v2854 = vadd.f32 %v2815, %v2844
        %v2855 = vadd.f32 %v2816, %v2844
        %v2856 = vadd.f32 %v2817, %v2844
        %v2857 = vadd.f32 %v2818, %v2844
        %v2858 = vadd.f32 %v2819, %v2844
        %v2859 = vadd.f32 %v2820, %v2844
        %v2860 = vadd.f32 %v2821, %v2844
        %v2861 = vadd.f32 %v2822, %v2844
        %v2862 = vadd.f32 %v2823, %v2844
        %v2863 = vadd.f32 %v2824, %v2844
        %v2864 = vadd.f32 %v2825, %v2844
        %v2865 = vadd.f32 %v2826, %v2844
        %v2866 = vadd.f32 %v2827, %v2844
        %v2867 = vadd.f32 %v2828, %v2844
        %v2868 = vadd.f32 %v2829, %v2844
        %v2869 = vadd.f32 %v2830, %v2844
        %v2870 = vadd.f32 %v2831, %v2844
        %v2871 = vadd.f32 %v2832, %v2844
        %v2872 = vadd.f32 %v2833, %v2844
        %v2873 = vadd.f32 %v2834, %v2844
        %v2874 = vadd.f32 %v2835, %v2844
        %v2875 = vadd.f32 %v2836, %v2844
        %v2876 = vadd.f32 %v2837, %v2844
        %v2877 = vadd.f32 %v2838, %v2844
        %v2878 = vmax.f32 %v2846, 0.0
        %v2879 = vmax.f32 %v2847, 0.0
        %v2880 = vmax.f32 %v2848, 0.0
        %v2881 = vmax.f32 %v2849, 0.0
        %v2882 = vmax.f32 %v2850, 0.0
        %v2883 = vmax.f32 %v2851, 0.0
        %v2884 = vmax.f32 %v2852, 0.0
        %v2885 = vmax.f32 %v2853, 0.0
        %v2886 = vmax.f32 %v2854, 0.0
        %v2887 = vmax.f32 %v2855, 0.0
        %v2888 = vmax.f32 %v2856, 0.0
        %v2889 = vmax.f32 %v2857, 0.0
        %v2890 = vmax.f32 %v2858, 0.0
        %v2891 = vmax.f32 %v2859, 0.0
        %v2892 = vmax.f32 %v2860, 0.0
        %v2893 = vmax.f32 %v2861, 0.0
        %v2894 = vmax.f32 %v2862, 0.0
        %v2895 = vmax.f32 %v2863, 0.0
        %v2896 = vmax.f32 %v2864, 0.0
        %v2897 = vmax.f32 %v2865, 0.0
        %v2898 = vmax.f32 %v2866, 0.0
        %v2899 = vmax.f32 %v2867, 0.0
        %v2900 = vmax.f32 %v2868, 0.0
        %v2901 = vmax.f32 %v2869, 0.0
        %v2902 = vmax.f32 %v2870, 0.0
        %v2903 = vmax.f32 %v2871, 0.0
        %v2904 = vmax.f32 %v2872, 0.0
        %v2905 = vmax.f32 %v2873, 0.0
        %v2906 = vmax.f32 %v2874, 0.0
        %v2907 = vmax.f32 %v2875, 0.0
        %v2908 = vmax.f32 %v2876, 0.0
        %v2909 = vmax.f32 %v2877, 0.0
        %v2910 = vpack.c.bf16 %v2879, %v2878
        %v2911 = vpack.c.bf16 %v2881, %v2880
        %v2912 = vpack.c.bf16 %v2883, %v2882
        %v2913 = vpack.c.bf16 %v2885, %v2884
        %v2914 = vpack.c.bf16 %v2887, %v2886
        %v2915 = vpack.c.bf16 %v2889, %v2888
        %v2916 = vpack.c.bf16 %v2891, %v2890
        %v2917 = vpack.c.bf16 %v2893, %v2892
        %v2918 = vpack.c.bf16 %v2895, %v2894
        %v2919 = vpack.c.bf16 %v2897, %v2896
        %v2920 = vpack.c.bf16 %v2899, %v2898
        %v2921 = vpack.c.bf16 %v2901, %v2900
        %v2922 = vpack.c.bf16 %v2903, %v2902
        %v2923 = vpack.c.bf16 %v2905, %v2904
        %v2924 = vpack.c.bf16 %v2907, %v2906
        %v2925 = vpack.c.bf16 %v2909, %v2908
        %v2926 = vld [vmem:[#allocation8] sm:$0xf]
        %v2927 = vld [vmem:[#allocation8 + $0x4] sm:$0xf]
        %v2928 = vld [vmem:[#allocation8 + $0x8] sm:$0xf]
        %v2929 = vld [vmem:[#allocation8 + $0xc] sm:$0xf]
        %v2930 = vld [vmem:[#allocation8 + $0x10] sm:$0xf]
        %v2931 = vld [vmem:[#allocation8 + $0x14] sm:$0xf]
        %v2932 = vld [vmem:[#allocation8 + $0x18] sm:$0xf]
        %v2933 = vld [vmem:[#allocation8 + $0x1c] sm:$0xf]
        %v2934 = vld [vmem:[#allocation8 + $0x20] sm:$0xf]
        %v2935 = vld [vmem:[#allocation8 + $0x24] sm:$0xf]
        %v2936 = vld [vmem:[#allocation8 + $0x28] sm:$0xf]
        %v2937 = vld [vmem:[#allocation8 + $0x2c] sm:$0xf]
        %v2938 = vld [vmem:[#allocation8 + $0x30] sm:$0xf]
        %v2939 = vld [vmem:[#allocation8 + $0x34] sm:$0xf]
        %v2940 = vld [vmem:[#allocation8 + $0x38] sm:$0xf]
        %v2941 = vld [vmem:[#allocation8 + $0x3c] sm:$0xf]
        %v2958 = vunpack.c.l.b16 %v2926
        %v2959 = vunpack.c.l.b16 %v2927
        %v2960 = vunpack.c.l.b16 %v2928
        %v2961 = vunpack.c.l.b16 %v2929
        %v2962 = vunpack.c.l.b16 %v2930
        %v2963 = vunpack.c.l.b16 %v2931
        %v2964 = vunpack.c.l.b16 %v2932
        %v2965 = vunpack.c.l.b16 %v2933
        %v2966 = vunpack.c.l.b16 %v2934
        %v2967 = vunpack.c.l.b16 %v2935
        %v2968 = vunpack.c.l.b16 %v2936
        %v2969 = vunpack.c.l.b16 %v2937
        %v2970 = vunpack.c.l.b16 %v2938
        %v2971 = vunpack.c.l.b16 %v2939
        %v2972 = vunpack.c.l.b16 %v2940
        %v2973 = vunpack.c.l.b16 %v2941
        %v2974 = vpack.c.b16 %v2959, %v2958
        %v2975 = vpack.c.b16 %v2961, %v2960
        %v2976 = vpack.c.b16 %v2963, %v2962
        %v2977 = vpack.c.b16 %v2965, %v2964
        %v2978 = vpack.c.b16 %v2967, %v2966
        %v2979 = vpack.c.b16 %v2969, %v2968
        %v2980 = vpack.c.b16 %v2971, %v2970
        %v2981 = vpack.c.b16 %v2973, %v2972
        %2990 = vmatprep.subr.bf16.mxu0 0
        %2991 = vmatpush1.bf16.msra.mxu0 %v2981
        %2992 = vmatprep.subr.bf16.mxu0 0
        %2993 = vmatpush1.bf16.msra.mxu0 %v2980
        %2994 = vmatprep.subr.bf16.mxu0 0
        %2995 = vmatpush1.bf16.msra.mxu0 %v2979
        %2996 = vmatprep.subr.bf16.mxu0 0
        %2997 = vmatpush1.bf16.msra.mxu0 %v2978
        %2998 = vmatprep.subr.bf16.mxu0 0
        %2999 = vmatpush1.bf16.msra.mxu0 %v2977
        %3000 = vmatprep.subr.bf16.mxu0 0
        %3001 = vmatpush1.bf16.msra.mxu0 %v2976
        %3002 = vmatprep.subr.bf16.mxu0 0
        %3003 = vmatpush1.bf16.msra.mxu0 %v2975
        %3004 = vmatprep.subr.bf16.mxu0 0
        %3005 = vmatpush1.bf16.msra.mxu0 %v2974
        %3006 = vmatprep.subr.bf16.mxu0 0
        %3007 = vmatpush2.bf16.msra.mxu0 0
        %3008 = vmatprep.subr.bf16.mxu0 0
        %3009 = vmatpush2.bf16.msra.mxu0 0
        %3010 = vmatprep.subr.bf16.mxu0 0
        %3011 = vmatpush2.bf16.msra.mxu0 0
        %3012 = vmatprep.subr.bf16.mxu0 0
        %3013 = vmatpush2.bf16.msra.mxu0 0
        %3014 = vmatprep.subr.bf16.mxu0 0
        %3015 = vmatpush2.bf16.msra.mxu0 0
        %3016 = vmatprep.subr.bf16.mxu0 0
        %3017 = vmatpush2.bf16.msra.mxu0 0
        %3018 = vmatprep.subr.bf16.mxu0 0
        %3019 = vmatpush2.bf16.msra.mxu0 0
        %3020 = vmatprep.subr.bf16.mxu0 0
        %3021 = vmatpush2.bf16.msra.mxu0 0
        %3022 = vmatprep.mubr.bf16.mxu0 0
        %3023 = vmatmul.mubr.bf16.gmra.mxu0 %v2910
        %v3024 = vpop.f32.mrf.mxu0
        %v3025 = vadd.f32 %v455, %v3024
        %v3026 = vpop.f32.mrf.mxu0
        %v3027 = vpop.f32.mrf.mxu0
        %v3028 = vadd.f32 %v456, %v3027
        %v3029 = vpop.f32.mrf.mxu0
        %3030 = vmatprep.mubr.bf16.mxu0 0
        %3031 = vmatmul.mubr.bf16.gmra.mxu0 %v2911
        %v3032 = vpop.f32.mrf.mxu0
        %v3033 = vadd.f32 %v457, %v3032
        %v3034 = vpop.f32.mrf.mxu0
        %v3035 = vpop.f32.mrf.mxu0
        %v3036 = vadd.f32 %v458, %v3035
        %v3037 = vpop.f32.mrf.mxu0
        %3038 = vmatprep.mubr.bf16.mxu0 0
        %3039 = vmatmul.mubr.bf16.gmra.mxu0 %v2912
        %v3040 = vpop.f32.mrf.mxu0
        %v3041 = vadd.f32 %v459, %v3040
        %v3042 = vpop.f32.mrf.mxu0
        %v3043 = vpop.f32.mrf.mxu0
        %v3044 = vadd.f32 %v460, %v3043
        %v3045 = vpop.f32.mrf.mxu0
        %3046 = vmatprep.mubr.bf16.mxu0 0
        %3047 = vmatmul.mubr.bf16.gmra.mxu0 %v2913
        %v3048 = vpop.f32.mrf.mxu0
        %v3049 = vadd.f32 %v461, %v3048
        %v3050 = vpop.f32.mrf.mxu0
        %v3051 = vpop.f32.mrf.mxu0
        %v3052 = vadd.f32 %v462, %v3051
        %v3053 = vpop.f32.mrf.mxu0
        %3054 = vmatprep.mubr.bf16.mxu0 0
        %3055 = vmatmul.mubr.bf16.gmra.mxu0 %v2914
        %v3056 = vpop.f32.mrf.mxu0
        %v3057 = vadd.f32 %v463, %v3056
        %v3058 = vpop.f32.mrf.mxu0
        %v3059 = vpop.f32.mrf.mxu0
        %v3060 = vadd.f32 %v464, %v3059
        %v3061 = vpop.f32.mrf.mxu0
        %3062 = vmatprep.mubr.bf16.mxu0 0
        %3063 = vmatmul.mubr.bf16.gmra.mxu0 %v2915
        %v3064 = vpop.f32.mrf.mxu0
        %v3065 = vadd.f32 %v465, %v3064
        %v3066 = vpop.f32.mrf.mxu0
        %v3067 = vpop.f32.mrf.mxu0
        %v3068 = vadd.f32 %v466, %v3067
        %v3069 = vpop.f32.mrf.mxu0
        %3070 = vmatprep.mubr.bf16.mxu0 0
        %3071 = vmatmul.mubr.bf16.gmra.mxu0 %v2916
        %v3072 = vpop.f32.mrf.mxu0
        %v3073 = vadd.f32 %v467, %v3072
        %v3074 = vpop.f32.mrf.mxu0
        %v3075 = vpop.f32.mrf.mxu0
        %v3076 = vadd.f32 %v468, %v3075
        %v3077 = vpop.f32.mrf.mxu0
        %3078 = vmatprep.mubr.bf16.mxu0 0
        %3079 = vmatmul.mubr.bf16.gmra.mxu0 %v2917
        %v3080 = vpop.f32.mrf.mxu0
        %v3081 = vadd.f32 %v469, %v3080
        %v3082 = vpop.f32.mrf.mxu0
        %v3083 = vpop.f32.mrf.mxu0
        %v3084 = vadd.f32 %v470, %v3083
        %v3085 = vpop.f32.mrf.mxu0
        %3086 = vmatprep.mubr.bf16.mxu0 0
        %3087 = vmatmul.mubr.bf16.gmra.mxu0 %v2918
        %v3088 = vpop.f32.mrf.mxu0
        %v3089 = vadd.f32 %v471, %v3088
        %v3090 = vpop.f32.mrf.mxu0
        %v3091 = vpop.f32.mrf.mxu0
        %v3092 = vadd.f32 %v472, %v3091
        %v3093 = vpop.f32.mrf.mxu0
        %3094 = vmatprep.mubr.bf16.mxu0 0
        %3095 = vmatmul.mubr.bf16.gmra.mxu0 %v2919
        %v3096 = vpop.f32.mrf.mxu0
        %v3097 = vadd.f32 %v473, %v3096
        %v3098 = vpop.f32.mrf.mxu0
        %v3099 = vpop.f32.mrf.mxu0
        %v3100 = vadd.f32 %v474, %v3099
        %v3101 = vpop.f32.mrf.mxu0
        %3102 = vmatprep.mubr.bf16.mxu0 0
        %3103 = vmatmul.mubr.bf16.gmra.mxu0 %v2920
        %v3104 = vpop.f32.mrf.mxu0
        %v3105 = vadd.f32 %v475, %v3104
        %v3106 = vpop.f32.mrf.mxu0
        %v3107 = vpop.f32.mrf.mxu0
        %v3108 = vadd.f32 %v476, %v3107
        %v3109 = vpop.f32.mrf.mxu0
        %3110 = vmatprep.mubr.bf16.mxu0 0
        %3111 = vmatmul.mubr.bf16.gmra.mxu0 %v2921
        %v3112 = vpop.f32.mrf.mxu0
        %v3113 = vadd.f32 %v477, %v3112
        %v3114 = vpop.f32.mrf.mxu0
        %v3115 = vpop.f32.mrf.mxu0
        %v3116 = vadd.f32 %v478, %v3115
        %v3117 = vpop.f32.mrf.mxu0
        %3118 = vmatprep.mubr.bf16.mxu0 0
        %3119 = vmatmul.mubr.bf16.gmra.mxu0 %v2922
        %v3120 = vpop.f32.mrf.mxu0
        %v3121 = vadd.f32 %v479, %v3120
        %v3122 = vpop.f32.mrf.mxu0
        %v3123 = vpop.f32.mrf.mxu0
        %v3124 = vadd.f32 %v480, %v3123
        %v3125 = vpop.f32.mrf.mxu0
        %3126 = vmatprep.mubr.bf16.mxu0 0
        %3127 = vmatmul.mubr.bf16.gmra.mxu0 %v2923
        %v3128 = vpop.f32.mrf.mxu0
        %v3129 = vadd.f32 %v481, %v3128
        %v3130 = vpop.f32.mrf.mxu0
        %v3131 = vpop.f32.mrf.mxu0
        %v3132 = vadd.f32 %v482, %v3131
        %v3133 = vpop.f32.mrf.mxu0
        %3134 = vmatprep.mubr.bf16.mxu0 0
        %3135 = vmatmul.mubr.bf16.gmra.mxu0 %v2924
        %v3136 = vpop.f32.mrf.mxu0
        %v3137 = vadd.f32 %v483, %v3136
        %v3138 = vpop.f32.mrf.mxu0
        %v3139 = vpop.f32.mrf.mxu0
        %v3140 = vadd.f32 %v484, %v3139
        %v3141 = vpop.f32.mrf.mxu0
        %3142 = vmatprep.mubr.bf16.mxu0 0
        %3143 = vmatmul.mubr.bf16.gmra.mxu0 %v2925
        %v3144 = vpop.f32.mrf.mxu0
        %v3145 = vadd.f32 %v485, %v3144
        %v3146 = vpop.f32.mrf.mxu0
        %v3147 = vpop.f32.mrf.mxu0
        %v3148 = vadd.f32 %v486, %v3147
        %v3149 = vpop.f32.mrf.mxu0
        %3150 = vdwg.mxu0
        %3151 = vst [vmem:[%s421] sm:$0xff] %v3025
        %3152 = vst [vmem:[%s421 + $0x8] sm:$0xff] %v3028
        %3153 = vst [vmem:[%s421 + $0x10] sm:$0xff] %v3033
        %3154 = vst [vmem:[%s421 + $0x18] sm:$0xff] %v3036
        %3155 = vst [vmem:[%s421 + $0x20] sm:$0xff] %v3041
        %3156 = vst [vmem:[%s421 + $0x28] sm:$0xff] %v3044
        %3157 = vst [vmem:[%s421 + $0x30] sm:$0xff] %v3049
        %3158 = vst [vmem:[%s421 + $0x38] sm:$0xff] %v3052
        %3159 = vst [vmem:[%s421 + $0x40] sm:$0xff] %v3057
        %3160 = vst [vmem:[%s421 + $0x48] sm:$0xff] %v3060
        %3161 = vst [vmem:[%s421 + $0x50] sm:$0xff] %v3065
        %3162 = vst [vmem:[%s421 + $0x58] sm:$0xff] %v3068
        %3163 = vst [vmem:[%s421 + $0x60] sm:$0xff] %v3073
        %3164 = vst [vmem:[%s421 + $0x68] sm:$0xff] %v3076
        %3165 = vst [vmem:[%s421 + $0x70] sm:$0xff] %v3081
        %3166 = vst [vmem:[%s421 + $0x78] sm:$0xff] %v3084
        %3167 = vst [vmem:[%s421 + $0x80] sm:$0xff] %v3089
        %3168 = vst [vmem:[%s421 + $0x88] sm:$0xff] %v3092
        %3169 = vst [vmem:[%s421 + $0x90] sm:$0xff] %v3097
        %3170 = vst [vmem:[%s421 + $0x98] sm:$0xff] %v3100
        %3171 = vst [vmem:[%s421 + $0xa0] sm:$0xff] %v3105
        %3172 = vst [vmem:[%s421 + $0xa8] sm:$0xff] %v3108
        %3173 = vst [vmem:[%s421 + $0xb0] sm:$0xff] %v3113
        %3174 = vst [vmem:[%s421 + $0xb8] sm:$0xff] %v3116
        %3175 = vst [vmem:[%s421 + $0xc0] sm:$0xff] %v3121
        %3176 = vst [vmem:[%s421 + $0xc8] sm:$0xff] %v3124
        %3177 = vst [vmem:[%s421 + $0xd0] sm:$0xff] %v3129
        %3178 = vst [vmem:[%s421 + $0xd8] sm:$0xff] %v3132
        %3179 = vst [vmem:[%s421 + $0xe0] sm:$0xff] %v3137
        %3180 = vst [vmem:[%s421 + $0xe8] sm:$0xff] %v3140
        %3181 = vst [vmem:[%s421 + $0xf0] sm:$0xff] %v3145
        %3182 = vst [vmem:[%s421 + $0xf8] sm:$0xff] %v3148
        %s3183 = sand.u32 %s252, 1
        %s3184 = scalar_lea.sflag [#allocation4], %s3183
        %s3185 = sand.u32 %s252, 1
        %s3186 = smul.addr %s3185, 256
        %s3187 = scalar_lea.vmem [#allocation10], %s3186
        // Predicated region
        $region77: #{tpu_custom_call.1} parent=59 // pred_check
          %p3188 = pneg %p262
        $region78: #{tpu_custom_call.1} parent=59 // pred_check_branch
          %3190 = sbr.rel (%p3188) target = $region80
        $region79: #{tpu_custom_call.1} parent=59 // pred_region
          %s3192 = ssub.s32 4096, 4096
          %3193 = vsyncadd %s3184, %s3192
          %s3194 = smul.addr %s29, 32
          %s3195 = smul.addr %s3194, 128
          %s3196 = scalar_lea.hbm %s10, %s3195
          %s3197 = sshll.u32 %s3187, 4
          %s3198 = int_to_ptr.vmem [resolvable:$true] %s3197
          %3203 = dma.vmem_to_hbm [thread:$0]  %s3198, 4096, %s3196, %s3184, 128, 128, 8
        $region80: #{tpu_custom_call.1} parent=59 // pred_fallthru
          _
      $region60: #{tpu_custom_call.1} parent=5 // pred_fallthru
        _
      %p3204 = scmp.le.s32.totalorder 2, %s24
      // Predicated region
      $region81: #{tpu_custom_call.1} parent=5 // pred_check
        %p3205 = pneg %p3204
      $region82: #{tpu_custom_call.1} parent=5 // pred_check_branch
        %3207 = sbr.rel (%p3205) target = $region84
      $region83: #{tpu_custom_call.1} parent=5 // pred_region
        %s3208 = ssub.s32 %s24, 2
        // Predicated region
        $region85: #{tpu_custom_call.1} parent=83 // pred_check
          %p3209 = pneg %p268
        $region86: #{tpu_custom_call.1} parent=83 // pred_check_branch
          %3211 = sbr.rel (%p3209) target = $region88
        $region87: #{tpu_custom_call.1} parent=83 // pred_region
          %s3212 = sand.u32 %s253, 1
          %s3213 = scalar_lea.sflag [#allocation4], %s3212
          %s3214 = sand.u32 %s253, 1
          %s3215 = smul.addr %s3214, 256
          %s3216 = scalar_lea.vmem [#allocation10], %s3215
          %3217 = dma.done %s3213, 4096
        $region88: #{tpu_custom_call.1} parent=83 // pred_fallthru
          _
      $region84: #{tpu_custom_call.1} parent=5 // pred_fallthru
        _
    $region6: #{tpu_custom_call.1} parent=1 // loop_footer
      %s28 = sadd.s32 1, %s24
    $region7: #{tpu_custom_call.1} parent=1 // loop_footer_branch
      %23 = sbr.rel target = $region3
    $region8: #{tpu_custom_call.1} parent=1 // loop_exit
      _
    %3218 = vsyncpa [#allocation3], 1
    %s3219 = scalar_lea.sflag [#allocation3], 1
    %3220 = vsyncpa %s3219, 1
    %3221 = vsyncpa [#allocation6], 1
    %3222 = vsyncpa [#allocation9], 1
    %3223 = vsyncpa [#allocation4], 1
    %s3224 = scalar_lea.sflag [#allocation4], 1
    %3225 = vsyncpa %s3224, 1

</llo_original>
